<compile_context>
chip_gen: v7x
topology: tpu7x:2x2x1
jax: 0.10.0
libtpu: 0.0.40
codegen_flags: <defaults>
</compile_context>

<pallas_src>
import functools

import jax
import jax.numpy as jnp
from jax import lax
from jax.experimental import pallas as pl
from jax.experimental.pallas import tpu as pltpu

_MATMUL_DTYPE = jnp.bfloat16      # MXU-native operand dtype; accumulation stays f32
_LN_EPS = 1e-5
_VMEM_LIMIT = 64 * 1024 * 1024    # <= physical VMEM on v5e/v6e/v7x


# ----------------------------------------------------------------------------
# tile helpers (remainder-safe)
# ----------------------------------------------------------------------------

def _pick_tile(dim, target, align):
    """Largest block <= target that is an `align`-multiple divisor of dim, else full dim."""
    if dim <= target:
        return dim
    t = (target // align) * align
    while t >= align:
        if dim % t == 0:
            return t
        t -= align
    return dim


def _row_tile_and_pad(M, target, align=8):
    """Row tile + padded extent. If no aligned divisor exists, pad rows up to the tile
    instead of falling back to one huge block (which kills pipelining / VMEM)."""
    t = _pick_tile(M, target, align)
    if t == M and M > target:
        t = max((target // align) * align, align)
        Mp = ((M + t - 1) // t) * t
        return t, Mp
    return t, M


def _pad_axis(x, axis, new_size):
    pad = new_size - x.shape[axis]
    if pad == 0:
        return x
    widths = [(0, 0)] * x.ndim
    widths[axis] = (0, pad)
    return jnp.pad(x, widths)


# ----------------------------------------------------------------------------
# Kernel 1: tiled matmul + bias (+optional relu) with K-axis accumulation
# ----------------------------------------------------------------------------

def _matmul_kernel(x_ref, w_ref, b_ref, o_ref, acc_ref, *, act):
    @pl.when(pl.program_id(2) == 0)
    def _():
        acc_ref[...] = jnp.zeros_like(acc_ref)

    acc_ref[...] += jnp.dot(x_ref[...].astype(_MATMUL_DTYPE),
                            w_ref[...].astype(_MATMUL_DTYPE),
                            preferred_element_type=jnp.float32)

    @pl.when(pl.program_id(2) == pl.num_programs(2) - 1)
    def _():
        y = acc_ref[...] + b_ref[...]
        if act == "relu":
            y = jnp.maximum(y, 0.0)
        o_ref[...] = y.astype(o_ref.dtype)


def linear(x, w, b, act="none", tm=256, tn=512, tk=1024):
    """y = act(x @ w + b). x: (M, K) f32; w: (K, N) bf16 (pre-cast); b: (N,) f32."""
    M, K = x.shape
    N = w.shape[1]
    tm, Mp = _row_tile_and_pad(M, tm, 8)
    x = _pad_axis(x, 0, Mp)
    tn = _pick_tile(N, tn, 128)
    tk = _pick_tile(K, tk, 128)
    out = pl.pallas_call(
        functools.partial(_matmul_kernel, act=act),
        out_shape=jax.ShapeDtypeStruct((Mp, N), jnp.float32),
        grid=(Mp // tm, N // tn, K // tk),
        in_specs=[
            pl.BlockSpec((tm, tk), lambda i, j, k: (i, k)),
            pl.BlockSpec((tk, tn), lambda i, j, k: (k, j)),
            pl.BlockSpec((1, tn), lambda i, j, k: (0, j)),
        ],
        out_specs=pl.BlockSpec((tm, tn), lambda i, j, k: (i, j)),
        scratch_shapes=[pltpu.VMEM((tm, tn), jnp.float32)],
        compiler_params=pltpu.CompilerParams(
            dimension_semantics=("parallel", "parallel", "arbitrary"),
            vmem_limit_bytes=_VMEM_LIMIT),
    )(x, w, b.reshape(1, N))
    return out[:M]


# ----------------------------------------------------------------------------
# Kernel 2: multi-head attention + output projection + residual + LayerNorm
#           (all heads per grid step, single lane-dense (tq, D) store)
# ----------------------------------------------------------------------------

def _mha_proj_ln_kernel(q_ref, k_ref, v_ref, wo_ref, bo_ref, res_ref, g_ref, beta_ref,
                        o_ref, head_acc, *, nhead):
    # q_ref/res_ref/o_ref: (1, tq, D); k_ref/v_ref: (1, Lk, D); wo_ref: (D, D) bf16
    D = q_ref.shape[-1]
    Dh = D // nhead
    for h in range(nhead):  # static unroll over heads
        lo = h * Dh
        q = q_ref[0, :, lo:lo + Dh].astype(_MATMUL_DTYPE)   # 1/sqrt(Dh) pre-folded into Wq
        k = k_ref[0, :, lo:lo + Dh].astype(_MATMUL_DTYPE)
        v = v_ref[0, :, lo:lo + Dh].astype(_MATMUL_DTYPE)
        # contract on K's last dim directly -> no K^T relayout through the XLU
        s = lax.dot_general(q, k, (((1,), (1,)), ((), ())),
                            preferred_element_type=jnp.float32)          # (tq, Lk)
        s = s - jnp.max(s, axis=-1, keepdims=True)
        p = jnp.exp(s)
        denom = jnp.sum(p, axis=-1, keepdims=True)
        o = jnp.dot(p.astype(_MATMUL_DTYPE), v,
                    preferred_element_type=jnp.float32)                  # (tq, Dh)
        # normalize AFTER P.V: (tq, Dh) VPU multiply instead of (tq, Lk).
        # approx=True runs on the EUP slot; numerics are already bf16-level.
        head_acc[:, lo:lo + Dh] = o * pl.reciprocal(denom, approx=True)

    # fused output projection + residual add + LayerNorm, one lane-dense store
    y = jnp.dot(head_acc[...].astype(_MATMUL_DTYPE), wo_ref[...].astype(_MATMUL_DTYPE),
                preferred_element_type=jnp.float32) + bo_ref[...]
    z = y + res_ref[0].astype(jnp.float32)
    mu = jnp.mean(z, axis=-1, keepdims=True)
    var = jnp.mean(jnp.square(z - mu), axis=-1, keepdims=True)
    zn = (z - mu) * lax.rsqrt(var + _LN_EPS)
    o_ref[0] = (zn * g_ref[...] + beta_ref[...]).astype(o_ref.dtype)
    # TODO(synk): flash-style streaming over Lk tiles + key_padding_mask support for
    # long DETR sequences (current kernel holds full (Lk, D) K/V per batch step).


def attention_proj_ln(q, k, v, residual, wo, bo, g, beta, nhead, tq=128):
    """LayerNorm(residual + MHA(q, k, v) @ wo + bo). q/residual: (B, Lq, D); k, v: (B, Lk, D)."""
    B, Lq, D = q.shape
    Lk = k.shape[1]
    tq, Lqp = _row_tile_and_pad(Lq, tq, 8)
    q = _pad_axis(q, 1, Lqp)
    residual = _pad_axis(residual, 1, Lqp)
    out = pl.pallas_call(
        functools.partial(_mha_proj_ln_kernel, nhead=nhead),
        out_shape=jax.ShapeDtypeStruct((B, Lqp, D), jnp.float32),
        grid=(B, Lqp // tq),
        in_specs=[
            pl.BlockSpec((1, tq, D), lambda b, i: (b, i, 0)),
            pl.BlockSpec((1, Lk, D), lambda b, i: (b, 0, 0)),
            pl.BlockSpec((1, Lk, D), lambda b, i: (b, 0, 0)),
            pl.BlockSpec((D, D), lambda b, i: (0, 0)),
            pl.BlockSpec((1, D), lambda b, i: (0, 0)),
            pl.BlockSpec((1, tq, D), lambda b, i: (b, i, 0)),
            pl.BlockSpec((1, D), lambda b, i: (0, 0)),
            pl.BlockSpec((1, D), lambda b, i: (0, 0)),
        ],
        out_specs=pl.BlockSpec((1, tq, D), lambda b, i: (b, i, 0)),
        scratch_shapes=[pltpu.VMEM((tq, D), jnp.float32)],
        compiler_params=pltpu.CompilerParams(
            dimension_semantics=("parallel", "parallel"),
            vmem_limit_bytes=_VMEM_LIMIT),
    )(q, k, v, wo, bo.reshape(1, D), residual, g.reshape(1, D), beta.reshape(1, D))
    return out[:, :Lq]


# ----------------------------------------------------------------------------
# Kernel 3: FFN (lin1 + ReLU + lin2, FF-tiled) + residual add + LayerNorm
# ----------------------------------------------------------------------------

def _ffn_add_ln_kernel(x_ref, w1_ref, b1_ref, w2_ref, b2_ref, g_ref, beta_ref,
                       o_ref, acc_ref):
    f = pl.program_id(1)

    @pl.when(f == 0)
    def _():
        acc_ref[...] = jnp.zeros_like(acc_ref)

    x = x_ref[...]
    h = jnp.dot(x.astype(_MATMUL_DTYPE), w1_ref[...].astype(_MATMUL_DTYPE),
                preferred_element_type=jnp.float32) + b1_ref[...]
    h = jnp.maximum(h, 0.0)                         # hidden chunk never leaves VMEM
    acc_ref[...] += jnp.dot(h.astype(_MATMUL_DTYPE), w2_ref[...].astype(_MATMUL_DTYPE),
                            preferred_element_type=jnp.float32)

    @pl.when(f == pl.num_programs(1) - 1)
    def _():
        z = acc_ref[...] + b2_ref[...] + x.astype(jnp.float32)
        mu = jnp.mean(z, axis=-1, keepdims=True)
        var = jnp.mean(jnp.square(z - mu), axis=-1, keepdims=True)
        zn = (z - mu) * lax.rsqrt(var + _LN_EPS)
        o_ref[...] = (zn * g_ref[...] + beta_ref[...]).astype(o_ref.dtype)


def ffn_add_layernorm(x, w1, b1, w2, b2, g, beta, tm=256, tf=512):
    """LayerNorm(x + lin2(relu(lin1(x)))). x: (M, D) f32; w1: (D, FF) bf16; w2: (FF, D) bf16."""
    M, D = x.shape
    FF = w1.shape[1]
    tm, Mp = _row_tile_and_pad(M, tm, 8)
    x = _pad_axis(x, 0, Mp)
    tf = _pick_tile(FF, tf, 128)
    out = pl.pallas_call(
        _ffn_add_ln_kernel,
        out_shape=jax.ShapeDtypeStruct((Mp, D), jnp.float32),
        grid=(Mp // tm, FF // tf),
        in_specs=[
            pl.BlockSpec((tm, D), lambda i, f: (i, 0)),
            pl.BlockSpec((D, tf), lambda i, f: (0, f)),
            pl.BlockSpec((1, tf), lambda i, f: (0, f)),
            pl.BlockSpec((tf, D), lambda i, f: (f, 0)),
            pl.BlockSpec((1, D), lambda i, f: (0, 0)),
            pl.BlockSpec((1, D), lambda i, f: (0, 0)),
            pl.BlockSpec((1, D), lambda i, f: (0, 0)),
        ],
        out_specs=pl.BlockSpec((tm, D), lambda i, f: (i, 0)),
        scratch_shapes=[pltpu.VMEM((tm, D), jnp.float32)],
        compiler_params=pltpu.CompilerParams(
            dimension_semantics=("parallel", "arbitrary"),
            vmem_limit_bytes=_VMEM_LIMIT),
    )(x, w1, b1.reshape(1, FF), w2, b2.reshape(1, D), g.reshape(1, D), beta.reshape(1, D))
    return out[:M]


# ----------------------------------------------------------------------------
# Kernel 4: plain LayerNorm (final decoder norm), tiled over M
# ----------------------------------------------------------------------------

def _ln_kernel(x_ref, g_ref, b_ref, o_ref):
    z = x_ref[...].astype(jnp.float32)
    mu = jnp.mean(z, axis=-1, keepdims=True)
    var = jnp.mean(jnp.square(z - mu), axis=-1, keepdims=True)
    zn = (z - mu) * lax.rsqrt(var + _LN_EPS)
    o_ref[...] = (zn * g_ref[...] + b_ref[...]).astype(o_ref.dtype)


def layernorm(x, g, b, tm=512):
    M, D = x.shape
    tm, Mp = _row_tile_and_pad(M, tm, 8)
    x = _pad_axis(x, 0, Mp)
    out = pl.pallas_call(
        _ln_kernel,
        out_shape=jax.ShapeDtypeStruct((Mp, D), jnp.float32),
        grid=(Mp // tm,),
        in_specs=[
            pl.BlockSpec((tm, D), lambda i: (i, 0)),
            pl.BlockSpec((1, D), lambda i: (0, 0)),
            pl.BlockSpec((1, D), lambda i: (0, 0)),
        ],
        out_specs=pl.BlockSpec((tm, D), lambda i: (i, 0)),
        compiler_params=pltpu.CompilerParams(
            dimension_semantics=("parallel",),
            vmem_limit_bytes=_VMEM_LIMIT),
    )(x, g.reshape(1, D), b.reshape(1, D))
    return out[:M]


# ----------------------------------------------------------------------------
# Transformer built from the kernels above (glue in plain JAX; batch-major (B, L, D))
# ----------------------------------------------------------------------------

def encoder_layer(x, pos, p, nhead):
    # post-norm (normalize_before=False); q = k = x + pos, value = x
    B, L, D = x.shape
    M = B * L
    x2d = x.reshape(M, D)
    qk_in = (x + pos).reshape(M, D)
    qk = linear(qk_in, p["wqk"], p["bqk"])                     # fused (scaled-Q | K) projection
    q = qk[:, :D].reshape(B, L, D)
    k = qk[:, D:].reshape(B, L, D)
    v = linear(x2d, p["wv"], p["bv"]).reshape(B, L, D)
    x = attention_proj_ln(q, k, v, x, p["wo"], p["bo"], p["norm1_g"], p["norm1_b"], nhead)
    x2d = ffn_add_layernorm(x.reshape(M, D), p["lin1_w"], p["lin1_b"],
                            p["lin2_w"], p["lin2_b"], p["norm2_g"], p["norm2_b"])
    return x2d.reshape(B, L, D)


def decoder_layer(tgt, memory, mem_plus_pos, query_pos, p, nhead):
    # omit_selfattn=True: only cross-attention + FFN (norm2 / norm3 branch)
    B, Nq, D = tgt.shape
    L = memory.shape[1]
    Mq, Mk = B * Nq, B * L
    q = linear((tgt + query_pos).reshape(Mq, D), p["wq"], p["bq"]).reshape(B, Nq, D)
    k = linear(mem_plus_pos.reshape(Mk, D), p["wk"], p["bk"]).reshape(B, L, D)
    v = linear(memory.reshape(Mk, D), p["wv"], p["bv"]).reshape(B, L, D)
    t = attention_proj_ln(q, k, v, tgt, p["wo"], p["bo"], p["norm2_g"], p["norm2_b"], nhead)
    t2d = ffn_add_layernorm(t.reshape(Mq, D), p["lin1_w"], p["lin1_b"],
                            p["lin2_w"], p["lin2_b"], p["norm3_g"], p["norm3_b"])
    return t2d.reshape(B, Nq, D)


def transformer_forward(params, src, mask, query_embed, pos_embed, nhead):
    # src, pos_embed: (B, C, H, W); query_embed: (Nq, C); mask: None
    assert mask is None  # TODO(synk): key_padding_mask path not wired into the attention kernel
    bs, c, h, w = src.shape
    L = h * w
    src_b = src.reshape(bs, c, L).transpose(0, 2, 1)           # (B, L, C)
    pos_b = pos_embed.reshape(bs, c, L).transpose(0, 2, 1)     # (B, L, C)
    nq = query_embed.shape[0]
    qe = jnp.broadcast_to(query_embed[None, :, :], (bs, nq, c))

    x = src_b
    for lp in params["encoder"]:
        x = encoder_layer(x, pos_b, lp, nhead)
    memory = x

    mem_plus_pos = memory + pos_b                              # hoisted loop-invariant
    tgt = jnp.zeros((bs, nq, c), jnp.float32)
    for lp in params["decoder"]:
        tgt = decoder_layer(tgt, memory, mem_plus_pos, qe, lp, nhead)

    out = layernorm(tgt.reshape(bs * nq, c),
                    params["dec_norm_g"], params["dec_norm_b"]).reshape(bs, nq, c)

    hs = out[None]                                             # == hs.transpose(1, 2): (1, bs, nq, c)
    mem_out = memory.transpose(0, 2, 1).reshape(bs, c, h, w)   # == memory.permute(1,2,0).reshape(...)
    return hs, mem_out


transformer_forward_jit = jax.jit(transformer_forward, static_argnames=("nhead",))


# ----------------------------------------------------------------------------
# Parameter init (xavier_uniform for dim>1, zero bias, LN gamma=1 / beta=0) and
# one-time prep: fold the 1/sqrt(Dh) scale into Q weights and pre-cast to bf16.
# ----------------------------------------------------------------------------

def _xavier(key, shape):
    limit = (6.0 / (shape[0] + shape[1])) ** 0.5
    return jax.random.uniform(key, shape, jnp.float32, -limit, limit)


def _enc_layer_params(key, d, ff):
    ks = jax.random.split(key, 6)
    return {
        "wqk": jnp.concatenate([_xavier(ks[0], (d, d)), _xavier(ks[1], (d, d))], axis=1),
        "bqk": jnp.zeros((2 * d,), jnp.float32),
        "wv": _xavier(ks[2], (d, d)), "bv": jnp.zeros((d,), jnp.float32),
        "wo": _xavier(ks[3], (d, d)), "bo": jnp.zeros((d,), jnp.float32),
        "lin1_w": _xavier(ks[4], (d, ff)), "lin1_b": jnp.zeros((ff,), jnp.float32),
        "lin2_w": _xavier(ks[5], (ff, d)), "lin2_b": jnp.zeros((d,), jnp.float32),
        "norm1_g": jnp.ones((d,), jnp.float32), "norm1_b": jnp.zeros((d,), jnp.float32),
        "norm2_g": jnp.ones((d,), jnp.float32), "norm2_b": jnp.zeros((d,), jnp.float32),
    }


def _dec_layer_params(key, d, ff):
    ks = jax.random.split(key, 6)
    return {
        "wq": _xavier(ks[0], (d, d)), "bq": jnp.zeros((d,), jnp.float32),
        "wk": _xavier(ks[1], (d, d)), "bk": jnp.zeros((d,), jnp.float32),
        "wv": _xavier(ks[2], (d, d)), "bv": jnp.zeros((d,), jnp.float32),
        "wo": _xavier(ks[3], (d, d)), "bo": jnp.zeros((d,), jnp.float32),
        "lin1_w": _xavier(ks[4], (d, ff)), "lin1_b": jnp.zeros((ff,), jnp.float32),
        "lin2_w": _xavier(ks[5], (ff, d)), "lin2_b": jnp.zeros((d,), jnp.float32),
        "norm2_g": jnp.ones((d,), jnp.float32), "norm2_b": jnp.zeros((d,), jnp.float32),
        "norm3_g": jnp.ones((d,), jnp.float32), "norm3_b": jnp.zeros((d,), jnp.float32),
    }


def make_params(key, d_model, dim_feedforward, num_encoder_layers, num_decoder_layers):
    ks = jax.random.split(key, num_encoder_layers + num_decoder_layers)
    enc = [_enc_layer_params(ks[i], d_model, dim_feedforward)
           for i in range(num_encoder_layers)]
    dec = [_dec_layer_params(ks[num_encoder_layers + i], d_model, dim_feedforward)
           for i in range(num_decoder_layers)]
    return {
        "encoder": enc,
        "decoder": dec,
        "dec_norm_g": jnp.ones((d_model,), jnp.float32),
        "dec_norm_b": jnp.zeros((d_model,), jnp.float32),
    }


def prepare_params(params, nhead):
    """Fold the attention scale into Q projections and pre-cast matmul weights to bf16
    (once, outside the kernels). Biases and LayerNorm params stay f32."""
    d = params["dec_norm_g"].shape[0]
    scale = 1.0 / float(d // nhead) ** 0.5
    wdt = _MATMUL_DTYPE

    enc = []
    for p in params["encoder"]:
        q = dict(p)
        q["wqk"] = p["wqk"].at[:, :d].multiply(scale).astype(wdt)
        q["bqk"] = p["bqk"].at[:d].multiply(scale)
        q["wv"] = p["wv"].astype(wdt)
        q["wo"] = p["wo"].astype(wdt)
        q["lin1_w"] = p["lin1_w"].astype(wdt)
        q["lin2_w"] = p["lin2_w"].astype(wdt)
        enc.append(q)

    dec = []
    for p in params["decoder"]:
        q = dict(p)
        q["wq"] = (p["wq"] * scale).astype(wdt)
        q["bq"] = p["bq"] * scale
        q["wk"] = p["wk"].astype(wdt)
        q["wv"] = p["wv"].astype(wdt)
        q["wo"] = p["wo"].astype(wdt)
        q["lin1_w"] = p["lin1_w"].astype(wdt)
        q["lin2_w"] = p["lin2_w"].astype(wdt)
        dec.append(q)

    return {**params, "encoder": enc, "decoder": dec}


if __name__ == "__main__":
    # Small config consistent with the module: d_model=C, nhead divides d_model.
    d_model, nhead = 32, 4
    num_encoder_layers, num_decoder_layers = 2, 2
    dim_feedforward = 64
    bs, h, w = 2, 4, 4
    num_queries = 8

    key = jax.random.PRNGKey(0)
    kp, k1, k2, k3 = jax.random.split(key, 4)

    params = prepare_params(
        make_params(kp, d_model, dim_feedforward, num_encoder_layers, num_decoder_layers),
        nhead)

    src = jax.random.normal(k1, (bs, d_model, h, w), jnp.float32)
    pos_embed = jax.random.normal(k2, (bs, d_model, h, w), jnp.float32)
    query_embed = jax.random.normal(k3, (num_queries, d_model), jnp.float32)
    mask = None

    hs, memory = transformer_forward_jit(params, src, mask, query_embed, pos_embed,
                                         nhead=nhead)
    hs = jax.block_until_ready(hs)
    memory = jax.block_until_ready(memory)

    assert hs.shape == (1, bs, num_queries, d_model)
    assert memory.shape == (bs, d_model, h, w)
    assert bool(jnp.isfinite(hs).all()) and bool(jnp.isfinite(memory).all())
    print("KERNEL_OK")
</pallas_src>

<mosaic_0001>
module attributes {stable_mosaic.version = 11 : i64} {
  func.func @_matmul_kernel(%arg0: i32, %arg1: i32, %arg2: i32, %arg3: memref<32x32xf32, #tpu.memory_space<vmem>>, %arg4: memref<32x32xbf16, #tpu.memory_space<vmem>>, %arg5: memref<1x32xf32, #tpu.memory_space<vmem>>, %arg6: memref<32x32xf32, #tpu.memory_space<vmem>>, %arg7: memref<32x32xf32, #tpu.memory_space<vmem>>) attributes {dimension_semantics = [#tpu.dimension_semantics<parallel>, #tpu.dimension_semantics<parallel>, #tpu.dimension_semantics<arbitrary>], iteration_bounds = array<i64: 1, 1, 1>, scalar_prefetch = 0 : i64, scratch_operands = 1 : i64, tpu.core_type = #tpu.core_type<tc>, window_params = [{transform_indices = @transform_0, window_bounds = array<i64: 32, 32>}, {transform_indices = @transform_1, window_bounds = array<i64: 32, 32>}, {transform_indices = @transform_2, window_bounds = array<i64: 1, 32>}, {transform_indices = @transform_3, window_bounds = array<i64: 32, 32>}]} {
    %c0_i32 = arith.constant 0 : i32
    %0 = arith.cmpi eq, %arg2, %c0_i32 : i32
    %1 = arith.extui %0 : i1 to i32
    %c0_i32_0 = arith.constant 0 : i32
    %2 = arith.cmpi ne, %1, %c0_i32_0 : i32
    scf.if %2 {
      %cst_10 = arith.constant 0.000000e+00 : f32
      %13 = vector.broadcast %cst_10 : f32 to vector<32x32xf32>
      %c0_11 = arith.constant 0 : index
      %c0_12 = arith.constant 0 : index
      %14 = vector.load %arg7[%c0_11, %c0_12] : memref<32x32xf32, #tpu.memory_space<vmem>>, vector<32x32xf32>
      tpu.vector_store %arg7[%c0_11, %c0_12], %13 {strides = array<i32>} : memref<32x32xf32, #tpu.memory_space<vmem>>, vector<32x32xf32>,
    } else {
    }
    %c0 = arith.constant 0 : index
    %c0_1 = arith.constant 0 : index
    %3 = vector.load %arg7[%c0, %c0_1] : memref<32x32xf32, #tpu.memory_space<vmem>>, vector<32x32xf32>
    %c0_2 = arith.constant 0 : index
    %c0_3 = arith.constant 0 : index
    %4 = vector.load %arg3[%c0_2, %c0_3] : memref<32x32xf32, #tpu.memory_space<vmem>>, vector<32x32xf32>
    %5 = arith.truncf %4 : vector<32x32xf32> to vector<32x32xbf16>
    %c0_4 = arith.constant 0 : index
    %c0_5 = arith.constant 0 : index
    %6 = vector.load %arg4[%c0_4, %c0_5] : memref<32x32xbf16, #tpu.memory_space<vmem>>, vector<32x32xbf16>
    %cst = arith.constant dense<0.000000e+00> : vector<32x32xf32>
    %7 = tpu.matmul %5, %6, %cst {dimension_numbers = #tpu.dot_dimension_numbers<[1], [0], [0], [1], [0, 0, 1, 1], [], []>} : vector<32x32xbf16>, vector<32x32xbf16>, vector<32x32xf32> -> vector<32x32xf32>
    %8 = arith.addf %3, %7 : vector<32x32xf32>
    %c0_6 = arith.constant 0 : index
    %c0_7 = arith.constant 0 : index
    %9 = vector.load %arg7[%c0_6, %c0_7] : memref<32x32xf32, #tpu.memory_space<vmem>>, vector<32x32xf32>
    tpu.vector_store %arg7[%c0_6, %c0_7], %8 {strides = array<i32>} : memref<32x32xf32, #tpu.memory_space<vmem>>, vector<32x32xf32>,
    %c0_i32_8 = arith.constant 0 : i32
    %10 = arith.cmpi eq, %arg2, %c0_i32_8 : i32
    %11 = arith.extui %10 : i1 to i32
    %c0_i32_9 = arith.constant 0 : i32
    %12 = arith.cmpi ne, %11, %c0_i32_9 : i32
    scf.if %12 {
      %c0_10 = arith.constant 0 : index
      %c0_11 = arith.constant 0 : index
      %13 = vector.load %arg7[%c0_10, %c0_11] : memref<32x32xf32, #tpu.memory_space<vmem>>, vector<32x32xf32>
      %c0_12 = arith.constant 0 : index
      %c0_13 = arith.constant 0 : index
      %14 = vector.load %arg5[%c0_12, %c0_13] : memref<1x32xf32, #tpu.memory_space<vmem>>, vector<1x32xf32>
      %15 = vector.broadcast %14 : vector<1x32xf32> to vector<32x32xf32>
      %16 = arith.addf %13, %15 : vector<32x32xf32>
      %c0_14 = arith.constant 0 : index
      %c0_15 = arith.constant 0 : index
      %17 = vector.load %arg6[%c0_14, %c0_15] : memref<32x32xf32, #tpu.memory_space<vmem>>, vector<32x32xf32>
      tpu.vector_store %arg6[%c0_14, %c0_15], %16 {strides = array<i32>} : memref<32x32xf32, #tpu.memory_space<vmem>>, vector<32x32xf32>,
    } else {
    }
    return
  }
  func.func @transform_0(%arg0: i32, %arg1: i32, %arg2: i32) -> (i32, i32) {
    %c0_i32 = arith.constant 0 : i32
    return %arg0, %arg2 : i32, i32
  }
  func.func @transform_1(%arg0: i32, %arg1: i32, %arg2: i32) -> (i32, i32) {
    %c0_i32 = arith.constant 0 : i32
    return %arg2, %arg1 : i32, i32
  }
  func.func @transform_2(%arg0: i32, %arg1: i32, %arg2: i32) -> (i32, i32) {
    %c0_i32 = arith.constant 0 : i32
    %c0_i32_0 = arith.constant 0 : i32
    return %c0_i32, %arg1 : i32, i32
  }
  func.func @transform_3(%arg0: i32, %arg1: i32, %arg2: i32) -> (i32, i32) {
    %c0_i32 = arith.constant 0 : i32
    return %arg0, %arg1 : i32, i32
  }
}

module attributes {stable_mosaic.version = 11 : i64} {
  func.func @_matmul_kernel(%arg0: i32, %arg1: i32, %arg2: i32, %arg3: memref<32x32xf32, #tpu.memory_space<vmem>>, %arg4: memref<32x64xbf16, #tpu.memory_space<vmem>>, %arg5: memref<1x64xf32, #tpu.memory_space<vmem>>, %arg6: memref<32x64xf32, #tpu.memory_space<vmem>>, %arg7: memref<32x64xf32, #tpu.memory_space<vmem>>) attributes {dimension_semantics = [#tpu.dimension_semantics<parallel>, #tpu.dimension_semantics<parallel>, #tpu.dimension_semantics<arbitrary>], iteration_bounds = array<i64: 1, 1, 1>, scalar_prefetch = 0 : i64, scratch_operands = 1 : i64, tpu.core_type = #tpu.core_type<tc>, window_params = [{transform_indices = @transform_0, window_bounds = array<i64: 32, 32>}, {transform_indices = @transform_1, window_bounds = array<i64: 32, 64>}, {transform_indices = @transform_2, window_bounds = array<i64: 1, 64>}, {transform_indices = @transform_3, window_bounds = array<i64: 32, 64>}]} {
    %c0_i32 = arith.constant 0 : i32
    %0 = arith.cmpi eq, %arg2, %c0_i32 : i32
    %1 = arith.extui %0 : i1 to i32
    %c0_i32_0 = arith.constant 0 : i32
    %2 = arith.cmpi ne, %1, %c0_i32_0 : i32
    scf.if %2 {
      %cst_10 = arith.constant 0.000000e+00 : f32
      %13 = vector.broadcast %cst_10 : f32 to vector<32x64xf32>
      %c0_11 = arith.constant 0 : index
      %c0_12 = arith.constant 0 : index
      %14 = vector.load %arg7[%c0_11, %c0_12] : memref<32x64xf32, #tpu.memory_space<vmem>>, vector<32x64xf32>
      tpu.vector_store %arg7[%c0_11, %c0_12], %13 {strides = array<i32>} : memref<32x64xf32, #tpu.memory_space<vmem>>, vector<32x64xf32>,
    } else {
    }
    %c0 = arith.constant 0 : index
    %c0_1 = arith.constant 0 : index
    %3 = vector.load %arg7[%c0, %c0_1] : memref<32x64xf32, #tpu.memory_space<vmem>>, vector<32x64xf32>
    %c0_2 = arith.constant 0 : index
    %c0_3 = arith.constant 0 : index
    %4 = vector.load %arg3[%c0_2, %c0_3] : memref<32x32xf32, #tpu.memory_space<vmem>>, vector<32x32xf32>
    %5 = arith.truncf %4 : vector<32x32xf32> to vector<32x32xbf16>
    %c0_4 = arith.constant 0 : index
    %c0_5 = arith.constant 0 : index
    %6 = vector.load %arg4[%c0_4, %c0_5] : memref<32x64xbf16, #tpu.memory_space<vmem>>, vector<32x64xbf16>
    %cst = arith.constant dense<0.000000e+00> : vector<32x64xf32>
    %7 = tpu.matmul %5, %6, %cst {dimension_numbers = #tpu.dot_dimension_numbers<[1], [0], [0], [1], [0, 0, 1, 1], [], []>} : vector<32x32xbf16>, vector<32x64xbf16>, vector<32x64xf32> -> vector<32x64xf32>
    %8 = arith.addf %3, %7 : vector<32x64xf32>
    %c0_6 = arith.constant 0 : index
    %c0_7 = arith.constant 0 : index
    %9 = vector.load %arg7[%c0_6, %c0_7] : memref<32x64xf32, #tpu.memory_space<vmem>>, vector<32x64xf32>
    tpu.vector_store %arg7[%c0_6, %c0_7], %8 {strides = array<i32>} : memref<32x64xf32, #tpu.memory_space<vmem>>, vector<32x64xf32>,
    %c0_i32_8 = arith.constant 0 : i32
    %10 = arith.cmpi eq, %arg2, %c0_i32_8 : i32
    %11 = arith.extui %10 : i1 to i32
    %c0_i32_9 = arith.constant 0 : i32
    %12 = arith.cmpi ne, %11, %c0_i32_9 : i32
    scf.if %12 {
      %c0_10 = arith.constant 0 : index
      %c0_11 = arith.constant 0 : index
      %13 = vector.load %arg7[%c0_10, %c0_11] : memref<32x64xf32, #tpu.memory_space<vmem>>, vector<32x64xf32>
      %c0_12 = arith.constant 0 : index
      %c0_13 = arith.constant 0 : index
      %14 = vector.load %arg5[%c0_12, %c0_13] : memref<1x64xf32, #tpu.memory_space<vmem>>, vector<1x64xf32>
      %15 = vector.broadcast %14 : vector<1x64xf32> to vector<32x64xf32>
      %16 = arith.addf %13, %15 : vector<32x64xf32>
      %c0_14 = arith.constant 0 : index
      %c0_15 = arith.constant 0 : index
      %17 = vector.load %arg6[%c0_14, %c0_15] : memref<32x64xf32, #tpu.memory_space<vmem>>, vector<32x64xf32>
      tpu.vector_store %arg6[%c0_14, %c0_15], %16 {strides = array<i32>} : memref<32x64xf32, #tpu.memory_space<vmem>>, vector<32x64xf32>,
    } else {
    }
    return
  }
  func.func @transform_0(%arg0: i32, %arg1: i32, %arg2: i32) -> (i32, i32) {
    %c0_i32 = arith.constant 0 : i32
    return %arg0, %arg2 : i32, i32
  }
  func.func @transform_1(%arg0: i32, %arg1: i32, %arg2: i32) -> (i32, i32) {
    %c0_i32 = arith.constant 0 : i32
    return %arg2, %arg1 : i32, i32
  }
  func.func @transform_2(%arg0: i32, %arg1: i32, %arg2: i32) -> (i32, i32) {
    %c0_i32 = arith.constant 0 : i32
    %c0_i32_0 = arith.constant 0 : i32
    return %c0_i32, %arg1 : i32, i32
  }
  func.func @transform_3(%arg0: i32, %arg1: i32, %arg2: i32) -> (i32, i32) {
    %c0_i32 = arith.constant 0 : i32
    return %arg0, %arg1 : i32, i32
  }
}

module attributes {stable_mosaic.version = 11 : i64} {
  func.func @_mha_proj_ln_kernel(%arg0: i32, %arg1: i32, %arg2: memref<1x16x32xf32, #tpu.memory_space<vmem>>, %arg3: memref<1x16x32xf32, #tpu.memory_space<vmem>>, %arg4: memref<1x16x32xf32, #tpu.memory_space<vmem>>, %arg5: memref<32x32xbf16, #tpu.memory_space<vmem>>, %arg6: memref<1x32xf32, #tpu.memory_space<vmem>>, %arg7: memref<1x16x32xf32, #tpu.memory_space<vmem>>, %arg8: memref<1x32xf32, #tpu.memory_space<vmem>>, %arg9: memref<1x32xf32, #tpu.memory_space<vmem>>, %arg10: memref<1x16x32xf32, #tpu.memory_space<vmem>>, %arg11: memref<16x32xf32, #tpu.memory_space<vmem>>) attributes {dimension_semantics = [#tpu.dimension_semantics<parallel>, #tpu.dimension_semantics<parallel>], iteration_bounds = array<i64: 2, 1>, scalar_prefetch = 0 : i64, scratch_operands = 1 : i64, tpu.core_type = #tpu.core_type<tc>, window_params = [{transform_indices = @transform_0, window_bounds = array<i64: 1, 16, 32>}, {transform_indices = @transform_1, window_bounds = array<i64: 1, 16, 32>}, {transform_indices = @transform_2, window_bounds = array<i64: 1, 16, 32>}, {pipeline_mode = #tpu.pipeline_mode<synchronous>, transform_indices = @transform_3, window_bounds = array<i64: 32, 32>}, {pipeline_mode = #tpu.pipeline_mode<synchronous>, transform_indices = @transform_4, window_bounds = array<i64: 1, 32>}, {transform_indices = @transform_5, window_bounds = array<i64: 1, 16, 32>}, {pipeline_mode = #tpu.pipeline_mode<synchronous>, transform_indices = @transform_6, window_bounds = array<i64: 1, 32>}, {pipeline_mode = #tpu.pipeline_mode<synchronous>, transform_indices = @transform_7, window_bounds = array<i64: 1, 32>}, {transform_indices = @transform_8, window_bounds = array<i64: 1, 16, 32>}]} {
    %c0 = arith.constant 0 : index
    %c0_0 = arith.constant 0 : index
    %c0_1 = arith.constant 0 : index
    %0 = vector.load %arg2[%c0, %c0_0, %c0_1] : memref<1x16x32xf32, #tpu.memory_space<vmem>>, vector<1x16x8xf32>
    %1 = vector.shape_cast %0 : vector<1x16x8xf32> to vector<16x8xf32>
    %2 = arith.truncf %1 : vector<16x8xf32> to vector<16x8xbf16>
    %c0_2 = arith.constant 0 : index
    %c0_3 = arith.constant 0 : index
    %c0_4 = arith.constant 0 : index
    %3 = vector.load %arg3[%c0_2, %c0_3, %c0_4] : memref<1x16x32xf32, #tpu.memory_space<vmem>>, vector<1x16x8xf32>
    %4 = vector.shape_cast %3 : vector<1x16x8xf32> to vector<16x8xf32>
    %5 = arith.truncf %4 : vector<16x8xf32> to vector<16x8xbf16>
    %c0_5 = arith.constant 0 : index
    %c0_6 = arith.constant 0 : index
    %c0_7 = arith.constant 0 : index
    %6 = vector.load %arg4[%c0_5, %c0_6, %c0_7] : memref<1x16x32xf32, #tpu.memory_space<vmem>>, vector<1x16x8xf32>
    %7 = vector.shape_cast %6 : vector<1x16x8xf32> to vector<16x8xf32>
    %8 = arith.truncf %7 : vector<16x8xf32> to vector<16x8xbf16>
    %cst = arith.constant dense<0.000000e+00> : vector<16x16xf32>
    %9 = tpu.matmul %2, %5, %cst {dimension_numbers = #tpu.dot_dimension_numbers<[1], [1], [0], [0], [0, 0, 1, 0], [], []>} : vector<16x8xbf16>, vector<16x8xbf16>, vector<16x16xf32> -> vector<16x16xf32>
    %cst_8 = arith.constant dense<0xFF800000> : vector<16xf32>
    %10 = vector.multi_reduction <maximumf>, %9, %cst_8 [1] : vector<16x16xf32> to vector<16xf32>
    %11 = vector.shape_cast %10 : vector<16xf32> to vector<16x1xf32>
    %12 = vector.broadcast %11 : vector<16x1xf32> to vector<16x16xf32>
    %13 = arith.subf %9, %12 : vector<16x16xf32>
    %14 = math.exp %13 : vector<16x16xf32>
    %cst_9 = arith.constant dense<0.000000e+00> : vector<16xf32>
    %15 = vector.multi_reduction <add>, %14, %cst_9 [1] : vector<16x16xf32> to vector<16xf32>
    %16 = vector.shape_cast %15 : vector<16xf32> to vector<16x1xf32>
    %17 = arith.truncf %14 : vector<16x16xf32> to vector<16x16xbf16>
    %cst_10 = arith.constant dense<0.000000e+00> : vector<16x8xf32>
    %18 = tpu.matmul %17, %8, %cst_10 {dimension_numbers = #tpu.dot_dimension_numbers<[1], [0], [0], [1], [0, 0, 1, 1], [], []>} : vector<16x16xbf16>, vector<16x8xbf16>, vector<16x8xf32> -> vector<16x8xf32>
    %19 = tpu.reciprocal %16 {approx = true} : vector<16x1xf32> -> vector<16x1xf32>
    %20 = vector.broadcast %19 : vector<16x1xf32> to vector<16x8xf32>
    %21 = arith.mulf %18, %20 : vector<16x8xf32>
    %c0_11 = arith.constant 0 : index
    %c0_12 = arith.constant 0 : index
    %22 = vector.load %arg11[%c0_11, %c0_12] : memref<16x32xf32, #tpu.memory_space<vmem>>, vector<16x8xf32>
    tpu.vector_store %arg11[%c0_11, %c0_12], %21 {strides = array<i32>} : memref<16x32xf32, #tpu.memory_space<vmem>>, vector<16x8xf32>,
    %c0_13 = arith.constant 0 : index
    %c0_14 = arith.constant 0 : index
    %c8 = arith.constant 8 : index
    %23 = vector.load %arg2[%c0_13, %c0_14, %c8] : memref<1x16x32xf32, #tpu.memory_space<vmem>>, vector<1x16x8xf32>
    %24 = vector.shape_cast %23 : vector<1x16x8xf32> to vector<16x8xf32>
    %25 = arith.truncf %24 : vector<16x8xf32> to vector<16x8xbf16>
    %c0_15 = arith.constant 0 : index
    %c0_16 = arith.constant 0 : index
    %c8_17 = arith.constant 8 : index
    %26 = vector.load %arg3[%c0_15, %c0_16, %c8_17] : memref<1x16x32xf32, #tpu.memory_space<vmem>>, vector<1x16x8xf32>
    %27 = vector.shape_cast %26 : vector<1x16x8xf32> to vector<16x8xf32>
    %28 = arith.truncf %27 : vector<16x8xf32> to vector<16x8xbf16>
    %c0_18 = arith.constant 0 : index
    %c0_19 = arith.constant 0 : index
    %c8_20 = arith.constant 8 : index
    %29 = vector.load %arg4[%c0_18, %c0_19, %c8_20] : memref<1x16x32xf32, #tpu.memory_space<vmem>>, vector<1x16x8xf32>
    %30 = vector.shape_cast %29 : vector<1x16x8xf32> to vector<16x8xf32>
    %31 = arith.truncf %30 : vector<16x8xf32> to vector<16x8xbf16>
    %cst_21 = arith.constant dense<0.000000e+00> : vector<16x16xf32>
    %32 = tpu.matmul %25, %28, %cst_21 {dimension_numbers = #tpu.dot_dimension_numbers<[1], [1], [0], [0], [0, 0, 1, 0], [], []>} : vector<16x8xbf16>, vector<16x8xbf16>, vector<16x16xf32> -> vector<16x16xf32>
    %cst_22 = arith.constant dense<0xFF800000> : vector<16xf32>
    %33 = vector.multi_reduction <maximumf>, %32, %cst_22 [1] : vector<16x16xf32> to vector<16xf32>
    %34 = vector.shape_cast %33 : vector<16xf32> to vector<16x1xf32>
    %35 = vector.broadcast %34 : vector<16x1xf32> to vector<16x16xf32>
    %36 = arith.subf %32, %35 : vector<16x16xf32>
    %37 = math.exp %36 : vector<16x16xf32>
    %cst_23 = arith.constant dense<0.000000e+00> : vector<16xf32>
    %38 = vector.multi_reduction <add>, %37, %cst_23 [1] : vector<16x16xf32> to vector<16xf32>
    %39 = vector.shape_cast %38 : vector<16xf32> to vector<16x1xf32>
    %40 = arith.truncf %37 : vector<16x16xf32> to vector<16x16xbf16>
    %cst_24 = arith.constant dense<0.000000e+00> : vector<16x8xf32>
    %41 = tpu.matmul %40, %31, %cst_24 {dimension_numbers = #tpu.dot_dimension_numbers<[1], [0], [0], [1], [0, 0, 1, 1], [], []>} : vector<16x16xbf16>, vector<16x8xbf16>, vector<16x8xf32> -> vector<16x8xf32>
    %42 = tpu.reciprocal %39 {approx = true} : vector<16x1xf32> -> vector<16x1xf32>
    %43 = vector.broadcast %42 : vector<16x1xf32> to vector<16x8xf32>
    %44 = arith.mulf %41, %43 : vector<16x8xf32>
    %c0_25 = arith.constant 0 : index
    %c8_26 = arith.constant 8 : index
    %45 = vector.load %arg11[%c0_25, %c8_26] : memref<16x32xf32, #tpu.memory_space<vmem>>, vector<16x8xf32>
    tpu.vector_store %arg11[%c0_25, %c8_26], %44 {strides = array<i32>} : memref<16x32xf32, #tpu.memory_space<vmem>>, vector<16x8xf32>,
    %c0_27 = arith.constant 0 : index
    %c0_28 = arith.constant 0 : index
    %c16 = arith.constant 16 : index
    %46 = vector.load %arg2[%c0_27, %c0_28, %c16] : memref<1x16x32xf32, #tpu.memory_space<vmem>>, vector<1x16x8xf32>
    %47 = vector.shape_cast %46 : vector<1x16x8xf32> to vector<16x8xf32>
    %48 = arith.truncf %47 : vector<16x8xf32> to vector<16x8xbf16>
    %c0_29 = arith.constant 0 : index
    %c0_30 = arith.constant 0 : index
    %c16_31 = arith.constant 16 : index
    %49 = vector.load %arg3[%c0_29, %c0_30, %c16_31] : memref<1x16x32xf32, #tpu.memory_space<vmem>>, vector<1x16x8xf32>
    %50 = vector.shape_cast %49 : vector<1x16x8xf32> to vector<16x8xf32>
    %51 = arith.truncf %50 : vector<16x8xf32> to vector<16x8xbf16>
    %c0_32 = arith.constant 0 : index
    %c0_33 = arith.constant 0 : index
    %c16_34 = arith.constant 16 : index
    %52 = vector.load %arg4[%c0_32, %c0_33, %c16_34] : memref<1x16x32xf32, #tpu.memory_space<vmem>>, vector<1x16x8xf32>
    %53 = vector.shape_cast %52 : vector<1x16x8xf32> to vector<16x8xf32>
    %54 = arith.truncf %53 : vector<16x8xf32> to vector<16x8xbf16>
    %cst_35 = arith.constant dense<0.000000e+00> : vector<16x16xf32>
    %55 = tpu.matmul %48, %51, %cst_35 {dimension_numbers = #tpu.dot_dimension_numbers<[1], [1], [0], [0], [0, 0, 1, 0], [], []>} : vector<16x8xbf16>, vector<16x8xbf16>, vector<16x16xf32> -> vector<16x16xf32>
    %cst_36 = arith.constant dense<0xFF800000> : vector<16xf32>
    %56 = vector.multi_reduction <maximumf>, %55, %cst_36 [1] : vector<16x16xf32> to vector<16xf32>
    %57 = vector.shape_cast %56 : vector<16xf32> to vector<16x1xf32>
    %58 = vector.broadcast %57 : vector<16x1xf32> to vector<16x16xf32>
    %59 = arith.subf %55, %58 : vector<16x16xf32>
    %60 = math.exp %59 : vector<16x16xf32>
    %cst_37 = arith.constant dense<0.000000e+00> : vector<16xf32>
    %61 = vector.multi_reduction <add>, %60, %cst_37 [1] : vector<16x16xf32> to vector<16xf32>
    %62 = vector.shape_cast %61 : vector<16xf32> to vector<16x1xf32>
    %63 = arith.truncf %60 : vector<16x16xf32> to vector<16x16xbf16>
    %cst_38 = arith.constant dense<0.000000e+00> : vector<16x8xf32>
    %64 = tpu.matmul %63, %54, %cst_38 {dimension_numbers = #tpu.dot_dimension_numbers<[1], [0], [0], [1], [0, 0, 1, 1], [], []>} : vector<16x16xbf16>, vector<16x8xbf16>, vector<16x8xf32> -> vector<16x8xf32>
    %65 = tpu.reciprocal %62 {approx = true} : vector<16x1xf32> -> vector<16x1xf32>
    %66 = vector.broadcast %65 : vector<16x1xf32> to vector<16x8xf32>
    %67 = arith.mulf %64, %66 : vector<16x8xf32>
    %c0_39 = arith.constant 0 : index
    %c16_40 = arith.constant 16 : index
    %68 = vector.load %arg11[%c0_39, %c16_40] : memref<16x32xf32, #tpu.memory_space<vmem>>, vector<16x8xf32>
    tpu.vector_store %arg11[%c0_39, %c16_40], %67 {strides = array<i32>} : memref<16x32xf32, #tpu.memory_space<vmem>>, vector<16x8xf32>,
    %c0_41 = arith.constant 0 : index
    %c0_42 = arith.constant 0 : index
    %c24 = arith.constant 24 : index
    %69 = vector.load %arg2[%c0_41, %c0_42, %c24] : memref<1x16x32xf32, #tpu.memory_space<vmem>>, vector<1x16x8xf32>
    %70 = vector.shape_cast %69 : vector<1x16x8xf32> to vector<16x8xf32>
    %71 = arith.truncf %70 : vector<16x8xf32> to vector<16x8xbf16>
    %c0_43 = arith.constant 0 : index
    %c0_44 = arith.constant 0 : index
    %c24_45 = arith.constant 24 : index
    %72 = vector.load %arg3[%c0_43, %c0_44, %c24_45] : memref<1x16x32xf32, #tpu.memory_space<vmem>>, vector<1x16x8xf32>
    %73 = vector.shape_cast %72 : vector<1x16x8xf32> to vector<16x8xf32>
    %74 = arith.truncf %73 : vector<16x8xf32> to vector<16x8xbf16>
    %c0_46 = arith.constant 0 : index
    %c0_47 = arith.constant 0 : index
    %c24_48 = arith.constant 24 : index
    %75 = vector.load %arg4[%c0_46, %c0_47, %c24_48] : memref<1x16x32xf32, #tpu.memory_space<vmem>>, vector<1x16x8xf32>
    %76 = vector.shape_cast %75 : vector<1x16x8xf32> to vector<16x8xf32>
    %77 = arith.truncf %76 : vector<16x8xf32> to vector<16x8xbf16>
    %cst_49 = arith.constant dense<0.000000e+00> : vector<16x16xf32>
    %78 = tpu.matmul %71, %74, %cst_49 {dimension_numbers = #tpu.dot_dimension_numbers<[1], [1], [0], [0], [0, 0, 1, 0], [], []>} : vector<16x8xbf16>, vector<16x8xbf16>, vector<16x16xf32> -> vector<16x16xf32>
    %cst_50 = arith.constant dense<0xFF800000> : vector<16xf32>
    %79 = vector.multi_reduction <maximumf>, %78, %cst_50 [1] : vector<16x16xf32> to vector<16xf32>
    %80 = vector.shape_cast %79 : vector<16xf32> to vector<16x1xf32>
    %81 = vector.broadcast %80 : vector<16x1xf32> to vector<16x16xf32>
    %82 = arith.subf %78, %81 : vector<16x16xf32>
    %83 = math.exp %82 : vector<16x16xf32>
    %cst_51 = arith.constant dense<0.000000e+00> : vector<16xf32>
    %84 = vector.multi_reduction <add>, %83, %cst_51 [1] : vector<16x16xf32> to vector<16xf32>
    %85 = vector.shape_cast %84 : vector<16xf32> to vector<16x1xf32>
    %86 = arith.truncf %83 : vector<16x16xf32> to vector<16x16xbf16>
    %cst_52 = arith.constant dense<0.000000e+00> : vector<16x8xf32>
    %87 = tpu.matmul %86, %77, %cst_52 {dimension_numbers = #tpu.dot_dimension_numbers<[1], [0], [0], [1], [0, 0, 1, 1], [], []>} : vector<16x16xbf16>, vector<16x8xbf16>, vector<16x8xf32> -> vector<16x8xf32>
    %88 = tpu.reciprocal %85 {approx = true} : vector<16x1xf32> -> vector<16x1xf32>
    %89 = vector.broadcast %88 : vector<16x1xf32> to vector<16x8xf32>
    %90 = arith.mulf %87, %89 : vector<16x8xf32>
    %c0_53 = arith.constant 0 : index
    %c24_54 = arith.constant 24 : index
    %91 = vector.load %arg11[%c0_53, %c24_54] : memref<16x32xf32, #tpu.memory_space<vmem>>, vector<16x8xf32>
    tpu.vector_store %arg11[%c0_53, %c24_54], %90 {strides = array<i32>} : memref<16x32xf32, #tpu.memory_space<vmem>>, vector<16x8xf32>,
    %c0_55 = arith.constant 0 : index
    %c0_56 = arith.constant 0 : index
    %92 = vector.load %arg11[%c0_55, %c0_56] : memref<16x32xf32, #tpu.memory_space<vmem>>, vector<16x32xf32>
    %93 = arith.truncf %92 : vector<16x32xf32> to vector<16x32xbf16>
    %c0_57 = arith.constant 0 : index
    %c0_58 = arith.constant 0 : index
    %94 = vector.load %arg5[%c0_57, %c0_58] : memref<32x32xbf16, #tpu.memory_space<vmem>>, vector<32x32xbf16>
    %cst_59 = arith.constant dense<0.000000e+00> : vector<16x32xf32>
    %95 = tpu.matmul %93, %94, %cst_59 {dimension_numbers = #tpu.dot_dimension_numbers<[1], [0], [0], [1], [0, 0, 1, 1], [], []>} : vector<16x32xbf16>, vector<32x32xbf16>, vector<16x32xf32> -> vector<16x32xf32>
    %c0_60 = arith.constant 0 : index
    %c0_61 = arith.constant 0 : index
    %96 = vector.load %arg6[%c0_60, %c0_61] : memref<1x32xf32, #tpu.memory_space<vmem>>, vector<1x32xf32>
    %97 = vector.broadcast %96 : vector<1x32xf32> to vector<16x32xf32>
    %98 = arith.addf %95, %97 : vector<16x32xf32>
    %c0_62 = arith.constant 0 : index
    %c0_63 = arith.constant 0 : index
    %c0_64 = arith.constant 0 : index
    %99 = vector.load %arg7[%c0_62, %c0_63, %c0_64] : memref<1x16x32xf32, #tpu.memory_space<vmem>>, vector<1x16x32xf32>
    %100 = vector.shape_cast %99 : vector<1x16x32xf32> to vector<16x32xf32>
    %101 = arith.addf %98, %100 : vector<16x32xf32>
    %cst_65 = arith.constant dense<0.000000e+00> : vector<16xf32>
    %102 = vector.multi_reduction <add>, %101, %cst_65 [1] : vector<16x32xf32> to vector<16xf32>
    %103 = vector.shape_cast %102 : vector<16xf32> to vector<16x1xf32>
    %cst_66 = arith.constant 3.200000e+01 : f32
    %104 = vector.broadcast %cst_66 : f32 to vector<16x1xf32>
    %105 = arith.divf %103, %104 : vector<16x1xf32>
    %106 = vector.broadcast %105 : vector<16x1xf32> to vector<16x32xf32>
    %107 = arith.subf %101, %106 : vector<16x32xf32>
    %108 = arith.mulf %107, %107 : vector<16x32xf32>
    %cst_67 = arith.constant dense<0.000000e+00> : vector<16xf32>
    %109 = vector.multi_reduction <add>, %108, %cst_67 [1] : vector<16x32xf32> to vector<16xf32>
    %110 = vector.shape_cast %109 : vector<16xf32> to vector<16x1xf32>
    %cst_68 = arith.constant 3.200000e+01 : f32
    %111 = vector.broadcast %cst_68 : f32 to vector<16x1xf32>
    %112 = arith.divf %110, %111 : vector<16x1xf32>
    %113 = vector.broadcast %105 : vector<16x1xf32> to vector<16x32xf32>
    %114 = arith.subf %101, %113 : vector<16x32xf32>
    %cst_69 = arith.constant 9.99999974E-6 : f32
    %115 = vector.broadcast %cst_69 : f32 to vector<16x1xf32>
    %116 = arith.addf %112, %115 : vector<16x1xf32>
    %117 = math.rsqrt %116 : vector<16x1xf32>
    %118 = vector.broadcast %117 : vector<16x1xf32> to vector<16x32xf32>
    %119 = arith.mulf %114, %118 : vector<16x32xf32>
    %c0_70 = arith.constant 0 : index
    %c0_71 = arith.constant 0 : index
    %120 = vector.load %arg8[%c0_70, %c0_71] : memref<1x32xf32, #tpu.memory_space<vmem>>, vector<1x32xf32>
    %121 = vector.broadcast %120 : vector<1x32xf32> to vector<16x32xf32>
    %122 = arith.mulf %119, %121 : vector<16x32xf32>
    %c0_72 = arith.constant 0 : index
    %c0_73 = arith.constant 0 : index
    %123 = vector.load %arg9[%c0_72, %c0_73] : memref<1x32xf32, #tpu.memory_space<vmem>>, vector<1x32xf32>
    %124 = vector.broadcast %123 : vector<1x32xf32> to vector<16x32xf32>
    %125 = arith.addf %122, %124 : vector<16x32xf32>
    %c0_74 = arith.constant 0 : index
    %c0_75 = arith.constant 0 : index
    %c0_76 = arith.constant 0 : index
    %126 = vector.load %arg10[%c0_74, %c0_75, %c0_76] : memref<1x16x32xf32, #tpu.memory_space<vmem>>, vector<1x16x32xf32>
    %127 = vector.shape_cast %126 : vector<1x16x32xf32> to vector<16x32xf32>
    %128 = vector.shape_cast %125 : vector<16x32xf32> to vector<1x16x32xf32>
    tpu.vector_store %arg10[%c0_74, %c0_75, %c0_76], %128 {strides = array<i32>} : memref<1x16x32xf32, #tpu.memory_space<vmem>>, vector<1x16x32xf32>,
    return
  }
  func.func @transform_0(%arg0: i32, %arg1: i32) -> (i32, i32, i32) {
    %c0_i32 = arith.constant 0 : i32
    %c0_i32_0 = arith.constant 0 : i32
    return %arg0, %arg1, %c0_i32 : i32, i32, i32
  }
  func.func @transform_1(%arg0: i32, %arg1: i32) -> (i32, i32, i32) {
    %c0_i32 = arith.constant 0 : i32
    %c0_i32_0 = arith.constant 0 : i32
    %c0_i32_1 = arith.constant 0 : i32
    return %arg0, %c0_i32, %c0_i32_0 : i32, i32, i32
  }
  func.func @transform_2(%arg0: i32, %arg1: i32) -> (i32, i32, i32) {
    %c0_i32 = arith.constant 0 : i32
    %c0_i32_0 = arith.constant 0 : i32
    %c0_i32_1 = arith.constant 0 : i32
    return %arg0, %c0_i32, %c0_i32_0 : i32, i32, i32
  }
  func.func @transform_3(%arg0: i32, %arg1: i32) -> (i32, i32) {
    %c0_i32 = arith.constant 0 : i32
    %c0_i32_0 = arith.constant 0 : i32
    %c0_i32_1 = arith.constant 0 : i32
    return %c0_i32, %c0_i32_0 : i32, i32
  }
  func.func @transform_4(%arg0: i32, %arg1: i32) -> (i32, i32) {
    %c0_i32 = arith.constant 0 : i32
    %c0_i32_0 = arith.constant 0 : i32
    %c0_i32_1 = arith.constant 0 : i32
    return %c0_i32, %c0_i32_0 : i32, i32
  }
  func.func @transform_5(%arg0: i32, %arg1: i32) -> (i32, i32, i32) {
    %c0_i32 = arith.constant 0 : i32
    %c0_i32_0 = arith.constant 0 : i32
    return %arg0, %arg1, %c0_i32 : i32, i32, i32
  }
  func.func @transform_6(%arg0: i32, %arg1: i32) -> (i32, i32) {
    %c0_i32 = arith.constant 0 : i32
    %c0_i32_0 = arith.constant 0 : i32
    %c0_i32_1 = arith.constant 0 : i32
    return %c0_i32, %c0_i32_0 : i32, i32
  }
  func.func @transform_7(%arg0: i32, %arg1: i32) -> (i32, i32) {
    %c0_i32 = arith.constant 0 : i32
    %c0_i32_0 = arith.constant 0 : i32
    %c0_i32_1 = arith.constant 0 : i32
    return %c0_i32, %c0_i32_0 : i32, i32
  }
  func.func @transform_8(%arg0: i32, %arg1: i32) -> (i32, i32, i32) {
    %c0_i32 = arith.constant 0 : i32
    %c0_i32_0 = arith.constant 0 : i32
    return %arg0, %arg1, %c0_i32 : i32, i32, i32
  }
}

module attributes {stable_mosaic.version = 11 : i64} {
  func.func @_ffn_add_ln_kernel(%arg0: i32, %arg1: i32, %arg2: memref<32x32xf32, #tpu.memory_space<vmem>>, %arg3: memref<32x64xbf16, #tpu.memory_space<vmem>>, %arg4: memref<1x64xf32, #tpu.memory_space<vmem>>, %arg5: memref<64x32xbf16, #tpu.memory_space<vmem>>, %arg6: memref<1x32xf32, #tpu.memory_space<vmem>>, %arg7: memref<1x32xf32, #tpu.memory_space<vmem>>, %arg8: memref<1x32xf32, #tpu.memory_space<vmem>>, %arg9: memref<32x32xf32, #tpu.memory_space<vmem>>, %arg10: memref<32x32xf32, #tpu.memory_space<vmem>>) attributes {dimension_semantics = [#tpu.dimension_semantics<parallel>, #tpu.dimension_semantics<arbitrary>], iteration_bounds = array<i64: 1, 1>, scalar_prefetch = 0 : i64, scratch_operands = 1 : i64, tpu.core_type = #tpu.core_type<tc>, window_params = [{transform_indices = @transform_0, window_bounds = array<i64: 32, 32>}, {transform_indices = @transform_1, window_bounds = array<i64: 32, 64>}, {transform_indices = @transform_2, window_bounds = array<i64: 1, 64>}, {transform_indices = @transform_3, window_bounds = array<i64: 64, 32>}, {pipeline_mode = #tpu.pipeline_mode<synchronous>, transform_indices = @transform_4, window_bounds = array<i64: 1, 32>}, {pipeline_mode = #tpu.pipeline_mode<synchronous>, transform_indices = @transform_5, window_bounds = array<i64: 1, 32>}, {pipeline_mode = #tpu.pipeline_mode<synchronous>, transform_indices = @transform_6, window_bounds = array<i64: 1, 32>}, {transform_indices = @transform_7, window_bounds = array<i64: 32, 32>}]} {
    %c0_i32 = arith.constant 0 : i32
    %0 = arith.cmpi eq, %arg1, %c0_i32 : i32
    %1 = arith.extui %0 : i1 to i32
    %c0_i32_0 = arith.constant 0 : i32
    %2 = arith.cmpi ne, %1, %c0_i32_0 : i32
    scf.if %2 {
      %cst_16 = arith.constant 0.000000e+00 : f32
      %21 = vector.broadcast %cst_16 : f32 to vector<32x32xf32>
      %c0_17 = arith.constant 0 : index
      %c0_18 = arith.constant 0 : index
      %22 = vector.load %arg10[%c0_17, %c0_18] : memref<32x32xf32, #tpu.memory_space<vmem>>, vector<32x32xf32>
      tpu.vector_store %arg10[%c0_17, %c0_18], %21 {strides = array<i32>} : memref<32x32xf32, #tpu.memory_space<vmem>>, vector<32x32xf32>,
    } else {
    }
    %c0 = arith.constant 0 : index
    %c0_1 = arith.constant 0 : index
    %3 = vector.load %arg2[%c0, %c0_1] : memref<32x32xf32, #tpu.memory_space<vmem>>, vector<32x32xf32>
    %4 = arith.truncf %3 : vector<32x32xf32> to vector<32x32xbf16>
    %c0_2 = arith.constant 0 : index
    %c0_3 = arith.constant 0 : index
    %5 = vector.load %arg3[%c0_2, %c0_3] : memref<32x64xbf16, #tpu.memory_space<vmem>>, vector<32x64xbf16>
    %cst = arith.constant dense<0.000000e+00> : vector<32x64xf32>
    %6 = tpu.matmul %4, %5, %cst {dimension_numbers = #tpu.dot_dimension_numbers<[1], [0], [0], [1], [0, 0, 1, 1], [], []>} : vector<32x32xbf16>, vector<32x64xbf16>, vector<32x64xf32> -> vector<32x64xf32>
    %c0_4 = arith.constant 0 : index
    %c0_5 = arith.constant 0 : index
    %7 = vector.load %arg4[%c0_4, %c0_5] : memref<1x64xf32, #tpu.memory_space<vmem>>, vector<1x64xf32>
    %8 = vector.broadcast %7 : vector<1x64xf32> to vector<32x64xf32>
    %9 = arith.addf %6, %8 : vector<32x64xf32>
    %cst_6 = arith.constant 0.000000e+00 : f32
    %10 = vector.broadcast %cst_6 : f32 to vector<32x64xf32>
    %11 = arith.maximumf %9, %10 : vector<32x64xf32>
    %c0_7 = arith.constant 0 : index
    %c0_8 = arith.constant 0 : index
    %12 = vector.load %arg10[%c0_7, %c0_8] : memref<32x32xf32, #tpu.memory_space<vmem>>, vector<32x32xf32>
    %13 = arith.truncf %11 : vector<32x64xf32> to vector<32x64xbf16>
    %c0_9 = arith.constant 0 : index
    %c0_10 = arith.constant 0 : index
    %14 = vector.load %arg5[%c0_9, %c0_10] : memref<64x32xbf16, #tpu.memory_space<vmem>>, vector<64x32xbf16>
    %cst_11 = arith.constant dense<0.000000e+00> : vector<32x32xf32>
    %15 = tpu.matmul %13, %14, %cst_11 {dimension_numbers = #tpu.dot_dimension_numbers<[1], [0], [0], [1], [0, 0, 1, 1], [], []>} : vector<32x64xbf16>, vector<64x32xbf16>, vector<32x32xf32> -> vector<32x32xf32>
    %16 = arith.addf %12, %15 : vector<32x32xf32>
    %c0_12 = arith.constant 0 : index
    %c0_13 = arith.constant 0 : index
    %17 = vector.load %arg10[%c0_12, %c0_13] : memref<32x32xf32, #tpu.memory_space<vmem>>, vector<32x32xf32>
    tpu.vector_store %arg10[%c0_12, %c0_13], %16 {strides = array<i32>} : memref<32x32xf32, #tpu.memory_space<vmem>>, vector<32x32xf32>,
    %c0_i32_14 = arith.constant 0 : i32
    %18 = arith.cmpi eq, %arg1, %c0_i32_14 : i32
    %19 = arith.extui %18 : i1 to i32
    %c0_i32_15 = arith.constant 0 : i32
    %20 = arith.cmpi ne, %19, %c0_i32_15 : i32
    scf.if %20 {
      %c0_16 = arith.constant 0 : index
      %c0_17 = arith.constant 0 : index
      %21 = vector.load %arg10[%c0_16, %c0_17] : memref<32x32xf32, #tpu.memory_space<vmem>>, vector<32x32xf32>
      %c0_18 = arith.constant 0 : index
      %c0_19 = arith.constant 0 : index
      %22 = vector.load %arg6[%c0_18, %c0_19] : memref<1x32xf32, #tpu.memory_space<vmem>>, vector<1x32xf32>
      %23 = vector.broadcast %22 : vector<1x32xf32> to vector<32x32xf32>
      %24 = arith.addf %21, %23 : vector<32x32xf32>
      %25 = arith.addf %24, %3 : vector<32x32xf32>
      %cst_20 = arith.constant dense<0.000000e+00> : vector<32xf32>
      %26 = vector.multi_reduction <add>, %25, %cst_20 [1] : vector<32x32xf32> to vector<32xf32>
      %27 = vector.shape_cast %26 : vector<32xf32> to vector<32x1xf32>
      %cst_21 = arith.constant 3.200000e+01 : f32
      %28 = vector.broadcast %cst_21 : f32 to vector<32x1xf32>
      %29 = arith.divf %27, %28 : vector<32x1xf32>
      %30 = vector.broadcast %29 : vector<32x1xf32> to vector<32x32xf32>
      %31 = arith.subf %25, %30 : vector<32x32xf32>
      %32 = arith.mulf %31, %31 : vector<32x32xf32>
      %cst_22 = arith.constant dense<0.000000e+00> : vector<32xf32>
      %33 = vector.multi_reduction <add>, %32, %cst_22 [1] : vector<32x32xf32> to vector<32xf32>
      %34 = vector.shape_cast %33 : vector<32xf32> to vector<32x1xf32>
      %cst_23 = arith.constant 3.200000e+01 : f32
      %35 = vector.broadcast %cst_23 : f32 to vector<32x1xf32>
      %36 = arith.divf %34, %35 : vector<32x1xf32>
      %37 = vector.broadcast %29 : vector<32x1xf32> to vector<32x32xf32>
      %38 = arith.subf %25, %37 : vector<32x32xf32>
      %cst_24 = arith.constant 9.99999974E-6 : f32
      %39 = vector.broadcast %cst_24 : f32 to vector<32x1xf32>
      %40 = arith.addf %36, %39 : vector<32x1xf32>
      %41 = math.rsqrt %40 : vector<32x1xf32>
      %42 = vector.broadcast %41 : vector<32x1xf32> to vector<32x32xf32>
      %43 = arith.mulf %38, %42 : vector<32x32xf32>
      %c0_25 = arith.constant 0 : index
      %c0_26 = arith.constant 0 : index
      %44 = vector.load %arg7[%c0_25, %c0_26] : memref<1x32xf32, #tpu.memory_space<vmem>>, vector<1x32xf32>
      %45 = vector.broadcast %44 : vector<1x32xf32> to vector<32x32xf32>
      %46 = arith.mulf %43, %45 : vector<32x32xf32>
      %c0_27 = arith.constant 0 : index
      %c0_28 = arith.constant 0 : index
      %47 = vector.load %arg8[%c0_27, %c0_28] : memref<1x32xf32, #tpu.memory_space<vmem>>, vector<1x32xf32>
      %48 = vector.broadcast %47 : vector<1x32xf32> to vector<32x32xf32>
      %49 = arith.addf %46, %48 : vector<32x32xf32>
      %c0_29 = arith.constant 0 : index
      %c0_30 = arith.constant 0 : index
      %50 = vector.load %arg9[%c0_29, %c0_30] : memref<32x32xf32, #tpu.memory_space<vmem>>, vector<32x32xf32>
      tpu.vector_store %arg9[%c0_29, %c0_30], %49 {strides = array<i32>} : memref<32x32xf32, #tpu.memory_space<vmem>>, vector<32x32xf32>,
    } else {
    }
    return
  }
  func.func @transform_0(%arg0: i32, %arg1: i32) -> (i32, i32) {
    %c0_i32 = arith.constant 0 : i32
    %c0_i32_0 = arith.constant 0 : i32
    return %arg0, %c0_i32 : i32, i32
  }
  func.func @transform_1(%arg0: i32, %arg1: i32) -> (i32, i32) {
    %c0_i32 = arith.constant 0 : i32
    %c0_i32_0 = arith.constant 0 : i32
    return %c0_i32, %arg1 : i32, i32
  }
  func.func @transform_2(%arg0: i32, %arg1: i32) -> (i32, i32) {
    %c0_i32 = arith.constant 0 : i32
    %c0_i32_0 = arith.constant 0 : i32
    return %c0_i32, %arg1 : i32, i32
  }
  func.func @transform_3(%arg0: i32, %arg1: i32) -> (i32, i32) {
    %c0_i32 = arith.constant 0 : i32
    %c0_i32_0 = arith.constant 0 : i32
    return %arg1, %c0_i32 : i32, i32
  }
  func.func @transform_4(%arg0: i32, %arg1: i32) -> (i32, i32) {
    %c0_i32 = arith.constant 0 : i32
    %c0_i32_0 = arith.constant 0 : i32
    %c0_i32_1 = arith.constant 0 : i32
    return %c0_i32, %c0_i32_0 : i32, i32
  }
  func.func @transform_5(%arg0: i32, %arg1: i32) -> (i32, i32) {
    %c0_i32 = arith.constant 0 : i32
    %c0_i32_0 = arith.constant 0 : i32
    %c0_i32_1 = arith.constant 0 : i32
    return %c0_i32, %c0_i32_0 : i32, i32
  }
  func.func @transform_6(%arg0: i32, %arg1: i32) -> (i32, i32) {
    %c0_i32 = arith.constant 0 : i32
    %c0_i32_0 = arith.constant 0 : i32
    %c0_i32_1 = arith.constant 0 : i32
    return %c0_i32, %c0_i32_0 : i32, i32
  }
  func.func @transform_7(%arg0: i32, %arg1: i32) -> (i32, i32) {
    %c0_i32 = arith.constant 0 : i32
    %c0_i32_0 = arith.constant 0 : i32
    return %arg0, %c0_i32 : i32, i32
  }
}

module attributes {stable_mosaic.version = 11 : i64} {
  func.func @_matmul_kernel(%arg0: i32, %arg1: i32, %arg2: i32, %arg3: memref<16x32xf32, #tpu.memory_space<vmem>>, %arg4: memref<32x32xbf16, #tpu.memory_space<vmem>>, %arg5: memref<1x32xf32, #tpu.memory_space<vmem>>, %arg6: memref<16x32xf32, #tpu.memory_space<vmem>>, %arg7: memref<16x32xf32, #tpu.memory_space<vmem>>) attributes {dimension_semantics = [#tpu.dimension_semantics<parallel>, #tpu.dimension_semantics<parallel>, #tpu.dimension_semantics<arbitrary>], iteration_bounds = array<i64: 1, 1, 1>, scalar_prefetch = 0 : i64, scratch_operands = 1 : i64, tpu.core_type = #tpu.core_type<tc>, window_params = [{transform_indices = @transform_0, window_bounds = array<i64: 16, 32>}, {transform_indices = @transform_1, window_bounds = array<i64: 32, 32>}, {transform_indices = @transform_2, window_bounds = array<i64: 1, 32>}, {transform_indices = @transform_3, window_bounds = array<i64: 16, 32>}]} {
    %c0_i32 = arith.constant 0 : i32
    %0 = arith.cmpi eq, %arg2, %c0_i32 : i32
    %1 = arith.extui %0 : i1 to i32
    %c0_i32_0 = arith.constant 0 : i32
    %2 = arith.cmpi ne, %1, %c0_i32_0 : i32
    scf.if %2 {
      %cst_10 = arith.constant 0.000000e+00 : f32
      %13 = vector.broadcast %cst_10 : f32 to vector<16x32xf32>
      %c0_11 = arith.constant 0 : index
      %c0_12 = arith.constant 0 : index
      %14 = vector.load %arg7[%c0_11, %c0_12] : memref<16x32xf32, #tpu.memory_space<vmem>>, vector<16x32xf32>
      tpu.vector_store %arg7[%c0_11, %c0_12], %13 {strides = array<i32>} : memref<16x32xf32, #tpu.memory_space<vmem>>, vector<16x32xf32>,
    } else {
    }
    %c0 = arith.constant 0 : index
    %c0_1 = arith.constant 0 : index
    %3 = vector.load %arg7[%c0, %c0_1] : memref<16x32xf32, #tpu.memory_space<vmem>>, vector<16x32xf32>
    %c0_2 = arith.constant 0 : index
    %c0_3 = arith.constant 0 : index
    %4 = vector.load %arg3[%c0_2, %c0_3] : memref<16x32xf32, #tpu.memory_space<vmem>>, vector<16x32xf32>
    %5 = arith.truncf %4 : vector<16x32xf32> to vector<16x32xbf16>
    %c0_4 = arith.constant 0 : index
    %c0_5 = arith.constant 0 : index
    %6 = vector.load %arg4[%c0_4, %c0_5] : memref<32x32xbf16, #tpu.memory_space<vmem>>, vector<32x32xbf16>
    %cst = arith.constant dense<0.000000e+00> : vector<16x32xf32>
    %7 = tpu.matmul %5, %6, %cst {dimension_numbers = #tpu.dot_dimension_numbers<[1], [0], [0], [1], [0, 0, 1, 1], [], []>} : vector<16x32xbf16>, vector<32x32xbf16>, vector<16x32xf32> -> vector<16x32xf32>
    %8 = arith.addf %3, %7 : vector<16x32xf32>
    %c0_6 = arith.constant 0 : index
    %c0_7 = arith.constant 0 : index
    %9 = vector.load %arg7[%c0_6, %c0_7] : memref<16x32xf32, #tpu.memory_space<vmem>>, vector<16x32xf32>
    tpu.vector_store %arg7[%c0_6, %c0_7], %8 {strides = array<i32>} : memref<16x32xf32, #tpu.memory_space<vmem>>, vector<16x32xf32>,
    %c0_i32_8 = arith.constant 0 : i32
    %10 = arith.cmpi eq, %arg2, %c0_i32_8 : i32
    %11 = arith.extui %10 : i1 to i32
    %c0_i32_9 = arith.constant 0 : i32
    %12 = arith.cmpi ne, %11, %c0_i32_9 : i32
    scf.if %12 {
      %c0_10 = arith.constant 0 : index
      %c0_11 = arith.constant 0 : index
      %13 = vector.load %arg7[%c0_10, %c0_11] : memref<16x32xf32, #tpu.memory_space<vmem>>, vector<16x32xf32>
      %c0_12 = arith.constant 0 : index
      %c0_13 = arith.constant 0 : index
      %14 = vector.load %arg5[%c0_12, %c0_13] : memref<1x32xf32, #tpu.memory_space<vmem>>, vector<1x32xf32>
      %15 = vector.broadcast %14 : vector<1x32xf32> to vector<16x32xf32>
      %16 = arith.addf %13, %15 : vector<16x32xf32>
      %c0_14 = arith.constant 0 : index
      %c0_15 = arith.constant 0 : index
      %17 = vector.load %arg6[%c0_14, %c0_15] : memref<16x32xf32, #tpu.memory_space<vmem>>, vector<16x32xf32>
      tpu.vector_store %arg6[%c0_14, %c0_15], %16 {strides = array<i32>} : memref<16x32xf32, #tpu.memory_space<vmem>>, vector<16x32xf32>,
    } else {
    }
    return
  }
  func.func @transform_0(%arg0: i32, %arg1: i32, %arg2: i32) -> (i32, i32) {
    %c0_i32 = arith.constant 0 : i32
    return %arg0, %arg2 : i32, i32
  }
  func.func @transform_1(%arg0: i32, %arg1: i32, %arg2: i32) -> (i32, i32) {
    %c0_i32 = arith.constant 0 : i32
    return %arg2, %arg1 : i32, i32
  }
  func.func @transform_2(%arg0: i32, %arg1: i32, %arg2: i32) -> (i32, i32) {
    %c0_i32 = arith.constant 0 : i32
    %c0_i32_0 = arith.constant 0 : i32
    return %c0_i32, %arg1 : i32, i32
  }
  func.func @transform_3(%arg0: i32, %arg1: i32, %arg2: i32) -> (i32, i32) {
    %c0_i32 = arith.constant 0 : i32
    return %arg0, %arg1 : i32, i32
  }
}

module attributes {stable_mosaic.version = 11 : i64} {
  func.func @_mha_proj_ln_kernel(%arg0: i32, %arg1: i32, %arg2: memref<1x8x32xf32, #tpu.memory_space<vmem>>, %arg3: memref<1x16x32xf32, #tpu.memory_space<vmem>>, %arg4: memref<1x16x32xf32, #tpu.memory_space<vmem>>, %arg5: memref<32x32xbf16, #tpu.memory_space<vmem>>, %arg6: memref<1x32xf32, #tpu.memory_space<vmem>>, %arg7: memref<1x8x32xf32, #tpu.memory_space<vmem>>, %arg8: memref<1x32xf32, #tpu.memory_space<vmem>>, %arg9: memref<1x32xf32, #tpu.memory_space<vmem>>, %arg10: memref<1x8x32xf32, #tpu.memory_space<vmem>>, %arg11: memref<8x32xf32, #tpu.memory_space<vmem>>) attributes {dimension_semantics = [#tpu.dimension_semantics<parallel>, #tpu.dimension_semantics<parallel>], iteration_bounds = array<i64: 2, 1>, scalar_prefetch = 0 : i64, scratch_operands = 1 : i64, tpu.core_type = #tpu.core_type<tc>, window_params = [{transform_indices = @transform_0, window_bounds = array<i64: 1, 8, 32>}, {transform_indices = @transform_1, window_bounds = array<i64: 1, 16, 32>}, {transform_indices = @transform_2, window_bounds = array<i64: 1, 16, 32>}, {pipeline_mode = #tpu.pipeline_mode<synchronous>, transform_indices = @transform_3, window_bounds = array<i64: 32, 32>}, {pipeline_mode = #tpu.pipeline_mode<synchronous>, transform_indices = @transform_4, window_bounds = array<i64: 1, 32>}, {transform_indices = @transform_5, window_bounds = array<i64: 1, 8, 32>}, {pipeline_mode = #tpu.pipeline_mode<synchronous>, transform_indices = @transform_6, window_bounds = array<i64: 1, 32>}, {pipeline_mode = #tpu.pipeline_mode<synchronous>, transform_indices = @transform_7, window_bounds = array<i64: 1, 32>}, {transform_indices = @transform_8, window_bounds = array<i64: 1, 8, 32>}]} {
    %c0 = arith.constant 0 : index
    %c0_0 = arith.constant 0 : index
    %c0_1 = arith.constant 0 : index
    %0 = vector.load %arg2[%c0, %c0_0, %c0_1] : memref<1x8x32xf32, #tpu.memory_space<vmem>>, vector<1x8x8xf32>
    %1 = vector.shape_cast %0 : vector<1x8x8xf32> to vector<8x8xf32>
    %2 = arith.truncf %1 : vector<8x8xf32> to vector<8x8xbf16>
    %c0_2 = arith.constant 0 : index
    %c0_3 = arith.constant 0 : index
    %c0_4 = arith.constant 0 : index
    %3 = vector.load %arg3[%c0_2, %c0_3, %c0_4] : memref<1x16x32xf32, #tpu.memory_space<vmem>>, vector<1x16x8xf32>
    %4 = vector.shape_cast %3 : vector<1x16x8xf32> to vector<16x8xf32>
    %5 = arith.truncf %4 : vector<16x8xf32> to vector<16x8xbf16>
    %c0_5 = arith.constant 0 : index
    %c0_6 = arith.constant 0 : index
    %c0_7 = arith.constant 0 : index
    %6 = vector.load %arg4[%c0_5, %c0_6, %c0_7] : memref<1x16x32xf32, #tpu.memory_space<vmem>>, vector<1x16x8xf32>
    %7 = vector.shape_cast %6 : vector<1x16x8xf32> to vector<16x8xf32>
    %8 = arith.truncf %7 : vector<16x8xf32> to vector<16x8xbf16>
    %cst = arith.constant dense<0.000000e+00> : vector<8x16xf32>
    %9 = tpu.matmul %2, %5, %cst {dimension_numbers = #tpu.dot_dimension_numbers<[1], [1], [0], [0], [0, 0, 1, 0], [], []>} : vector<8x8xbf16>, vector<16x8xbf16>, vector<8x16xf32> -> vector<8x16xf32>
    %cst_8 = arith.constant dense<0xFF800000> : vector<8xf32>
    %10 = vector.multi_reduction <maximumf>, %9, %cst_8 [1] : vector<8x16xf32> to vector<8xf32>
    %11 = vector.shape_cast %10 : vector<8xf32> to vector<8x1xf32>
    %12 = vector.broadcast %11 : vector<8x1xf32> to vector<8x16xf32>
    %13 = arith.subf %9, %12 : vector<8x16xf32>
    %14 = math.exp %13 : vector<8x16xf32>
    %cst_9 = arith.constant dense<0.000000e+00> : vector<8xf32>
    %15 = vector.multi_reduction <add>, %14, %cst_9 [1] : vector<8x16xf32> to vector<8xf32>
    %16 = vector.shape_cast %15 : vector<8xf32> to vector<8x1xf32>
    %17 = arith.truncf %14 : vector<8x16xf32> to vector<8x16xbf16>
    %cst_10 = arith.constant dense<0.000000e+00> : vector<8x8xf32>
    %18 = tpu.matmul %17, %8, %cst_10 {dimension_numbers = #tpu.dot_dimension_numbers<[1], [0], [0], [1], [0, 0, 1, 1], [], []>} : vector<8x16xbf16>, vector<16x8xbf16>, vector<8x8xf32> -> vector<8x8xf32>
    %19 = tpu.reciprocal %16 {approx = true} : vector<8x1xf32> -> vector<8x1xf32>
    %20 = vector.broadcast %19 : vector<8x1xf32> to vector<8x8xf32>
    %21 = arith.mulf %18, %20 : vector<8x8xf32>
    %c0_11 = arith.constant 0 : index
    %c0_12 = arith.constant 0 : index
    %22 = vector.load %arg11[%c0_11, %c0_12] : memref<8x32xf32, #tpu.memory_space<vmem>>, vector<8x8xf32>
    tpu.vector_store %arg11[%c0_11, %c0_12], %21 {strides = array<i32>} : memref<8x32xf32, #tpu.memory_space<vmem>>, vector<8x8xf32>,
    %c0_13 = arith.constant 0 : index
    %c0_14 = arith.constant 0 : index
    %c8 = arith.constant 8 : index
    %23 = vector.load %arg2[%c0_13, %c0_14, %c8] : memref<1x8x32xf32, #tpu.memory_space<vmem>>, vector<1x8x8xf32>
    %24 = vector.shape_cast %23 : vector<1x8x8xf32> to vector<8x8xf32>
    %25 = arith.truncf %24 : vector<8x8xf32> to vector<8x8xbf16>
    %c0_15 = arith.constant 0 : index
    %c0_16 = arith.constant 0 : index
    %c8_17 = arith.constant 8 : index
    %26 = vector.load %arg3[%c0_15, %c0_16, %c8_17] : memref<1x16x32xf32, #tpu.memory_space<vmem>>, vector<1x16x8xf32>
    %27 = vector.shape_cast %26 : vector<1x16x8xf32> to vector<16x8xf32>
    %28 = arith.truncf %27 : vector<16x8xf32> to vector<16x8xbf16>
    %c0_18 = arith.constant 0 : index
    %c0_19 = arith.constant 0 : index
    %c8_20 = arith.constant 8 : index
    %29 = vector.load %arg4[%c0_18, %c0_19, %c8_20] : memref<1x16x32xf32, #tpu.memory_space<vmem>>, vector<1x16x8xf32>
    %30 = vector.shape_cast %29 : vector<1x16x8xf32> to vector<16x8xf32>
    %31 = arith.truncf %30 : vector<16x8xf32> to vector<16x8xbf16>
    %cst_21 = arith.constant dense<0.000000e+00> : vector<8x16xf32>
    %32 = tpu.matmul %25, %28, %cst_21 {dimension_numbers = #tpu.dot_dimension_numbers<[1], [1], [0], [0], [0, 0, 1, 0], [], []>} : vector<8x8xbf16>, vector<16x8xbf16>, vector<8x16xf32> -> vector<8x16xf32>
    %cst_22 = arith.constant dense<0xFF800000> : vector<8xf32>
    %33 = vector.multi_reduction <maximumf>, %32, %cst_22 [1] : vector<8x16xf32> to vector<8xf32>
    %34 = vector.shape_cast %33 : vector<8xf32> to vector<8x1xf32>
    %35 = vector.broadcast %34 : vector<8x1xf32> to vector<8x16xf32>
    %36 = arith.subf %32, %35 : vector<8x16xf32>
    %37 = math.exp %36 : vector<8x16xf32>
    %cst_23 = arith.constant dense<0.000000e+00> : vector<8xf32>
    %38 = vector.multi_reduction <add>, %37, %cst_23 [1] : vector<8x16xf32> to vector<8xf32>
    %39 = vector.shape_cast %38 : vector<8xf32> to vector<8x1xf32>
    %40 = arith.truncf %37 : vector<8x16xf32> to vector<8x16xbf16>
    %cst_24 = arith.constant dense<0.000000e+00> : vector<8x8xf32>
    %41 = tpu.matmul %40, %31, %cst_24 {dimension_numbers = #tpu.dot_dimension_numbers<[1], [0], [0], [1], [0, 0, 1, 1], [], []>} : vector<8x16xbf16>, vector<16x8xbf16>, vector<8x8xf32> -> vector<8x8xf32>
    %42 = tpu.reciprocal %39 {approx = true} : vector<8x1xf32> -> vector<8x1xf32>
    %43 = vector.broadcast %42 : vector<8x1xf32> to vector<8x8xf32>
    %44 = arith.mulf %41, %43 : vector<8x8xf32>
    %c0_25 = arith.constant 0 : index
    %c8_26 = arith.constant 8 : index
    %45 = vector.load %arg11[%c0_25, %c8_26] : memref<8x32xf32, #tpu.memory_space<vmem>>, vector<8x8xf32>
    tpu.vector_store %arg11[%c0_25, %c8_26], %44 {strides = array<i32>} : memref<8x32xf32, #tpu.memory_space<vmem>>, vector<8x8xf32>,
    %c0_27 = arith.constant 0 : index
    %c0_28 = arith.constant 0 : index
    %c16 = arith.constant 16 : index
    %46 = vector.load %arg2[%c0_27, %c0_28, %c16] : memref<1x8x32xf32, #tpu.memory_space<vmem>>, vector<1x8x8xf32>
    %47 = vector.shape_cast %46 : vector<1x8x8xf32> to vector<8x8xf32>
    %48 = arith.truncf %47 : vector<8x8xf32> to vector<8x8xbf16>
    %c0_29 = arith.constant 0 : index
    %c0_30 = arith.constant 0 : index
    %c16_31 = arith.constant 16 : index
    %49 = vector.load %arg3[%c0_29, %c0_30, %c16_31] : memref<1x16x32xf32, #tpu.memory_space<vmem>>, vector<1x16x8xf32>
    %50 = vector.shape_cast %49 : vector<1x16x8xf32> to vector<16x8xf32>
    %51 = arith.truncf %50 : vector<16x8xf32> to vector<16x8xbf16>
    %c0_32 = arith.constant 0 : index
    %c0_33 = arith.constant 0 : index
    %c16_34 = arith.constant 16 : index
    %52 = vector.load %arg4[%c0_32, %c0_33, %c16_34] : memref<1x16x32xf32, #tpu.memory_space<vmem>>, vector<1x16x8xf32>
    %53 = vector.shape_cast %52 : vector<1x16x8xf32> to vector<16x8xf32>
    %54 = arith.truncf %53 : vector<16x8xf32> to vector<16x8xbf16>
    %cst_35 = arith.constant dense<0.000000e+00> : vector<8x16xf32>
    %55 = tpu.matmul %48, %51, %cst_35 {dimension_numbers = #tpu.dot_dimension_numbers<[1], [1], [0], [0], [0, 0, 1, 0], [], []>} : vector<8x8xbf16>, vector<16x8xbf16>, vector<8x16xf32> -> vector<8x16xf32>
    %cst_36 = arith.constant dense<0xFF800000> : vector<8xf32>
    %56 = vector.multi_reduction <maximumf>, %55, %cst_36 [1] : vector<8x16xf32> to vector<8xf32>
    %57 = vector.shape_cast %56 : vector<8xf32> to vector<8x1xf32>
    %58 = vector.broadcast %57 : vector<8x1xf32> to vector<8x16xf32>
    %59 = arith.subf %55, %58 : vector<8x16xf32>
    %60 = math.exp %59 : vector<8x16xf32>
    %cst_37 = arith.constant dense<0.000000e+00> : vector<8xf32>
    %61 = vector.multi_reduction <add>, %60, %cst_37 [1] : vector<8x16xf32> to vector<8xf32>
    %62 = vector.shape_cast %61 : vector<8xf32> to vector<8x1xf32>
    %63 = arith.truncf %60 : vector<8x16xf32> to vector<8x16xbf16>
    %cst_38 = arith.constant dense<0.000000e+00> : vector<8x8xf32>
    %64 = tpu.matmul %63, %54, %cst_38 {dimension_numbers = #tpu.dot_dimension_numbers<[1], [0], [0], [1], [0, 0, 1, 1], [], []>} : vector<8x16xbf16>, vector<16x8xbf16>, vector<8x8xf32> -> vector<8x8xf32>
    %65 = tpu.reciprocal %62 {approx = true} : vector<8x1xf32> -> vector<8x1xf32>
    %66 = vector.broadcast %65 : vector<8x1xf32> to vector<8x8xf32>
    %67 = arith.mulf %64, %66 : vector<8x8xf32>
    %c0_39 = arith.constant 0 : index
    %c16_40 = arith.constant 16 : index
    %68 = vector.load %arg11[%c0_39, %c16_40] : memref<8x32xf32, #tpu.memory_space<vmem>>, vector<8x8xf32>
    tpu.vector_store %arg11[%c0_39, %c16_40], %67 {strides = array<i32>} : memref<8x32xf32, #tpu.memory_space<vmem>>, vector<8x8xf32>,
    %c0_41 = arith.constant 0 : index
    %c0_42 = arith.constant 0 : index
    %c24 = arith.constant 24 : index
    %69 = vector.load %arg2[%c0_41, %c0_42, %c24] : memref<1x8x32xf32, #tpu.memory_space<vmem>>, vector<1x8x8xf32>
    %70 = vector.shape_cast %69 : vector<1x8x8xf32> to vector<8x8xf32>
    %71 = arith.truncf %70 : vector<8x8xf32> to vector<8x8xbf16>
    %c0_43 = arith.constant 0 : index
    %c0_44 = arith.constant 0 : index
    %c24_45 = arith.constant 24 : index
    %72 = vector.load %arg3[%c0_43, %c0_44, %c24_45] : memref<1x16x32xf32, #tpu.memory_space<vmem>>, vector<1x16x8xf32>
    %73 = vector.shape_cast %72 : vector<1x16x8xf32> to vector<16x8xf32>
    %74 = arith.truncf %73 : vector<16x8xf32> to vector<16x8xbf16>
    %c0_46 = arith.constant 0 : index
    %c0_47 = arith.constant 0 : index
    %c24_48 = arith.constant 24 : index
    %75 = vector.load %arg4[%c0_46, %c0_47, %c24_48] : memref<1x16x32xf32, #tpu.memory_space<vmem>>, vector<1x16x8xf32>
    %76 = vector.shape_cast %75 : vector<1x16x8xf32> to vector<16x8xf32>
    %77 = arith.truncf %76 : vector<16x8xf32> to vector<16x8xbf16>
    %cst_49 = arith.constant dense<0.000000e+00> : vector<8x16xf32>
    %78 = tpu.matmul %71, %74, %cst_49 {dimension_numbers = #tpu.dot_dimension_numbers<[1], [1], [0], [0], [0, 0, 1, 0], [], []>} : vector<8x8xbf16>, vector<16x8xbf16>, vector<8x16xf32> -> vector<8x16xf32>
    %cst_50 = arith.constant dense<0xFF800000> : vector<8xf32>
    %79 = vector.multi_reduction <maximumf>, %78, %cst_50 [1] : vector<8x16xf32> to vector<8xf32>
    %80 = vector.shape_cast %79 : vector<8xf32> to vector<8x1xf32>
    %81 = vector.broadcast %80 : vector<8x1xf32> to vector<8x16xf32>
    %82 = arith.subf %78, %81 : vector<8x16xf32>
    %83 = math.exp %82 : vector<8x16xf32>
    %cst_51 = arith.constant dense<0.000000e+00> : vector<8xf32>
    %84 = vector.multi_reduction <add>, %83, %cst_51 [1] : vector<8x16xf32> to vector<8xf32>
    %85 = vector.shape_cast %84 : vector<8xf32> to vector<8x1xf32>
    %86 = arith.truncf %83 : vector<8x16xf32> to vector<8x16xbf16>
    %cst_52 = arith.constant dense<0.000000e+00> : vector<8x8xf32>
    %87 = tpu.matmul %86, %77, %cst_52 {dimension_numbers = #tpu.dot_dimension_numbers<[1], [0], [0], [1], [0, 0, 1, 1], [], []>} : vector<8x16xbf16>, vector<16x8xbf16>, vector<8x8xf32> -> vector<8x8xf32>
    %88 = tpu.reciprocal %85 {approx = true} : vector<8x1xf32> -> vector<8x1xf32>
    %89 = vector.broadcast %88 : vector<8x1xf32> to vector<8x8xf32>
    %90 = arith.mulf %87, %89 : vector<8x8xf32>
    %c0_53 = arith.constant 0 : index
    %c24_54 = arith.constant 24 : index
    %91 = vector.load %arg11[%c0_53, %c24_54] : memref<8x32xf32, #tpu.memory_space<vmem>>, vector<8x8xf32>
    tpu.vector_store %arg11[%c0_53, %c24_54], %90 {strides = array<i32>} : memref<8x32xf32, #tpu.memory_space<vmem>>, vector<8x8xf32>,
    %c0_55 = arith.constant 0 : index
    %c0_56 = arith.constant 0 : index
    %92 = vector.load %arg11[%c0_55, %c0_56] : memref<8x32xf32, #tpu.memory_space<vmem>>, vector<8x32xf32>
    %93 = arith.truncf %92 : vector<8x32xf32> to vector<8x32xbf16>
    %c0_57 = arith.constant 0 : index
    %c0_58 = arith.constant 0 : index
    %94 = vector.load %arg5[%c0_57, %c0_58] : memref<32x32xbf16, #tpu.memory_space<vmem>>, vector<32x32xbf16>
    %cst_59 = arith.constant dense<0.000000e+00> : vector<8x32xf32>
    %95 = tpu.matmul %93, %94, %cst_59 {dimension_numbers = #tpu.dot_dimension_numbers<[1], [0], [0], [1], [0, 0, 1, 1], [], []>} : vector<8x32xbf16>, vector<32x32xbf16>, vector<8x32xf32> -> vector<8x32xf32>
    %c0_60 = arith.constant 0 : index
    %c0_61 = arith.constant 0 : index
    %96 = vector.load %arg6[%c0_60, %c0_61] : memref<1x32xf32, #tpu.memory_space<vmem>>, vector<1x32xf32>
    %97 = vector.broadcast %96 : vector<1x32xf32> to vector<8x32xf32>
    %98 = arith.addf %95, %97 : vector<8x32xf32>
    %c0_62 = arith.constant 0 : index
    %c0_63 = arith.constant 0 : index
    %c0_64 = arith.constant 0 : index
    %99 = vector.load %arg7[%c0_62, %c0_63, %c0_64] : memref<1x8x32xf32, #tpu.memory_space<vmem>>, vector<1x8x32xf32>
    %100 = vector.shape_cast %99 : vector<1x8x32xf32> to vector<8x32xf32>
    %101 = arith.addf %98, %100 : vector<8x32xf32>
    %cst_65 = arith.constant dense<0.000000e+00> : vector<8xf32>
    %102 = vector.multi_reduction <add>, %101, %cst_65 [1] : vector<8x32xf32> to vector<8xf32>
    %103 = vector.shape_cast %102 : vector<8xf32> to vector<8x1xf32>
    %cst_66 = arith.constant 3.200000e+01 : f32
    %104 = vector.broadcast %cst_66 : f32 to vector<8x1xf32>
    %105 = arith.divf %103, %104 : vector<8x1xf32>
    %106 = vector.broadcast %105 : vector<8x1xf32> to vector<8x32xf32>
    %107 = arith.subf %101, %106 : vector<8x32xf32>
    %108 = arith.mulf %107, %107 : vector<8x32xf32>
    %cst_67 = arith.constant dense<0.000000e+00> : vector<8xf32>
    %109 = vector.multi_reduction <add>, %108, %cst_67 [1] : vector<8x32xf32> to vector<8xf32>
    %110 = vector.shape_cast %109 : vector<8xf32> to vector<8x1xf32>
    %cst_68 = arith.constant 3.200000e+01 : f32
    %111 = vector.broadcast %cst_68 : f32 to vector<8x1xf32>
    %112 = arith.divf %110, %111 : vector<8x1xf32>
    %113 = vector.broadcast %105 : vector<8x1xf32> to vector<8x32xf32>
    %114 = arith.subf %101, %113 : vector<8x32xf32>
    %cst_69 = arith.constant 9.99999974E-6 : f32
    %115 = vector.broadcast %cst_69 : f32 to vector<8x1xf32>
    %116 = arith.addf %112, %115 : vector<8x1xf32>
    %117 = math.rsqrt %116 : vector<8x1xf32>
    %118 = vector.broadcast %117 : vector<8x1xf32> to vector<8x32xf32>
    %119 = arith.mulf %114, %118 : vector<8x32xf32>
    %c0_70 = arith.constant 0 : index
    %c0_71 = arith.constant 0 : index
    %120 = vector.load %arg8[%c0_70, %c0_71] : memref<1x32xf32, #tpu.memory_space<vmem>>, vector<1x32xf32>
    %121 = vector.broadcast %120 : vector<1x32xf32> to vector<8x32xf32>
    %122 = arith.mulf %119, %121 : vector<8x32xf32>
    %c0_72 = arith.constant 0 : index
    %c0_73 = arith.constant 0 : index
    %123 = vector.load %arg9[%c0_72, %c0_73] : memref<1x32xf32, #tpu.memory_space<vmem>>, vector<1x32xf32>
    %124 = vector.broadcast %123 : vector<1x32xf32> to vector<8x32xf32>
    %125 = arith.addf %122, %124 : vector<8x32xf32>
    %c0_74 = arith.constant 0 : index
    %c0_75 = arith.constant 0 : index
    %c0_76 = arith.constant 0 : index
    %126 = vector.load %arg10[%c0_74, %c0_75, %c0_76] : memref<1x8x32xf32, #tpu.memory_space<vmem>>, vector<1x8x32xf32>
    %127 = vector.shape_cast %126 : vector<1x8x32xf32> to vector<8x32xf32>
    %128 = vector.shape_cast %125 : vector<8x32xf32> to vector<1x8x32xf32>
    tpu.vector_store %arg10[%c0_74, %c0_75, %c0_76], %128 {strides = array<i32>} : memref<1x8x32xf32, #tpu.memory_space<vmem>>, vector<1x8x32xf32>,
    return
  }
  func.func @transform_0(%arg0: i32, %arg1: i32) -> (i32, i32, i32) {
    %c0_i32 = arith.constant 0 : i32
    %c0_i32_0 = arith.constant 0 : i32
    return %arg0, %arg1, %c0_i32 : i32, i32, i32
  }
  func.func @transform_1(%arg0: i32, %arg1: i32) -> (i32, i32, i32) {
    %c0_i32 = arith.constant 0 : i32
    %c0_i32_0 = arith.constant 0 : i32
    %c0_i32_1 = arith.constant 0 : i32
    return %arg0, %c0_i32, %c0_i32_0 : i32, i32, i32
  }
  func.func @transform_2(%arg0: i32, %arg1: i32) -> (i32, i32, i32) {
    %c0_i32 = arith.constant 0 : i32
    %c0_i32_0 = arith.constant 0 : i32
    %c0_i32_1 = arith.constant 0 : i32
    return %arg0, %c0_i32, %c0_i32_0 : i32, i32, i32
  }
  func.func @transform_3(%arg0: i32, %arg1: i32) -> (i32, i32) {
    %c0_i32 = arith.constant 0 : i32
    %c0_i32_0 = arith.constant 0 : i32
    %c0_i32_1 = arith.constant 0 : i32
    return %c0_i32, %c0_i32_0 : i32, i32
  }
  func.func @transform_4(%arg0: i32, %arg1: i32) -> (i32, i32) {
    %c0_i32 = arith.constant 0 : i32
    %c0_i32_0 = arith.constant 0 : i32
    %c0_i32_1 = arith.constant 0 : i32
    return %c0_i32, %c0_i32_0 : i32, i32
  }
  func.func @transform_5(%arg0: i32, %arg1: i32) -> (i32, i32, i32) {
    %c0_i32 = arith.constant 0 : i32
    %c0_i32_0 = arith.constant 0 : i32
    return %arg0, %arg1, %c0_i32 : i32, i32, i32
  }
  func.func @transform_6(%arg0: i32, %arg1: i32) -> (i32, i32) {
    %c0_i32 = arith.constant 0 : i32
    %c0_i32_0 = arith.constant 0 : i32
    %c0_i32_1 = arith.constant 0 : i32
    return %c0_i32, %c0_i32_0 : i32, i32
  }
  func.func @transform_7(%arg0: i32, %arg1: i32) -> (i32, i32) {
    %c0_i32 = arith.constant 0 : i32
    %c0_i32_0 = arith.constant 0 : i32
    %c0_i32_1 = arith.constant 0 : i32
    return %c0_i32, %c0_i32_0 : i32, i32
  }
  func.func @transform_8(%arg0: i32, %arg1: i32) -> (i32, i32, i32) {
    %c0_i32 = arith.constant 0 : i32
    %c0_i32_0 = arith.constant 0 : i32
    return %arg0, %arg1, %c0_i32 : i32, i32, i32
  }
}

module attributes {stable_mosaic.version = 11 : i64} {
  func.func @_ffn_add_ln_kernel(%arg0: i32, %arg1: i32, %arg2: memref<16x32xf32, #tpu.memory_space<vmem>>, %arg3: memref<32x64xbf16, #tpu.memory_space<vmem>>, %arg4: memref<1x64xf32, #tpu.memory_space<vmem>>, %arg5: memref<64x32xbf16, #tpu.memory_space<vmem>>, %arg6: memref<1x32xf32, #tpu.memory_space<vmem>>, %arg7: memref<1x32xf32, #tpu.memory_space<vmem>>, %arg8: memref<1x32xf32, #tpu.memory_space<vmem>>, %arg9: memref<16x32xf32, #tpu.memory_space<vmem>>, %arg10: memref<16x32xf32, #tpu.memory_space<vmem>>) attributes {dimension_semantics = [#tpu.dimension_semantics<parallel>, #tpu.dimension_semantics<arbitrary>], iteration_bounds = array<i64: 1, 1>, scalar_prefetch = 0 : i64, scratch_operands = 1 : i64, tpu.core_type = #tpu.core_type<tc>, window_params = [{transform_indices = @transform_0, window_bounds = array<i64: 16, 32>}, {transform_indices = @transform_1, window_bounds = array<i64: 32, 64>}, {transform_indices = @transform_2, window_bounds = array<i64: 1, 64>}, {transform_indices = @transform_3, window_bounds = array<i64: 64, 32>}, {pipeline_mode = #tpu.pipeline_mode<synchronous>, transform_indices = @transform_4, window_bounds = array<i64: 1, 32>}, {pipeline_mode = #tpu.pipeline_mode<synchronous>, transform_indices = @transform_5, window_bounds = array<i64: 1, 32>}, {pipeline_mode = #tpu.pipeline_mode<synchronous>, transform_indices = @transform_6, window_bounds = array<i64: 1, 32>}, {transform_indices = @transform_7, window_bounds = array<i64: 16, 32>}]} {
    %c0_i32 = arith.constant 0 : i32
    %0 = arith.cmpi eq, %arg1, %c0_i32 : i32
    %1 = arith.extui %0 : i1 to i32
    %c0_i32_0 = arith.constant 0 : i32
    %2 = arith.cmpi ne, %1, %c0_i32_0 : i32
    scf.if %2 {
      %cst_16 = arith.constant 0.000000e+00 : f32
      %21 = vector.broadcast %cst_16 : f32 to vector<16x32xf32>
      %c0_17 = arith.constant 0 : index
      %c0_18 = arith.constant 0 : index
      %22 = vector.load %arg10[%c0_17, %c0_18] : memref<16x32xf32, #tpu.memory_space<vmem>>, vector<16x32xf32>
      tpu.vector_store %arg10[%c0_17, %c0_18], %21 {strides = array<i32>} : memref<16x32xf32, #tpu.memory_space<vmem>>, vector<16x32xf32>,
    } else {
    }
    %c0 = arith.constant 0 : index
    %c0_1 = arith.constant 0 : index
    %3 = vector.load %arg2[%c0, %c0_1] : memref<16x32xf32, #tpu.memory_space<vmem>>, vector<16x32xf32>
    %4 = arith.truncf %3 : vector<16x32xf32> to vector<16x32xbf16>
    %c0_2 = arith.constant 0 : index
    %c0_3 = arith.constant 0 : index
    %5 = vector.load %arg3[%c0_2, %c0_3] : memref<32x64xbf16, #tpu.memory_space<vmem>>, vector<32x64xbf16>
    %cst = arith.constant dense<0.000000e+00> : vector<16x64xf32>
    %6 = tpu.matmul %4, %5, %cst {dimension_numbers = #tpu.dot_dimension_numbers<[1], [0], [0], [1], [0, 0, 1, 1], [], []>} : vector<16x32xbf16>, vector<32x64xbf16>, vector<16x64xf32> -> vector<16x64xf32>
    %c0_4 = arith.constant 0 : index
    %c0_5 = arith.constant 0 : index
    %7 = vector.load %arg4[%c0_4, %c0_5] : memref<1x64xf32, #tpu.memory_space<vmem>>, vector<1x64xf32>
    %8 = vector.broadcast %7 : vector<1x64xf32> to vector<16x64xf32>
    %9 = arith.addf %6, %8 : vector<16x64xf32>
    %cst_6 = arith.constant 0.000000e+00 : f32
    %10 = vector.broadcast %cst_6 : f32 to vector<16x64xf32>
    %11 = arith.maximumf %9, %10 : vector<16x64xf32>
    %c0_7 = arith.constant 0 : index
    %c0_8 = arith.constant 0 : index
    %12 = vector.load %arg10[%c0_7, %c0_8] : memref<16x32xf32, #tpu.memory_space<vmem>>, vector<16x32xf32>
    %13 = arith.truncf %11 : vector<16x64xf32> to vector<16x64xbf16>
    %c0_9 = arith.constant 0 : index
    %c0_10 = arith.constant 0 : index
    %14 = vector.load %arg5[%c0_9, %c0_10] : memref<64x32xbf16, #tpu.memory_space<vmem>>, vector<64x32xbf16>
    %cst_11 = arith.constant dense<0.000000e+00> : vector<16x32xf32>
    %15 = tpu.matmul %13, %14, %cst_11 {dimension_numbers = #tpu.dot_dimension_numbers<[1], [0], [0], [1], [0, 0, 1, 1], [], []>} : vector<16x64xbf16>, vector<64x32xbf16>, vector<16x32xf32> -> vector<16x32xf32>
    %16 = arith.addf %12, %15 : vector<16x32xf32>
    %c0_12 = arith.constant 0 : index
    %c0_13 = arith.constant 0 : index
    %17 = vector.load %arg10[%c0_12, %c0_13] : memref<16x32xf32, #tpu.memory_space<vmem>>, vector<16x32xf32>
    tpu.vector_store %arg10[%c0_12, %c0_13], %16 {strides = array<i32>} : memref<16x32xf32, #tpu.memory_space<vmem>>, vector<16x32xf32>,
    %c0_i32_14 = arith.constant 0 : i32
    %18 = arith.cmpi eq, %arg1, %c0_i32_14 : i32
    %19 = arith.extui %18 : i1 to i32
    %c0_i32_15 = arith.constant 0 : i32
    %20 = arith.cmpi ne, %19, %c0_i32_15 : i32
    scf.if %20 {
      %c0_16 = arith.constant 0 : index
      %c0_17 = arith.constant 0 : index
      %21 = vector.load %arg10[%c0_16, %c0_17] : memref<16x32xf32, #tpu.memory_space<vmem>>, vector<16x32xf32>
      %c0_18 = arith.constant 0 : index
      %c0_19 = arith.constant 0 : index
      %22 = vector.load %arg6[%c0_18, %c0_19] : memref<1x32xf32, #tpu.memory_space<vmem>>, vector<1x32xf32>
      %23 = vector.broadcast %22 : vector<1x32xf32> to vector<16x32xf32>
      %24 = arith.addf %21, %23 : vector<16x32xf32>
      %25 = arith.addf %24, %3 : vector<16x32xf32>
      %cst_20 = arith.constant dense<0.000000e+00> : vector<16xf32>
      %26 = vector.multi_reduction <add>, %25, %cst_20 [1] : vector<16x32xf32> to vector<16xf32>
      %27 = vector.shape_cast %26 : vector<16xf32> to vector<16x1xf32>
      %cst_21 = arith.constant 3.200000e+01 : f32
      %28 = vector.broadcast %cst_21 : f32 to vector<16x1xf32>
      %29 = arith.divf %27, %28 : vector<16x1xf32>
      %30 = vector.broadcast %29 : vector<16x1xf32> to vector<16x32xf32>
      %31 = arith.subf %25, %30 : vector<16x32xf32>
      %32 = arith.mulf %31, %31 : vector<16x32xf32>
      %cst_22 = arith.constant dense<0.000000e+00> : vector<16xf32>
      %33 = vector.multi_reduction <add>, %32, %cst_22 [1] : vector<16x32xf32> to vector<16xf32>
      %34 = vector.shape_cast %33 : vector<16xf32> to vector<16x1xf32>
      %cst_23 = arith.constant 3.200000e+01 : f32
      %35 = vector.broadcast %cst_23 : f32 to vector<16x1xf32>
      %36 = arith.divf %34, %35 : vector<16x1xf32>
      %37 = vector.broadcast %29 : vector<16x1xf32> to vector<16x32xf32>
      %38 = arith.subf %25, %37 : vector<16x32xf32>
      %cst_24 = arith.constant 9.99999974E-6 : f32
      %39 = vector.broadcast %cst_24 : f32 to vector<16x1xf32>
      %40 = arith.addf %36, %39 : vector<16x1xf32>
      %41 = math.rsqrt %40 : vector<16x1xf32>
      %42 = vector.broadcast %41 : vector<16x1xf32> to vector<16x32xf32>
      %43 = arith.mulf %38, %42 : vector<16x32xf32>
      %c0_25 = arith.constant 0 : index
      %c0_26 = arith.constant 0 : index
      %44 = vector.load %arg7[%c0_25, %c0_26] : memref<1x32xf32, #tpu.memory_space<vmem>>, vector<1x32xf32>
      %45 = vector.broadcast %44 : vector<1x32xf32> to vector<16x32xf32>
      %46 = arith.mulf %43, %45 : vector<16x32xf32>
      %c0_27 = arith.constant 0 : index
      %c0_28 = arith.constant 0 : index
      %47 = vector.load %arg8[%c0_27, %c0_28] : memref<1x32xf32, #tpu.memory_space<vmem>>, vector<1x32xf32>
      %48 = vector.broadcast %47 : vector<1x32xf32> to vector<16x32xf32>
      %49 = arith.addf %46, %48 : vector<16x32xf32>
      %c0_29 = arith.constant 0 : index
      %c0_30 = arith.constant 0 : index
      %50 = vector.load %arg9[%c0_29, %c0_30] : memref<16x32xf32, #tpu.memory_space<vmem>>, vector<16x32xf32>
      tpu.vector_store %arg9[%c0_29, %c0_30], %49 {strides = array<i32>} : memref<16x32xf32, #tpu.memory_space<vmem>>, vector<16x32xf32>,
    } else {
    }
    return
  }
  func.func @transform_0(%arg0: i32, %arg1: i32) -> (i32, i32) {
    %c0_i32 = arith.constant 0 : i32
    %c0_i32_0 = arith.constant 0 : i32
    return %arg0, %c0_i32 : i32, i32
  }
  func.func @transform_1(%arg0: i32, %arg1: i32) -> (i32, i32) {
    %c0_i32 = arith.constant 0 : i32
    %c0_i32_0 = arith.constant 0 : i32
    return %c0_i32, %arg1 : i32, i32
  }
  func.func @transform_2(%arg0: i32, %arg1: i32) -> (i32, i32) {
    %c0_i32 = arith.constant 0 : i32
    %c0_i32_0 = arith.constant 0 : i32
    return %c0_i32, %arg1 : i32, i32
  }
  func.func @transform_3(%arg0: i32, %arg1: i32) -> (i32, i32) {
    %c0_i32 = arith.constant 0 : i32
    %c0_i32_0 = arith.constant 0 : i32
    return %arg1, %c0_i32 : i32, i32
  }
  func.func @transform_4(%arg0: i32, %arg1: i32) -> (i32, i32) {
    %c0_i32 = arith.constant 0 : i32
    %c0_i32_0 = arith.constant 0 : i32
    %c0_i32_1 = arith.constant 0 : i32
    return %c0_i32, %c0_i32_0 : i32, i32
  }
  func.func @transform_5(%arg0: i32, %arg1: i32) -> (i32, i32) {
    %c0_i32 = arith.constant 0 : i32
    %c0_i32_0 = arith.constant 0 : i32
    %c0_i32_1 = arith.constant 0 : i32
    return %c0_i32, %c0_i32_0 : i32, i32
  }
  func.func @transform_6(%arg0: i32, %arg1: i32) -> (i32, i32) {
    %c0_i32 = arith.constant 0 : i32
    %c0_i32_0 = arith.constant 0 : i32
    %c0_i32_1 = arith.constant 0 : i32
    return %c0_i32, %c0_i32_0 : i32, i32
  }
  func.func @transform_7(%arg0: i32, %arg1: i32) -> (i32, i32) {
    %c0_i32 = arith.constant 0 : i32
    %c0_i32_0 = arith.constant 0 : i32
    return %arg0, %c0_i32 : i32, i32
  }
}

module attributes {stable_mosaic.version = 11 : i64} {
  func.func @_ln_kernel(%arg0: i32, %arg1: memref<16x32xf32, #tpu.memory_space<vmem>>, %arg2: memref<1x32xf32, #tpu.memory_space<vmem>>, %arg3: memref<1x32xf32, #tpu.memory_space<vmem>>, %arg4: memref<16x32xf32, #tpu.memory_space<vmem>>) attributes {dimension_semantics = [#tpu.dimension_semantics<parallel>], iteration_bounds = array<i64: 1>, scalar_prefetch = 0 : i64, scratch_operands = 0 : i64, tpu.core_type = #tpu.core_type<tc>, window_params = [{transform_indices = @transform_0, window_bounds = array<i64: 16, 32>}, {pipeline_mode = #tpu.pipeline_mode<synchronous>, transform_indices = @transform_1, window_bounds = array<i64: 1, 32>}, {pipeline_mode = #tpu.pipeline_mode<synchronous>, transform_indices = @transform_2, window_bounds = array<i64: 1, 32>}, {transform_indices = @transform_3, window_bounds = array<i64: 16, 32>}]} {
    %c0 = arith.constant 0 : index
    %c0_0 = arith.constant 0 : index
    %0 = vector.load %arg1[%c0, %c0_0] : memref<16x32xf32, #tpu.memory_space<vmem>>, vector<16x32xf32>
    %cst = arith.constant dense<0.000000e+00> : vector<16xf32>
    %1 = vector.multi_reduction <add>, %0, %cst [1] : vector<16x32xf32> to vector<16xf32>
    %2 = vector.shape_cast %1 : vector<16xf32> to vector<16x1xf32>
    %cst_1 = arith.constant 3.200000e+01 : f32
    %3 = vector.broadcast %cst_1 : f32 to vector<16x1xf32>
    %4 = arith.divf %2, %3 : vector<16x1xf32>
    %5 = vector.broadcast %4 : vector<16x1xf32> to vector<16x32xf32>
    %6 = arith.subf %0, %5 : vector<16x32xf32>
    %7 = arith.mulf %6, %6 : vector<16x32xf32>
    %cst_2 = arith.constant dense<0.000000e+00> : vector<16xf32>
    %8 = vector.multi_reduction <add>, %7, %cst_2 [1] : vector<16x32xf32> to vector<16xf32>
    %9 = vector.shape_cast %8 : vector<16xf32> to vector<16x1xf32>
    %cst_3 = arith.constant 3.200000e+01 : f32
    %10 = vector.broadcast %cst_3 : f32 to vector<16x1xf32>
    %11 = arith.divf %9, %10 : vector<16x1xf32>
    %12 = vector.broadcast %4 : vector<16x1xf32> to vector<16x32xf32>
    %13 = arith.subf %0, %12 : vector<16x32xf32>
    %cst_4 = arith.constant 9.99999974E-6 : f32
    %14 = vector.broadcast %cst_4 : f32 to vector<16x1xf32>
    %15 = arith.addf %11, %14 : vector<16x1xf32>
    %16 = math.rsqrt %15 : vector<16x1xf32>
    %17 = vector.broadcast %16 : vector<16x1xf32> to vector<16x32xf32>
    %18 = arith.mulf %13, %17 : vector<16x32xf32>
    %c0_5 = arith.constant 0 : index
    %c0_6 = arith.constant 0 : index
    %19 = vector.load %arg2[%c0_5, %c0_6] : memref<1x32xf32, #tpu.memory_space<vmem>>, vector<1x32xf32>
    %20 = vector.broadcast %19 : vector<1x32xf32> to vector<16x32xf32>
    %21 = arith.mulf %18, %20 : vector<16x32xf32>
    %c0_7 = arith.constant 0 : index
    %c0_8 = arith.constant 0 : index
    %22 = vector.load %arg3[%c0_7, %c0_8] : memref<1x32xf32, #tpu.memory_space<vmem>>, vector<1x32xf32>
    %23 = vector.broadcast %22 : vector<1x32xf32> to vector<16x32xf32>
    %24 = arith.addf %21, %23 : vector<16x32xf32>
    %c0_9 = arith.constant 0 : index
    %c0_10 = arith.constant 0 : index
    %25 = vector.load %arg4[%c0_9, %c0_10] : memref<16x32xf32, #tpu.memory_space<vmem>>, vector<16x32xf32>
    tpu.vector_store %arg4[%c0_9, %c0_10], %24 {strides = array<i32>} : memref<16x32xf32, #tpu.memory_space<vmem>>, vector<16x32xf32>,
    return
  }
  func.func @transform_0(%arg0: i32) -> (i32, i32) {
    %c0_i32 = arith.constant 0 : i32
    %c0_i32_0 = arith.constant 0 : i32
    return %arg0, %c0_i32 : i32, i32
  }
  func.func @transform_1(%arg0: i32) -> (i32, i32) {
    %c0_i32 = arith.constant 0 : i32
    %c0_i32_0 = arith.constant 0 : i32
    %c0_i32_1 = arith.constant 0 : i32
    return %c0_i32, %c0_i32_0 : i32, i32
  }
  func.func @transform_2(%arg0: i32) -> (i32, i32) {
    %c0_i32 = arith.constant 0 : i32
    %c0_i32_0 = arith.constant 0 : i32
    %c0_i32_1 = arith.constant 0 : i32
    return %c0_i32, %c0_i32_0 : i32, i32
  }
  func.func @transform_3(%arg0: i32) -> (i32, i32) {
    %c0_i32 = arith.constant 0 : i32
    %c0_i32_0 = arith.constant 0 : i32
    return %arg0, %c0_i32 : i32, i32
  }
}

</mosaic_0001>

<llo_original>
// kernel: transformer_forward.20
$region0: #{transformer_forward.20}
  #allocation0 [shape = 'u32[]', space=smem, size = 0x4, offset = 0x4, fixed_abs, tag = 'smem constant byte address 0x4 - core index']
  #allocation1 [shape = 'u32[144,128]{1,0:T(1,128)}', space=vmem, size = 0x12000, scoped, tag = 'internal scratch']
  #allocation2 [shape = 'f32[32,32]{1,0:T(8,128)}', space=vmem, size = 0x4000, scoped, tag = 'scratch operand']
  %s0 = inlined_call_operand.hbm [shape: f32[32,32], index: 0, kind: input, shape index: {}]
  %s1 = inlined_call_operand.hbm [shape: bf16[32,32], index: 1, kind: input, shape index: {}]
  %s2 = inlined_call_operand.hbm [shape: f32[1,32], index: 2, kind: input, shape index: {}]
  %s3 = inlined_call_operand.hbm [shape: f32[32,32], index: 3, kind: output, shape index: {}]
  %s4 = sld [smem:[#allocation0]]
  $region42: #{transformer_forward.20} parent=0
    _
  %s6 = ssub.s32 1, %s4
  %s7 = scalar_select 0, %s6, %s4
  $region1: #{transformer_forward.20} parent=0
    #allocation3 [shape = 'u8[16384]{0}', space=vmem, size = 0x4000, scoped, tag = 'input window, operand 0, single buffered']
    #allocation4 [shape = 's32[1]{0}', space=sflag, size = 0x4, scoped, tag = 'scoped memory for transformer_forward.20']
    #allocation5 [shape = 's32[1]{0}', space=sflag, size = 0x4, scoped, tag = 'scoped memory for transformer_forward.20']
    #allocation6 [shape = 'u8[8192]{0}', space=vmem, size = 0x2000, scoped, tag = 'input window, operand 1, single buffered']
    #allocation7 [shape = 's32[1]{0}', space=sflag, size = 0x4, scoped, tag = 'scoped memory for transformer_forward.20']
    #allocation8 [shape = 'u8[512]{0}', space=vmem, size = 0x400, scoped, tag = 'input window, operand 2, single buffered']
    #allocation9 [shape = 'u8[16384]{0}', space=vmem, size = 0x4000, scoped, tag = 'output window, operand 0, single buffered']
    %8 = vsyncpa [#allocation4], 0
    %9 = vsyncpa [#allocation7], 0
    %10 = vsyncpa [#allocation5], 0
    // Predicated region
    $region2: #{transformer_forward.20} parent=1 // pred_check
      _
    $region3: #{transformer_forward.20} parent=1 // pred_check_branch
      %12 = sbr.rel (0) target = $region5
    $region4: #{transformer_forward.20} parent=1 // pred_region
      %s14 = ssub.s32 512, 512
      %15 = vsyncadd [#allocation4], %s14
      %s16 = sshll.u32 [#allocation3], 4
      %s17 = int_to_ptr.vmem [resolvable:$true] %s16
      %22 = dma.hbm_to_vmem [thread:$0]  %s0, 512, %s17, [#allocation4], 128, 128, 8
    $region5: #{transformer_forward.20} parent=1 // pred_fallthru
      _
    // Predicated region
    $region6: #{transformer_forward.20} parent=1 // pred_check
      _
    $region7: #{transformer_forward.20} parent=1 // pred_check_branch
      %24 = sbr.rel (0) target = $region9
    $region8: #{transformer_forward.20} parent=1 // pred_region
      %s26 = ssub.s32 256, 256
      %27 = vsyncadd [#allocation7], %s26
      %s28 = sshll.u32 [#allocation6], 4
      %s29 = int_to_ptr.vmem [resolvable:$true] %s28
      %34 = dma.hbm_to_vmem [thread:$0]  %s1, 256, %s29, [#allocation7], 64, 64, 4
    $region9: #{transformer_forward.20} parent=1 // pred_fallthru
      _
    // Predicated region
    $region10: #{transformer_forward.20} parent=1 // pred_check
      _
    $region11: #{transformer_forward.20} parent=1 // pred_check_branch
      %36 = sbr.rel (0) target = $region13
    $region12: #{transformer_forward.20} parent=1 // pred_region
      %s38 = ssub.s32 16, 16
      %39 = vsyncadd [#allocation7], %s38
      %s41 = sshll.u32 [#allocation8], 4
      %s42 = int_to_ptr.vmem [resolvable:$true] %s41
      %44 = dma.hbm_to_vmem [thread:$0]  %s2, 16, %s42, [#allocation7]
    $region13: #{transformer_forward.20} parent=1 // pred_fallthru
      _
    // Predicated region
    $region14: #{transformer_forward.20} parent=1 // pred_check
      _
    $region15: #{transformer_forward.20} parent=1 // pred_check_branch
      %46 = sbr.rel (0) target = $region17
    $region16: #{transformer_forward.20} parent=1 // pred_region
      %47 = dma.done [#allocation4], 512
    $region17: #{transformer_forward.20} parent=1 // pred_fallthru
      _
    // Predicated region
    $region18: #{transformer_forward.20} parent=1 // pred_check
      _
    $region19: #{transformer_forward.20} parent=1 // pred_check_branch
      %49 = sbr.rel (0) target = $region21
    $region20: #{transformer_forward.20} parent=1 // pred_region
      %50 = dma.done [#allocation7], 256
    $region21: #{transformer_forward.20} parent=1 // pred_fallthru
      _
    // Predicated region
    $region22: #{transformer_forward.20} parent=1 // pred_check
      _
    $region23: #{transformer_forward.20} parent=1 // pred_check_branch
      %52 = sbr.rel (0) target = $region25
    $region24: #{transformer_forward.20} parent=1 // pred_region
      %53 = dma.done [#allocation7], 16
    $region25: #{transformer_forward.20} parent=1 // pred_fallthru
      _
    %p55 = scmp.eq.s32.totalorder 0, 0
    // Predicated region
    $region26: #{transformer_forward.20} parent=1 // pred_check
      %p56 = pneg %p55
    $region27: #{transformer_forward.20} parent=1 // pred_check_branch
      %58 = sbr.rel (%p56) target = $region29
    $region28: #{transformer_forward.20} parent=1 // pred_region
      %vm59 = vcmask 261120
      %60 = vst.msk [vmem:[#allocation2] sm:$0xff] %vm59, 0.0
      %61 = vst.msk [vmem:[#allocation2 + $0x8] sm:$0xff] %vm59, 0.0
      %62 = vst.msk [vmem:[#allocation2 + $0x10] sm:$0xff] %vm59, 0.0
      %63 = vst.msk [vmem:[#allocation2 + $0x18] sm:$0xff] %vm59, 0.0
    $region29: #{transformer_forward.20} parent=1 // pred_fallthru
      _
    %v64 = vld [vmem:[#allocation2] sm:$0xff]
    %v65 = vld [vmem:[#allocation2 + $0x8] sm:$0xff]
    %v66 = vld [vmem:[#allocation2 + $0x10] sm:$0xff]
    %v67 = vld [vmem:[#allocation2 + $0x18] sm:$0xff]
    %v68 = vld [vmem:[#allocation3] sm:$0xff]
    %v69 = vld [vmem:[#allocation3 + $0x8] sm:$0xff]
    %v70 = vld [vmem:[#allocation3 + $0x10] sm:$0xff]
    %v71 = vld [vmem:[#allocation3 + $0x18] sm:$0xff]
    %v72 = vpack.c.bf16 %v69, %v68
    %v73 = vpack.c.bf16 %v71, %v70
    %v74 = vld [vmem:[#allocation6] sm:$0xf]
    %v75 = vld [vmem:[#allocation6 + $0x4] sm:$0xf]
    %v76 = vld [vmem:[#allocation6 + $0x8] sm:$0xf]
    %v77 = vld [vmem:[#allocation6 + $0xc] sm:$0xf]
    %v82 = vunpack.c.l.b16 %v74
    %v83 = vunpack.c.l.b16 %v75
    %v84 = vunpack.c.l.b16 %v76
    %v85 = vunpack.c.l.b16 %v77
    %v86 = vpack.c.b16 %v83, %v82
    %v87 = vpack.c.b16 %v85, %v84
    %vm90 = vcmask 261120
    %v92 = vsel %vm90, %v72, 0
    %v95 = vsel %vm90, %v73, 0
    %97 = vmatprep.subr.bf16.mxu0 0
    %98 = vmatpush1.bf16.msra.mxu0 %v86
    %99 = vmatprep.subr.bf16.mxu0 0
    %100 = vmatpush1.bf16.msra.mxu0 %v87
    %101 = vmatprep.subr.bf16.mxu0 0
    %102 = vmatpush1.bf16.msra.mxu0 0
    %103 = vmatprep.subr.bf16.mxu0 0
    %104 = vmatpush1.bf16.msra.mxu0 0
    %105 = vmatprep.subr.bf16.mxu0 0
    %106 = vmatpush1.bf16.msra.mxu0 0
    %107 = vmatprep.subr.bf16.mxu0 0
    %108 = vmatpush1.bf16.msra.mxu0 0
    %109 = vmatprep.subr.bf16.mxu0 0
    %110 = vmatpush1.bf16.msra.mxu0 0
    %111 = vmatprep.subr.bf16.mxu0 0
    %112 = vmatpush1.bf16.msra.mxu0 0
    %113 = vmatprep.subr.bf16.mxu0 0
    %114 = vmatpush1.bf16.msra.mxu0 0
    %115 = vmatprep.subr.bf16.mxu0 0
    %116 = vmatpush1.bf16.msra.mxu0 0
    %117 = vmatprep.subr.bf16.mxu0 0
    %118 = vmatpush1.bf16.msra.mxu0 0
    %119 = vmatprep.subr.bf16.mxu0 0
    %120 = vmatpush1.bf16.msra.mxu0 0
    %121 = vmatprep.subr.bf16.mxu0 0
    %122 = vmatpush1.bf16.msra.mxu0 0
    %123 = vmatprep.subr.bf16.mxu0 0
    %124 = vmatpush1.bf16.msra.mxu0 0
    %125 = vmatprep.subr.bf16.mxu0 0
    %126 = vmatpush1.bf16.msra.mxu0 0
    %127 = vmatprep.subr.bf16.mxu0 0
    %128 = vmatpush1.bf16.msra.mxu0 0
    %129 = vmatprep.mubr.bf16.mxu0 0
    %130 = vmatmul.mubr.bf16.gmra.mrb[0].mxu0 %v92
    %v131 = vpop.f32.mrb[0].mxu0
    %v132 = vadd.f32 0.0, %v131
    %v133 = vpop.f32.mrb[0].mxu0
    %v134 = vpop.f32.mrb[0].mxu0
    %v135 = vadd.f32 0.0, %v134
    %v136 = vpop.f32.mrb[0].mxu0
    %137 = vmatprep.mubr.bf16.mxu0 0
    %138 = vmatmul.mubr.bf16.gmra.mrb[0].mxu0 %v95
    %v139 = vpop.f32.mrb[0].mxu0
    %v140 = vadd.f32 0.0, %v139
    %v141 = vpop.f32.mrb[0].mxu0
    %v142 = vpop.f32.mrb[0].mxu0
    %v143 = vadd.f32 0.0, %v142
    %v144 = vpop.f32.mrb[0].mxu0
    %145 = vdwg.mxu0
    %v146 = vadd.f32 %v64, %v132
    %v147 = vadd.f32 %v65, %v135
    %v148 = vadd.f32 %v66, %v140
    %v149 = vadd.f32 %v67, %v143
    %150 = vst.msk [vmem:[#allocation2] sm:$0xff] %vm90, %v146
    %151 = vst.msk [vmem:[#allocation2 + $0x8] sm:$0xff] %vm90, %v147
    %152 = vst.msk [vmem:[#allocation2 + $0x10] sm:$0xff] %vm90, %v148
    %153 = vst.msk [vmem:[#allocation2 + $0x18] sm:$0xff] %vm90, %v149
    // Predicated region
    $region30: #{transformer_forward.20} parent=1 // pred_check
      %p154 = pneg %p55
    $region31: #{transformer_forward.20} parent=1 // pred_check_branch
      %156 = sbr.rel (%p154) target = $region33
    $region32: #{transformer_forward.20} parent=1 // pred_region
      %v157 = vld [vmem:[#allocation2] sm:$0xff]
      %v158 = vld [vmem:[#allocation2 + $0x8] sm:$0xff]
      %v159 = vld [vmem:[#allocation2 + $0x10] sm:$0xff]
      %v160 = vld [vmem:[#allocation2 + $0x18] sm:$0xff]
      %v161 = vld [vmem:[#allocation8] sm:$0x1]
      %v163 = vlaneseq
      %v164 = vshrl.u32 %v163, 7
      %v165 = vsub.s32 0, %v164
      %v166 = vrot.slane %v161, %v165
      %v168 = vadd.f32 %v157, %v166
      %v169 = vadd.f32 %v158, %v166
      %v170 = vadd.f32 %v159, %v166
      %v171 = vadd.f32 %v160, %v166
      %172 = vst.msk [vmem:[#allocation9] sm:$0xff] %vm90, %v168
      %173 = vst.msk [vmem:[#allocation9 + $0x8] sm:$0xff] %vm90, %v169
      %174 = vst.msk [vmem:[#allocation9 + $0x10] sm:$0xff] %vm90, %v170
      %175 = vst.msk [vmem:[#allocation9 + $0x18] sm:$0xff] %vm90, %v171
    $region33: #{transformer_forward.20} parent=1 // pred_fallthru
      _
    // Predicated region
    $region34: #{transformer_forward.20} parent=1 // pred_check
      _
    $region35: #{transformer_forward.20} parent=1 // pred_check_branch
      %177 = sbr.rel (0) target = $region37
    $region36: #{transformer_forward.20} parent=1 // pred_region
      %s179 = ssub.s32 512, 512
      %180 = vsyncadd [#allocation5], %s179
      %s181 = sshll.u32 [#allocation9], 4
      %s182 = int_to_ptr.vmem [resolvable:$true] %s181
      %187 = dma.vmem_to_hbm [thread:$0]  %s182, 512, %s3, [#allocation5], 128, 128, 8
    $region37: #{transformer_forward.20} parent=1 // pred_fallthru
      _
    // Predicated region
    $region38: #{transformer_forward.20} parent=1 // pred_check
      _
    $region39: #{transformer_forward.20} parent=1 // pred_check_branch
      %189 = sbr.rel (0) target = $region41
    $region40: #{transformer_forward.20} parent=1 // pred_region
      %190 = dma.done [#allocation5], 512
    $region41: #{transformer_forward.20} parent=1 // pred_fallthru
      _
    %191 = vsyncpa [#allocation4], 1
    %192 = vsyncpa [#allocation7], 1
    %193 = vsyncpa [#allocation5], 1

// kernel: transformer_forward.19
$region0: #{transformer_forward.19}
  #allocation0 [shape = 'u32[]', space=smem, size = 0x4, offset = 0x4, fixed_abs, tag = 'smem constant byte address 0x4 - core index']
  #allocation1 [shape = 'u32[144,128]{1,0:T(1,128)}', space=vmem, size = 0x12000, scoped, tag = 'internal scratch']
  #allocation2 [shape = 'f32[32,64]{1,0:T(8,128)}', space=vmem, size = 0x4000, scoped, tag = 'scratch operand']
  %s0 = inlined_call_operand.hbm [shape: f32[32,32], index: 0, kind: input, shape index: {}]
  %s1 = inlined_call_operand.hbm [shape: bf16[32,64], index: 1, kind: input, shape index: {}]
  %s2 = inlined_call_operand.hbm [shape: f32[1,64], index: 2, kind: input, shape index: {}]
  %s3 = inlined_call_operand.hbm [shape: f32[32,64], index: 3, kind: output, shape index: {}]
  %s4 = sld [smem:[#allocation0]]
  $region42: #{transformer_forward.19} parent=0
    _
  %s6 = ssub.s32 1, %s4
  %s7 = scalar_select 0, %s6, %s4
  $region1: #{transformer_forward.19} parent=0
    #allocation3 [shape = 'u8[16384]{0}', space=vmem, size = 0x4000, scoped, tag = 'input window, operand 0, single buffered']
    #allocation4 [shape = 's32[1]{0}', space=sflag, size = 0x4, scoped, tag = 'scoped memory for transformer_forward.19']
    #allocation5 [shape = 's32[1]{0}', space=sflag, size = 0x4, scoped, tag = 'scoped memory for transformer_forward.19']
    #allocation6 [shape = 'u8[8192]{0}', space=vmem, size = 0x2000, scoped, tag = 'input window, operand 1, single buffered']
    #allocation7 [shape = 's32[1]{0}', space=sflag, size = 0x4, scoped, tag = 'scoped memory for transformer_forward.19']
    #allocation8 [shape = 'u8[512]{0}', space=vmem, size = 0x400, scoped, tag = 'input window, operand 2, single buffered']
    #allocation9 [shape = 'u8[16384]{0}', space=vmem, size = 0x4000, scoped, tag = 'output window, operand 0, single buffered']
    %8 = vsyncpa [#allocation4], 0
    %9 = vsyncpa [#allocation7], 0
    %10 = vsyncpa [#allocation5], 0
    // Predicated region
    $region2: #{transformer_forward.19} parent=1 // pred_check
      _
    $region3: #{transformer_forward.19} parent=1 // pred_check_branch
      %12 = sbr.rel (0) target = $region5
    $region4: #{transformer_forward.19} parent=1 // pred_region
      %s14 = ssub.s32 512, 512
      %15 = vsyncadd [#allocation4], %s14
      %s16 = sshll.u32 [#allocation3], 4
      %s17 = int_to_ptr.vmem [resolvable:$true] %s16
      %22 = dma.hbm_to_vmem [thread:$0]  %s0, 512, %s17, [#allocation4], 128, 128, 8
    $region5: #{transformer_forward.19} parent=1 // pred_fallthru
      _
    // Predicated region
    $region6: #{transformer_forward.19} parent=1 // pred_check
      _
    $region7: #{transformer_forward.19} parent=1 // pred_check_branch
      %24 = sbr.rel (0) target = $region9
    $region8: #{transformer_forward.19} parent=1 // pred_region
      %s26 = ssub.s32 256, 256
      %27 = vsyncadd [#allocation7], %s26
      %s28 = sshll.u32 [#allocation6], 4
      %s29 = int_to_ptr.vmem [resolvable:$true] %s28
      %34 = dma.hbm_to_vmem [thread:$0]  %s1, 256, %s29, [#allocation7], 64, 64, 4
    $region9: #{transformer_forward.19} parent=1 // pred_fallthru
      _
    // Predicated region
    $region10: #{transformer_forward.19} parent=1 // pred_check
      _
    $region11: #{transformer_forward.19} parent=1 // pred_check_branch
      %36 = sbr.rel (0) target = $region13
    $region12: #{transformer_forward.19} parent=1 // pred_region
      %s38 = ssub.s32 16, 16
      %39 = vsyncadd [#allocation7], %s38
      %s41 = sshll.u32 [#allocation8], 4
      %s42 = int_to_ptr.vmem [resolvable:$true] %s41
      %44 = dma.hbm_to_vmem [thread:$0]  %s2, 16, %s42, [#allocation7]
    $region13: #{transformer_forward.19} parent=1 // pred_fallthru
      _
    // Predicated region
    $region14: #{transformer_forward.19} parent=1 // pred_check
      _
    $region15: #{transformer_forward.19} parent=1 // pred_check_branch
      %46 = sbr.rel (0) target = $region17
    $region16: #{transformer_forward.19} parent=1 // pred_region
      %47 = dma.done [#allocation4], 512
    $region17: #{transformer_forward.19} parent=1 // pred_fallthru
      _
    // Predicated region
    $region18: #{transformer_forward.19} parent=1 // pred_check
      _
    $region19: #{transformer_forward.19} parent=1 // pred_check_branch
      %49 = sbr.rel (0) target = $region21
    $region20: #{transformer_forward.19} parent=1 // pred_region
      %50 = dma.done [#allocation7], 256
    $region21: #{transformer_forward.19} parent=1 // pred_fallthru
      _
    // Predicated region
    $region22: #{transformer_forward.19} parent=1 // pred_check
      _
    $region23: #{transformer_forward.19} parent=1 // pred_check_branch
      %52 = sbr.rel (0) target = $region25
    $region24: #{transformer_forward.19} parent=1 // pred_region
      %53 = dma.done [#allocation7], 16
    $region25: #{transformer_forward.19} parent=1 // pred_fallthru
      _
    %p55 = scmp.eq.s32.totalorder 0, 0
    // Predicated region
    $region26: #{transformer_forward.19} parent=1 // pred_check
      %p56 = pneg %p55
    $region27: #{transformer_forward.19} parent=1 // pred_check_branch
      %58 = sbr.rel (%p56) target = $region29
    $region28: #{transformer_forward.19} parent=1 // pred_region
      %vm59 = vcmask 523264
      %60 = vst.msk [vmem:[#allocation2] sm:$0xff] %vm59, 0.0
      %61 = vst.msk [vmem:[#allocation2 + $0x8] sm:$0xff] %vm59, 0.0
      %62 = vst.msk [vmem:[#allocation2 + $0x10] sm:$0xff] %vm59, 0.0
      %63 = vst.msk [vmem:[#allocation2 + $0x18] sm:$0xff] %vm59, 0.0
    $region29: #{transformer_forward.19} parent=1 // pred_fallthru
      _
    %v64 = vld [vmem:[#allocation2] sm:$0xff]
    %v65 = vld [vmem:[#allocation2 + $0x8] sm:$0xff]
    %v66 = vld [vmem:[#allocation2 + $0x10] sm:$0xff]
    %v67 = vld [vmem:[#allocation2 + $0x18] sm:$0xff]
    %v68 = vld [vmem:[#allocation3] sm:$0xff]
    %v69 = vld [vmem:[#allocation3 + $0x8] sm:$0xff]
    %v70 = vld [vmem:[#allocation3 + $0x10] sm:$0xff]
    %v71 = vld [vmem:[#allocation3 + $0x18] sm:$0xff]
    %v72 = vpack.c.bf16 %v69, %v68
    %v73 = vpack.c.bf16 %v71, %v70
    %v74 = vld [vmem:[#allocation6] sm:$0xf]
    %v75 = vld [vmem:[#allocation6 + $0x4] sm:$0xf]
    %v76 = vld [vmem:[#allocation6 + $0x8] sm:$0xf]
    %v77 = vld [vmem:[#allocation6 + $0xc] sm:$0xf]
    %v82 = vunpack.c.l.b16 %v74
    %v83 = vunpack.c.l.b16 %v75
    %v84 = vunpack.c.l.b16 %v76
    %v85 = vunpack.c.l.b16 %v77
    %v86 = vpack.c.b16 %v83, %v82
    %v87 = vpack.c.b16 %v85, %v84
    %vm90 = vcmask 261120
    %v92 = vsel %vm90, %v72, 0
    %v95 = vsel %vm90, %v73, 0
    %97 = vmatprep.subr.bf16.mxu0 0
    %98 = vmatpush1.bf16.msra.mxu0 %v86
    %99 = vmatprep.subr.bf16.mxu0 0
    %100 = vmatpush1.bf16.msra.mxu0 %v87
    %101 = vmatprep.subr.bf16.mxu0 0
    %102 = vmatpush1.bf16.msra.mxu0 0
    %103 = vmatprep.subr.bf16.mxu0 0
    %104 = vmatpush1.bf16.msra.mxu0 0
    %105 = vmatprep.subr.bf16.mxu0 0
    %106 = vmatpush1.bf16.msra.mxu0 0
    %107 = vmatprep.subr.bf16.mxu0 0
    %108 = vmatpush1.bf16.msra.mxu0 0
    %109 = vmatprep.subr.bf16.mxu0 0
    %110 = vmatpush1.bf16.msra.mxu0 0
    %111 = vmatprep.subr.bf16.mxu0 0
    %112 = vmatpush1.bf16.msra.mxu0 0
    %113 = vmatprep.subr.bf16.mxu0 0
    %114 = vmatpush1.bf16.msra.mxu0 0
    %115 = vmatprep.subr.bf16.mxu0 0
    %116 = vmatpush1.bf16.msra.mxu0 0
    %117 = vmatprep.subr.bf16.mxu0 0
    %118 = vmatpush1.bf16.msra.mxu0 0
    %119 = vmatprep.subr.bf16.mxu0 0
    %120 = vmatpush1.bf16.msra.mxu0 0
    %121 = vmatprep.subr.bf16.mxu0 0
    %122 = vmatpush1.bf16.msra.mxu0 0
    %123 = vmatprep.subr.bf16.mxu0 0
    %124 = vmatpush1.bf16.msra.mxu0 0
    %125 = vmatprep.subr.bf16.mxu0 0
    %126 = vmatpush1.bf16.msra.mxu0 0
    %127 = vmatprep.subr.bf16.mxu0 0
    %128 = vmatpush1.bf16.msra.mxu0 0
    %129 = vmatprep.mubr.bf16.mxu0 0
    %130 = vmatmul.mubr.bf16.gmra.mrb[0].mxu0 %v92
    %v131 = vpop.f32.mrb[0].mxu0
    %v132 = vadd.f32 0.0, %v131
    %v133 = vpop.f32.mrb[0].mxu0
    %v134 = vpop.f32.mrb[0].mxu0
    %v135 = vadd.f32 0.0, %v134
    %v136 = vpop.f32.mrb[0].mxu0
    %137 = vmatprep.mubr.bf16.mxu0 0
    %138 = vmatmul.mubr.bf16.gmra.mrb[0].mxu0 %v95
    %v139 = vpop.f32.mrb[0].mxu0
    %v140 = vadd.f32 0.0, %v139
    %v141 = vpop.f32.mrb[0].mxu0
    %v142 = vpop.f32.mrb[0].mxu0
    %v143 = vadd.f32 0.0, %v142
    %v144 = vpop.f32.mrb[0].mxu0
    %145 = vdwg.mxu0
    %v146 = vadd.f32 %v64, %v132
    %v147 = vadd.f32 %v65, %v135
    %v148 = vadd.f32 %v66, %v140
    %v149 = vadd.f32 %v67, %v143
    %vm150 = vcmask 523264
    %151 = vst.msk [vmem:[#allocation2] sm:$0xff] %vm150, %v146
    %152 = vst.msk [vmem:[#allocation2 + $0x8] sm:$0xff] %vm150, %v147
    %153 = vst.msk [vmem:[#allocation2 + $0x10] sm:$0xff] %vm150, %v148
    %154 = vst.msk [vmem:[#allocation2 + $0x18] sm:$0xff] %vm150, %v149
    // Predicated region
    $region30: #{transformer_forward.19} parent=1 // pred_check
      %p155 = pneg %p55
    $region31: #{transformer_forward.19} parent=1 // pred_check_branch
      %157 = sbr.rel (%p155) target = $region33
    $region32: #{transformer_forward.19} parent=1 // pred_region
      %v158 = vld [vmem:[#allocation2] sm:$0xff]
      %v159 = vld [vmem:[#allocation2 + $0x8] sm:$0xff]
      %v160 = vld [vmem:[#allocation2 + $0x10] sm:$0xff]
      %v161 = vld [vmem:[#allocation2 + $0x18] sm:$0xff]
      %v162 = vld [vmem:[#allocation8] sm:$0x1]
      %v164 = vlaneseq
      %v165 = vshrl.u32 %v164, 7
      %v166 = vsub.s32 0, %v165
      %v167 = vrot.slane %v162, %v166
      %v169 = vadd.f32 %v158, %v167
      %v170 = vadd.f32 %v159, %v167
      %v171 = vadd.f32 %v160, %v167
      %v172 = vadd.f32 %v161, %v167
      %173 = vst.msk [vmem:[#allocation9] sm:$0xff] %vm150, %v169
      %174 = vst.msk [vmem:[#allocation9 + $0x8] sm:$0xff] %vm150, %v170
      %175 = vst.msk [vmem:[#allocation9 + $0x10] sm:$0xff] %vm150, %v171
      %176 = vst.msk [vmem:[#allocation9 + $0x18] sm:$0xff] %vm150, %v172
    $region33: #{transformer_forward.19} parent=1 // pred_fallthru
      _
    // Predicated region
    $region34: #{transformer_forward.19} parent=1 // pred_check
      _
    $region35: #{transformer_forward.19} parent=1 // pred_check_branch
      %178 = sbr.rel (0) target = $region37
    $region36: #{transformer_forward.19} parent=1 // pred_region
      %s180 = ssub.s32 512, 512
      %181 = vsyncadd [#allocation5], %s180
      %s182 = sshll.u32 [#allocation9], 4
      %s183 = int_to_ptr.vmem [resolvable:$true] %s182
      %188 = dma.vmem_to_hbm [thread:$0]  %s183, 512, %s3, [#allocation5], 128, 128, 8
    $region37: #{transformer_forward.19} parent=1 // pred_fallthru
      _
    // Predicated region
    $region38: #{transformer_forward.19} parent=1 // pred_check
      _
    $region39: #{transformer_forward.19} parent=1 // pred_check_branch
      %190 = sbr.rel (0) target = $region41
    $region40: #{transformer_forward.19} parent=1 // pred_region
      %191 = dma.done [#allocation5], 512
    $region41: #{transformer_forward.19} parent=1 // pred_fallthru
      _
    %192 = vsyncpa [#allocation4], 1
    %193 = vsyncpa [#allocation7], 1
    %194 = vsyncpa [#allocation5], 1

// kernel: transformer_forward.22
$region0: #{transformer_forward.22}
  #allocation0 [shape = 'u32[]', space=smem, size = 0x4, offset = 0x4, fixed_abs, tag = 'smem constant byte address 0x4 - core index']
  #allocation1 [shape = 'u32[144,128]{1,0:T(1,128)}', space=vmem, size = 0x12000, scoped, tag = 'internal scratch']
  #allocation2 [shape = 'f32[32,32]{1,0:T(8,128)}', space=vmem, size = 0x4000, scoped, tag = 'scratch operand']
  %s0 = inlined_call_operand.hbm [shape: f32[32,32], index: 0, kind: input, shape index: {}]
  %s1 = inlined_call_operand.hbm [shape: bf16[32,64], index: 1, kind: input, shape index: {}]
  %s2 = inlined_call_operand.hbm [shape: f32[1,64], index: 2, kind: input, shape index: {}]
  %s3 = inlined_call_operand.hbm [shape: bf16[64,32], index: 3, kind: input, shape index: {}]
  %s4 = inlined_call_operand.hbm [shape: f32[1,32], index: 4, kind: input, shape index: {}]
  %s5 = inlined_call_operand.hbm [shape: f32[1,32], index: 5, kind: input, shape index: {}]
  %s6 = inlined_call_operand.hbm [shape: f32[1,32], index: 6, kind: input, shape index: {}]
  %s7 = inlined_call_operand.hbm [shape: f32[32,32], index: 7, kind: output, shape index: {}]
  %s8 = sld [smem:[#allocation0]]
  $region74: #{transformer_forward.22} parent=0
    _
  %s10 = ssub.s32 1, %s8
  %s11 = scalar_select 0, %s10, %s8
  $region1: #{transformer_forward.22} parent=0
    #allocation3 [shape = 'u8[16384]{0}', space=vmem, size = 0x4000, scoped, tag = 'input window, operand 0, single buffered']
    #allocation4 [shape = 's32[1]{0}', space=sflag, size = 0x4, scoped, tag = 'scoped memory for transformer_forward.22']
    #allocation5 [shape = 's32[1]{0}', space=sflag, size = 0x4, scoped, tag = 'scoped memory for transformer_forward.22']
    #allocation6 [shape = 'u8[8192]{0}', space=vmem, size = 0x2000, scoped, tag = 'input window, operand 1, single buffered']
    #allocation7 [shape = 's32[1]{0}', space=sflag, size = 0x4, scoped, tag = 'scoped memory for transformer_forward.22']
    #allocation8 [shape = 'u8[512]{0}', space=vmem, size = 0x400, scoped, tag = 'input window, operand 2, single buffered']
    #allocation9 [shape = 'u8[16384]{0}', space=vmem, size = 0x4000, scoped, tag = 'input window, operand 3, single buffered']
    #allocation10 [shape = 's32[1]{0}', space=sflag, size = 0x4, scoped, tag = 'scoped memory for transformer_forward.22']
    #allocation11 [shape = 'u8[512]{0}', space=vmem, size = 0x400, scoped, tag = 'input window, operand 4, single buffered']
    #allocation12 [shape = 'u8[512]{0}', space=vmem, size = 0x400, scoped, tag = 'input window, operand 5, single buffered']
    #allocation13 [shape = 's32[1]{0}', space=sflag, size = 0x4, scoped, tag = 'scoped memory for transformer_forward.22']
    #allocation14 [shape = 'u8[512]{0}', space=vmem, size = 0x400, scoped, tag = 'input window, operand 6, single buffered']
    #allocation15 [shape = 'u8[16384]{0}', space=vmem, size = 0x4000, scoped, tag = 'output window, operand 0, single buffered']
    %12 = vsyncpa [#allocation4], 0
    %13 = vsyncpa [#allocation7], 0
    %14 = vsyncpa [#allocation10], 0
    %15 = vsyncpa [#allocation13], 0
    %16 = vsyncpa [#allocation5], 0
    // Predicated region
    $region2: #{transformer_forward.22} parent=1 // pred_check
      _
    $region3: #{transformer_forward.22} parent=1 // pred_check_branch
      %18 = sbr.rel (0) target = $region5
    $region4: #{transformer_forward.22} parent=1 // pred_region
      %s20 = ssub.s32 512, 512
      %21 = vsyncadd [#allocation4], %s20
      %s22 = sshll.u32 [#allocation3], 4
      %s23 = int_to_ptr.vmem [resolvable:$true] %s22
      %28 = dma.hbm_to_vmem [thread:$0]  %s0, 512, %s23, [#allocation4], 128, 128, 8
    $region5: #{transformer_forward.22} parent=1 // pred_fallthru
      _
    // Predicated region
    $region6: #{transformer_forward.22} parent=1 // pred_check
      _
    $region7: #{transformer_forward.22} parent=1 // pred_check_branch
      %30 = sbr.rel (0) target = $region9
    $region8: #{transformer_forward.22} parent=1 // pred_region
      %s32 = ssub.s32 256, 256
      %33 = vsyncadd [#allocation7], %s32
      %s34 = sshll.u32 [#allocation6], 4
      %s35 = int_to_ptr.vmem [resolvable:$true] %s34
      %40 = dma.hbm_to_vmem [thread:$0]  %s1, 256, %s35, [#allocation7], 64, 64, 4
    $region9: #{transformer_forward.22} parent=1 // pred_fallthru
      _
    // Predicated region
    $region10: #{transformer_forward.22} parent=1 // pred_check
      _
    $region11: #{transformer_forward.22} parent=1 // pred_check_branch
      %42 = sbr.rel (0) target = $region13
    $region12: #{transformer_forward.22} parent=1 // pred_region
      %s44 = ssub.s32 16, 16
      %45 = vsyncadd [#allocation7], %s44
      %s47 = sshll.u32 [#allocation8], 4
      %s48 = int_to_ptr.vmem [resolvable:$true] %s47
      %50 = dma.hbm_to_vmem [thread:$0]  %s2, 16, %s48, [#allocation7]
    $region13: #{transformer_forward.22} parent=1 // pred_fallthru
      _
    // Predicated region
    $region14: #{transformer_forward.22} parent=1 // pred_check
      _
    $region15: #{transformer_forward.22} parent=1 // pred_check_branch
      %52 = sbr.rel (0) target = $region17
    $region16: #{transformer_forward.22} parent=1 // pred_region
      %s54 = ssub.s32 512, 512
      %55 = vsyncadd [#allocation10], %s54
      %s56 = sshll.u32 [#allocation9], 4
      %s57 = int_to_ptr.vmem [resolvable:$true] %s56
      %62 = dma.hbm_to_vmem [thread:$0]  %s3, 512, %s57, [#allocation10], 64, 64, 4
    $region17: #{transformer_forward.22} parent=1 // pred_fallthru
      _
    // Predicated region
    $region18: #{transformer_forward.22} parent=1 // pred_check
      _
    $region19: #{transformer_forward.22} parent=1 // pred_check_branch
      %64 = sbr.rel (0) target = $region21
    $region20: #{transformer_forward.22} parent=1 // pred_region
      %s66 = ssub.s32 16, 16
      %67 = vsyncadd [#allocation10], %s66
      %s69 = sshll.u32 [#allocation11], 4
      %s70 = int_to_ptr.vmem [resolvable:$true] %s69
      %72 = dma.hbm_to_vmem [thread:$0]  %s4, 16, %s70, [#allocation10]
    $region21: #{transformer_forward.22} parent=1 // pred_fallthru
      _
    // Predicated region
    $region22: #{transformer_forward.22} parent=1 // pred_check
      _
    $region23: #{transformer_forward.22} parent=1 // pred_check_branch
      %74 = sbr.rel (0) target = $region25
    $region24: #{transformer_forward.22} parent=1 // pred_region
      %s76 = ssub.s32 16, 16
      %77 = vsyncadd [#allocation13], %s76
      %s79 = sshll.u32 [#allocation12], 4
      %s80 = int_to_ptr.vmem [resolvable:$true] %s79
      %82 = dma.hbm_to_vmem [thread:$0]  %s5, 16, %s80, [#allocation13]
    $region25: #{transformer_forward.22} parent=1 // pred_fallthru
      _
    // Predicated region
    $region26: #{transformer_forward.22} parent=1 // pred_check
      _
    $region27: #{transformer_forward.22} parent=1 // pred_check_branch
      %84 = sbr.rel (0) target = $region29
    $region28: #{transformer_forward.22} parent=1 // pred_region
      %s86 = ssub.s32 16, 16
      %87 = vsyncadd [#allocation13], %s86
      %s89 = sshll.u32 [#allocation14], 4
      %s90 = int_to_ptr.vmem [resolvable:$true] %s89
      %92 = dma.hbm_to_vmem [thread:$0]  %s6, 16, %s90, [#allocation13]
    $region29: #{transformer_forward.22} parent=1 // pred_fallthru
      _
    // Predicated region
    $region30: #{transformer_forward.22} parent=1 // pred_check
      _
    $region31: #{transformer_forward.22} parent=1 // pred_check_branch
      %94 = sbr.rel (0) target = $region33
    $region32: #{transformer_forward.22} parent=1 // pred_region
      %95 = dma.done [#allocation4], 512
    $region33: #{transformer_forward.22} parent=1 // pred_fallthru
      _
    // Predicated region
    $region34: #{transformer_forward.22} parent=1 // pred_check
      _
    $region35: #{transformer_forward.22} parent=1 // pred_check_branch
      %97 = sbr.rel (0) target = $region37
    $region36: #{transformer_forward.22} parent=1 // pred_region
      %98 = dma.done [#allocation7], 256
    $region37: #{transformer_forward.22} parent=1 // pred_fallthru
      _
    // Predicated region
    $region38: #{transformer_forward.22} parent=1 // pred_check
      _
    $region39: #{transformer_forward.22} parent=1 // pred_check_branch
      %100 = sbr.rel (0) target = $region41
    $region40: #{transformer_forward.22} parent=1 // pred_region
      %101 = dma.done [#allocation7], 16
    $region41: #{transformer_forward.22} parent=1 // pred_fallthru
      _
    // Predicated region
    $region42: #{transformer_forward.22} parent=1 // pred_check
      _
    $region43: #{transformer_forward.22} parent=1 // pred_check_branch
      %103 = sbr.rel (0) target = $region45
    $region44: #{transformer_forward.22} parent=1 // pred_region
      %104 = dma.done [#allocation10], 512
    $region45: #{transformer_forward.22} parent=1 // pred_fallthru
      _
    // Predicated region
    $region46: #{transformer_forward.22} parent=1 // pred_check
      _
    $region47: #{transformer_forward.22} parent=1 // pred_check_branch
      %106 = sbr.rel (0) target = $region49
    $region48: #{transformer_forward.22} parent=1 // pred_region
      %107 = dma.done [#allocation10], 16
    $region49: #{transformer_forward.22} parent=1 // pred_fallthru
      _
    // Predicated region
    $region50: #{transformer_forward.22} parent=1 // pred_check
      _
    $region51: #{transformer_forward.22} parent=1 // pred_check_branch
      %109 = sbr.rel (0) target = $region53
    $region52: #{transformer_forward.22} parent=1 // pred_region
      %110 = dma.done [#allocation13], 16
    $region53: #{transformer_forward.22} parent=1 // pred_fallthru
      _
    // Predicated region
    $region54: #{transformer_forward.22} parent=1 // pred_check
      _
    $region55: #{transformer_forward.22} parent=1 // pred_check_branch
      %112 = sbr.rel (0) target = $region57
    $region56: #{transformer_forward.22} parent=1 // pred_region
      %113 = dma.done [#allocation13], 16
    $region57: #{transformer_forward.22} parent=1 // pred_fallthru
      _
    %p115 = scmp.eq.s32.totalorder 0, 0
    // Predicated region
    $region58: #{transformer_forward.22} parent=1 // pred_check
      %p116 = pneg %p115
    $region59: #{transformer_forward.22} parent=1 // pred_check_branch
      %118 = sbr.rel (%p116) target = $region61
    $region60: #{transformer_forward.22} parent=1 // pred_region
      %vm119 = vcmask 261120
      %120 = vst.msk [vmem:[#allocation2] sm:$0xff] %vm119, 0.0
      %121 = vst.msk [vmem:[#allocation2 + $0x8] sm:$0xff] %vm119, 0.0
      %122 = vst.msk [vmem:[#allocation2 + $0x10] sm:$0xff] %vm119, 0.0
      %123 = vst.msk [vmem:[#allocation2 + $0x18] sm:$0xff] %vm119, 0.0
    $region61: #{transformer_forward.22} parent=1 // pred_fallthru
      _
    %v124 = vld [vmem:[#allocation3] sm:$0xff]
    %v125 = vld [vmem:[#allocation3 + $0x8] sm:$0xff]
    %v126 = vld [vmem:[#allocation3 + $0x10] sm:$0xff]
    %v127 = vld [vmem:[#allocation3 + $0x18] sm:$0xff]
    %v128 = vpack.c.bf16 %v125, %v124
    %v129 = vpack.c.bf16 %v127, %v126
    %v130 = vld [vmem:[#allocation6] sm:$0xf]
    %v131 = vld [vmem:[#allocation6 + $0x4] sm:$0xf]
    %v132 = vld [vmem:[#allocation6 + $0x8] sm:$0xf]
    %v133 = vld [vmem:[#allocation6 + $0xc] sm:$0xf]
    %v134 = vld [vmem:[#allocation8] sm:$0x1]
    %v136 = vlaneseq
    %v137 = vshrl.u32 %v136, 7
    %v138 = vsub.s32 0, %v137
    %v139 = vrot.slane %v134, %v138
    %v145 = vunpack.c.l.b16 %v130
    %v146 = vunpack.c.l.b16 %v131
    %v147 = vunpack.c.l.b16 %v132
    %v148 = vunpack.c.l.b16 %v133
    %v149 = vpack.c.b16 %v146, %v145
    %v150 = vpack.c.b16 %v148, %v147
    %vm153 = vcmask 261120
    %v155 = vsel %vm153, %v128, 0
    %v158 = vsel %vm153, %v129, 0
    %160 = vmatprep.subr.bf16.mxu0 0
    %161 = vmatpush1.bf16.msra.mxu0 %v149
    %162 = vmatprep.subr.bf16.mxu0 0
    %163 = vmatpush1.bf16.msra.mxu0 %v150
    %164 = vmatprep.subr.bf16.mxu0 0
    %165 = vmatpush1.bf16.msra.mxu0 0
    %166 = vmatprep.subr.bf16.mxu0 0
    %167 = vmatpush1.bf16.msra.mxu0 0
    %168 = vmatprep.subr.bf16.mxu0 0
    %169 = vmatpush1.bf16.msra.mxu0 0
    %170 = vmatprep.subr.bf16.mxu0 0
    %171 = vmatpush1.bf16.msra.mxu0 0
    %172 = vmatprep.subr.bf16.mxu0 0
    %173 = vmatpush1.bf16.msra.mxu0 0
    %174 = vmatprep.subr.bf16.mxu0 0
    %175 = vmatpush1.bf16.msra.mxu0 0
    %176 = vmatprep.subr.bf16.mxu0 0
    %177 = vmatpush1.bf16.msra.mxu0 0
    %178 = vmatprep.subr.bf16.mxu0 0
    %179 = vmatpush1.bf16.msra.mxu0 0
    %180 = vmatprep.subr.bf16.mxu0 0
    %181 = vmatpush1.bf16.msra.mxu0 0
    %182 = vmatprep.subr.bf16.mxu0 0
    %183 = vmatpush1.bf16.msra.mxu0 0
    %184 = vmatprep.subr.bf16.mxu0 0
    %185 = vmatpush1.bf16.msra.mxu0 0
    %186 = vmatprep.subr.bf16.mxu0 0
    %187 = vmatpush1.bf16.msra.mxu0 0
    %188 = vmatprep.subr.bf16.mxu0 0
    %189 = vmatpush1.bf16.msra.mxu0 0
    %190 = vmatprep.subr.bf16.mxu0 0
    %191 = vmatpush1.bf16.msra.mxu0 0
    %192 = vmatprep.mubr.bf16.mxu0 0
    %193 = vmatmul.mubr.bf16.gmra.mrb[0].mxu0 %v155
    %v194 = vpop.f32.mrb[0].mxu0
    %v195 = vadd.f32 %v139, %v194
    %v196 = vpop.f32.mrb[0].mxu0
    %v197 = vpop.f32.mrb[0].mxu0
    %v198 = vadd.f32 %v139, %v197
    %v199 = vpop.f32.mrb[0].mxu0
    %200 = vmatprep.mubr.bf16.mxu0 0
    %201 = vmatmul.mubr.bf16.gmra.mrb[0].mxu0 %v158
    %v202 = vpop.f32.mrb[0].mxu0
    %v203 = vadd.f32 %v139, %v202
    %v204 = vpop.f32.mrb[0].mxu0
    %v205 = vpop.f32.mrb[0].mxu0
    %v206 = vadd.f32 %v139, %v205
    %v207 = vpop.f32.mrb[0].mxu0
    %208 = vdwg.mxu0
    %v209 = vmax.f32 %v195, 0.0
    %v210 = vmax.f32 %v198, 0.0
    %v211 = vmax.f32 %v203, 0.0
    %v212 = vmax.f32 %v206, 0.0
    %v213 = vld [vmem:[#allocation2] sm:$0xff]
    %v214 = vld [vmem:[#allocation2 + $0x8] sm:$0xff]
    %v215 = vld [vmem:[#allocation2 + $0x10] sm:$0xff]
    %v216 = vld [vmem:[#allocation2 + $0x18] sm:$0xff]
    %v217 = vpack.c.bf16 %v210, %v209
    %v218 = vpack.c.bf16 %v212, %v211
    %v219 = vld [vmem:[#allocation9] sm:$0xf]
    %v220 = vld [vmem:[#allocation9 + $0x4] sm:$0xf]
    %v221 = vld [vmem:[#allocation9 + $0x8] sm:$0xf]
    %v222 = vld [vmem:[#allocation9 + $0xc] sm:$0xf]
    %v223 = vld [vmem:[#allocation9 + $0x10] sm:$0xf]
    %v224 = vld [vmem:[#allocation9 + $0x14] sm:$0xf]
    %v225 = vld [vmem:[#allocation9 + $0x18] sm:$0xf]
    %v226 = vld [vmem:[#allocation9 + $0x1c] sm:$0xf]
    %v235 = vunpack.c.l.b16 %v219
    %v236 = vunpack.c.l.b16 %v220
    %v237 = vunpack.c.l.b16 %v221
    %v238 = vunpack.c.l.b16 %v222
    %v239 = vunpack.c.l.b16 %v223
    %v240 = vunpack.c.l.b16 %v224
    %v241 = vunpack.c.l.b16 %v225
    %v242 = vunpack.c.l.b16 %v226
    %v243 = vpack.c.b16 %v236, %v235
    %v244 = vpack.c.b16 %v238, %v237
    %v245 = vpack.c.b16 %v240, %v239
    %v246 = vpack.c.b16 %v242, %v241
    %vm251 = vcmask 523264
    %v253 = vsel %vm251, %v217, 0
    %v256 = vsel %vm251, %v218, 0
    %258 = vmatprep.subr.bf16.mxu0 0
    %259 = vmatpush1.bf16.msra.mxu0 %v243
    %260 = vmatprep.subr.bf16.mxu0 0
    %261 = vmatpush1.bf16.msra.mxu0 %v244
    %262 = vmatprep.subr.bf16.mxu0 0
    %263 = vmatpush1.bf16.msra.mxu0 %v245
    %264 = vmatprep.subr.bf16.mxu0 0
    %265 = vmatpush1.bf16.msra.mxu0 %v246
    %266 = vmatprep.subr.bf16.mxu0 0
    %267 = vmatpush1.bf16.msra.mxu0 0
    %268 = vmatprep.subr.bf16.mxu0 0
    %269 = vmatpush1.bf16.msra.mxu0 0
    %270 = vmatprep.subr.bf16.mxu0 0
    %271 = vmatpush1.bf16.msra.mxu0 0
    %272 = vmatprep.subr.bf16.mxu0 0
    %273 = vmatpush1.bf16.msra.mxu0 0
    %274 = vmatprep.subr.bf16.mxu0 0
    %275 = vmatpush1.bf16.msra.mxu0 0
    %276 = vmatprep.subr.bf16.mxu0 0
    %277 = vmatpush1.bf16.msra.mxu0 0
    %278 = vmatprep.subr.bf16.mxu0 0
    %279 = vmatpush1.bf16.msra.mxu0 0
    %280 = vmatprep.subr.bf16.mxu0 0
    %281 = vmatpush1.bf16.msra.mxu0 0
    %282 = vmatprep.subr.bf16.mxu0 0
    %283 = vmatpush1.bf16.msra.mxu0 0
    %284 = vmatprep.subr.bf16.mxu0 0
    %285 = vmatpush1.bf16.msra.mxu0 0
    %286 = vmatprep.subr.bf16.mxu0 0
    %287 = vmatpush1.bf16.msra.mxu0 0
    %288 = vmatprep.subr.bf16.mxu0 0
    %289 = vmatpush1.bf16.msra.mxu0 0
    %290 = vmatprep.mubr.bf16.mxu0 0
    %291 = vmatmul.mubr.bf16.gmra.mrb[0].mxu0 %v253
    %v292 = vpop.f32.mrb[0].mxu0
    %v293 = vadd.f32 0.0, %v292
    %v294 = vpop.f32.mrb[0].mxu0
    %v295 = vpop.f32.mrb[0].mxu0
    %v296 = vadd.f32 0.0, %v295
    %v297 = vpop.f32.mrb[0].mxu0
    %298 = vmatprep.mubr.bf16.mxu0 0
    %299 = vmatmul.mubr.bf16.gmra.mrb[0].mxu0 %v256
    %v300 = vpop.f32.mrb[0].mxu0
    %v301 = vadd.f32 0.0, %v300
    %v302 = vpop.f32.mrb[0].mxu0
    %v303 = vpop.f32.mrb[0].mxu0
    %v304 = vadd.f32 0.0, %v303
    %v305 = vpop.f32.mrb[0].mxu0
    %306 = vdwg.mxu0
    %v307 = vadd.f32 %v213, %v293
    %v308 = vadd.f32 %v214, %v296
    %v309 = vadd.f32 %v215, %v301
    %v310 = vadd.f32 %v216, %v304
    %311 = vst.msk [vmem:[#allocation2] sm:$0xff] %vm153, %v307
    %312 = vst.msk [vmem:[#allocation2 + $0x8] sm:$0xff] %vm153, %v308
    %313 = vst.msk [vmem:[#allocation2 + $0x10] sm:$0xff] %vm153, %v309
    %314 = vst.msk [vmem:[#allocation2 + $0x18] sm:$0xff] %vm153, %v310
    // Predicated region
    $region62: #{transformer_forward.22} parent=1 // pred_check
      %p315 = pneg %p115
    $region63: #{transformer_forward.22} parent=1 // pred_check_branch
      %317 = sbr.rel (%p315) target = $region65
    $region64: #{transformer_forward.22} parent=1 // pred_region
      %v318 = vld [vmem:[#allocation2] sm:$0xff]
      %v319 = vld [vmem:[#allocation2 + $0x8] sm:$0xff]
      %v320 = vld [vmem:[#allocation2 + $0x10] sm:$0xff]
      %v321 = vld [vmem:[#allocation2 + $0x18] sm:$0xff]
      %v322 = vld [vmem:[#allocation11] sm:$0x1]
      %v324 = vlaneseq
      %v325 = vshrl.u32 %v324, 7
      %v326 = vsub.s32 0, %v325
      %v327 = vrot.slane %v322, %v326
      %v329 = vadd.f32 %v318, %v327
      %v330 = vadd.f32 %v319, %v327
      %v331 = vadd.f32 %v320, %v327
      %v332 = vadd.f32 %v321, %v327
      %v333 = vadd.f32 %v329, %v124
      %v334 = vadd.f32 %v330, %v125
      %v335 = vadd.f32 %v331, %v126
      %v336 = vadd.f32 %v332, %v127
      %v337 = vsel %vm153, %v333, 0.0
      %338 = vadd.xlane.f32.xlu0 %v337
      %v339 = vpop.xlane.xlu0 %338
      %v340 = vsel %vm153, %v334, 0.0
      %341 = vadd.xlane.f32.xlu0 %v340
      %v342 = vpop.xlane.xlu0 %341
      %v343 = vsel %vm153, %v335, 0.0
      %344 = vadd.xlane.f32.xlu0 %v343
      %v345 = vpop.xlane.xlu0 %344
      %v346 = vsel %vm153, %v336, 0.0
      %347 = vadd.xlane.f32.xlu0 %v346
      %v348 = vpop.xlane.xlu0 %347
      %v349 = vrcp.pop 32.0
      %v350 = vmul.f32 %v339, %v349
      %v351 = vmul.f32 %v342, %v349
      %v352 = vmul.f32 %v345, %v349
      %v353 = vmul.f32 %v348, %v349
      %v354 = vsub.f32 %v333, %v350
      %v355 = vsub.f32 %v334, %v351
      %v356 = vsub.f32 %v335, %v352
      %v357 = vsub.f32 %v336, %v353
      %v358 = vmul.f32 %v354, %v354
      %v359 = vmul.f32 %v355, %v355
      %v360 = vmul.f32 %v356, %v356
      %v361 = vmul.f32 %v357, %v357
      %v362 = vsel %vm153, %v358, 0.0
      %363 = vadd.xlane.f32.xlu0 %v362
      %v364 = vpop.xlane.xlu0 %363
      %v365 = vsel %vm153, %v359, 0.0
      %366 = vadd.xlane.f32.xlu0 %v365
      %v367 = vpop.xlane.xlu0 %366
      %v368 = vsel %vm153, %v360, 0.0
      %369 = vadd.xlane.f32.xlu0 %v368
      %v370 = vpop.xlane.xlu0 %369
      %v371 = vsel %vm153, %v361, 0.0
      %372 = vadd.xlane.f32.xlu0 %v371
      %v373 = vpop.xlane.xlu0 %372
      %v374 = vmul.f32 %v364, %v349
      %v375 = vmul.f32 %v367, %v349
      %v376 = vmul.f32 %v370, %v349
      %v377 = vmul.f32 %v373, %v349
      %v378 = vadd.f32 %v374, 1e-05
      %v379 = vadd.f32 %v375, 1e-05
      %v380 = vadd.f32 %v376, 1e-05
      %v381 = vadd.f32 %v377, 1e-05
      %v382 = vrsqrt.pop %v378
      %v383 = vrsqrt.pop %v379
      %v384 = vrsqrt.pop %v380
      %v385 = vrsqrt.pop %v381
      %v386 = vmul.f32 %v354, %v382
      %v387 = vmul.f32 %v355, %v383
      %v388 = vmul.f32 %v356, %v384
      %v389 = vmul.f32 %v357, %v385
      %v390 = vld [vmem:[#allocation12] sm:$0x1]
      %v392 = vlaneseq
      %v393 = vshrl.u32 %v392, 7
      %v394 = vsub.s32 0, %v393
      %v395 = vrot.slane %v390, %v394
      %v397 = vmul.f32 %v386, %v395
      %v398 = vmul.f32 %v387, %v395
      %v399 = vmul.f32 %v388, %v395
      %v400 = vmul.f32 %v389, %v395
      %v401 = vld [vmem:[#allocation14] sm:$0x1]
      %v403 = vlaneseq
      %v404 = vshrl.u32 %v403, 7
      %v405 = vsub.s32 0, %v404
      %v406 = vrot.slane %v401, %v405
      %v408 = vadd.f32 %v397, %v406
      %v409 = vadd.f32 %v398, %v406
      %v410 = vadd.f32 %v399, %v406
      %v411 = vadd.f32 %v400, %v406
      %412 = vst.msk [vmem:[#allocation15] sm:$0xff] %vm153, %v408
      %413 = vst.msk [vmem:[#allocation15 + $0x8] sm:$0xff] %vm153, %v409
      %414 = vst.msk [vmem:[#allocation15 + $0x10] sm:$0xff] %vm153, %v410
      %415 = vst.msk [vmem:[#allocation15 + $0x18] sm:$0xff] %vm153, %v411
    $region65: #{transformer_forward.22} parent=1 // pred_fallthru
      _
    // Predicated region
    $region66: #{transformer_forward.22} parent=1 // pred_check
      _
    $region67: #{transformer_forward.22} parent=1 // pred_check_branch
      %417 = sbr.rel (0) target = $region69
    $region68: #{transformer_forward.22} parent=1 // pred_region
      %s419 = ssub.s32 512, 512
      %420 = vsyncadd [#allocation5], %s419
      %s421 = sshll.u32 [#allocation15], 4
      %s422 = int_to_ptr.vmem [resolvable:$true] %s421
      %427 = dma.vmem_to_hbm [thread:$0]  %s422, 512, %s7, [#allocation5], 128, 128, 8
    $region69: #{transformer_forward.22} parent=1 // pred_fallthru
      _
    // Predicated region
    $region70: #{transformer_forward.22} parent=1 // pred_check
      _
    $region71: #{transformer_forward.22} parent=1 // pred_check_branch
      %429 = sbr.rel (0) target = $region73
    $region72: #{transformer_forward.22} parent=1 // pred_region
      %430 = dma.done [#allocation5], 512
    $region73: #{transformer_forward.22} parent=1 // pred_fallthru
      _
    %431 = vsyncpa [#allocation4], 1
    %432 = vsyncpa [#allocation7], 1
    %433 = vsyncpa [#allocation10], 1
    %434 = vsyncpa [#allocation13], 1
    %435 = vsyncpa [#allocation5], 1

// kernel: transformer_forward.21
$region0: #{transformer_forward.21}
  #allocation0 [shape = 'u32[]', space=smem, size = 0x4, offset = 0x4, fixed_abs, tag = 'smem constant byte address 0x4 - core index']
  #allocation1 [shape = 'u32[144,128]{1,0:T(1,128)}', space=vmem, size = 0x12000, scoped, tag = 'internal scratch']
  #allocation2 [shape = 'f32[16,32]{1,0:T(8,128)}', space=vmem, size = 0x2000, scoped, tag = 'scratch operand']
  %s0 = inlined_call_operand.hbm [shape: f32[2,16,32], index: 0, kind: input, shape index: {}]
  %s1 = inlined_call_operand.hbm [shape: f32[2,16,32], index: 1, kind: input, shape index: {}]
  %s2 = inlined_call_operand.hbm [shape: f32[2,16,32], index: 2, kind: input, shape index: {}]
  %s3 = inlined_call_operand.hbm [shape: bf16[32,32], index: 3, kind: input, shape index: {}]
  %s4 = inlined_call_operand.hbm [shape: f32[1,32], index: 4, kind: input, shape index: {}]
  %s5 = inlined_call_operand.hbm [shape: f32[2,16,32], index: 5, kind: input, shape index: {}]
  %s6 = inlined_call_operand.hbm [shape: f32[1,32], index: 6, kind: input, shape index: {}]
  %s7 = inlined_call_operand.hbm [shape: f32[1,32], index: 7, kind: input, shape index: {}]
  %s8 = inlined_call_operand.hbm [shape: f32[2,16,32], index: 8, kind: output, shape index: {}]
  %s9 = sld [smem:[#allocation0]]
  $region97: #{transformer_forward.21} parent=0
    _
  %s11 = ssub.s32 1, %s9
  %s12 = scalar_select 0, %s11, %s9
  $region1: #{transformer_forward.21} parent=0
    #allocation3 [shape = 'u8[16384]{0}', space=vmem, size = 0x4000, scoped, tag = 'input window, operand 0']
    #allocation4 [shape = 's32[2]{0}', space=sflag, size = 0x8, scoped, tag = 'scoped memory for transformer_forward.21']
    #allocation5 [shape = 's32[2]{0}', space=sflag, size = 0x8, scoped, tag = 'scoped memory for transformer_forward.21']
    #allocation6 [shape = 'u8[16384]{0}', space=vmem, size = 0x4000, scoped, tag = 'input window, operand 1']
    #allocation7 [shape = 's32[2]{0}', space=sflag, size = 0x8, scoped, tag = 'scoped memory for transformer_forward.21']
    #allocation8 [shape = 'u8[16384]{0}', space=vmem, size = 0x4000, scoped, tag = 'input window, operand 2']
    #allocation9 [shape = 'u8[8192]{0}', space=vmem, size = 0x2000, scoped, tag = 'input window, operand 3, single buffered']
    #allocation10 [shape = 's32[1]{0}', space=sflag, size = 0x4, scoped, tag = 'scoped memory for transformer_forward.21']
    #allocation11 [shape = 'u8[512]{0}', space=vmem, size = 0x400, scoped, tag = 'input window, operand 4, single buffered']
    #allocation12 [shape = 'u8[16384]{0}', space=vmem, size = 0x4000, scoped, tag = 'input window, operand 5']
    #allocation13 [shape = 's32[2]{0}', space=sflag, size = 0x8, scoped, tag = 'scoped memory for transformer_forward.21']
    #allocation14 [shape = 'u8[512]{0}', space=vmem, size = 0x400, scoped, tag = 'input window, operand 6, single buffered']
    #allocation15 [shape = 'u8[512]{0}', space=vmem, size = 0x400, scoped, tag = 'input window, operand 7, single buffered']
    #allocation16 [shape = 's32[1]{0}', space=sflag, size = 0x4, scoped, tag = 'scoped memory for transformer_forward.21']
    #allocation17 [shape = 'u8[16384]{0}', space=vmem, size = 0x4000, scoped, tag = 'output window, operand 0']
    %13 = vsyncpa [#allocation4], 0
    %s14 = scalar_lea.sflag [#allocation4], 1
    %15 = vsyncpa %s14, 0
    %16 = vsyncpa [#allocation7], 0
    %s17 = scalar_lea.sflag [#allocation7], 1
    %18 = vsyncpa %s17, 0
    %19 = vsyncpa [#allocation10], 0
    %20 = vsyncpa [#allocation13], 0
    %s21 = scalar_lea.sflag [#allocation13], 1
    %22 = vsyncpa %s21, 0
    %23 = vsyncpa [#allocation16], 0
    %24 = vsyncpa [#allocation5], 0
    %s25 = scalar_lea.sflag [#allocation5], 1
    %26 = vsyncpa %s25, 0
    loop: start=0, step=1, limit=4
    $region2: #{transformer_forward.21} parent=1 // loop_pre_header
      _
    $region3: #{transformer_forward.21} parent=1 // loop_header
      %s28 = sphi 0, %s32
      %p29 = scmp.ge.s32.totalorder %s28, 4
      %s35 = sphi 0, %s47
      %s36 = sphi 0, %s43
      %s37 = sphi 0, %s35
      %s38 = sphi 0, %s36
      %s39 = sphi 0, %s37
      %s40 = sphi 0, %s38
      %s52 = sphi 0, %s54
      %s55 = sphi 0, %s52
      %s56 = sphi 0, %s55
      %s72 = sphi 0, %s56
      %s78 = sphi 0, %s80
      %s81 = sphi 0, %s78
      %s82 = sphi 0, %s81
      %s98 = sphi 0, %s82
      %s104 = sphi 0, %s106
      %s107 = sphi 0, %s104
      %s108 = sphi 0, %s107
      %s124 = sphi 0, %s108
      %s128 = sphi 0, %s128
      %s130 = sphi 0, %s128
      %s131 = sphi 0, %s130
      %s145 = sphi 0, %s131
      %s149 = sphi 0, %s149
      %s151 = sphi 0, %s149
      %s152 = sphi 0, %s151
      %s166 = sphi 0, %s152
      %s174 = sphi 0, %s176
      %s177 = sphi 0, %s174
      %s178 = sphi 0, %s177
      %s194 = sphi 0, %s178
      %s198 = sphi 0, %s198
      %s200 = sphi 0, %s198
      %s201 = sphi 0, %s200
      %s215 = sphi 0, %s201
      %s219 = sphi 0, %s219
      %s221 = sphi 0, %s219
      %s222 = sphi 0, %s221
      %s236 = sphi 0, %s222
      %s244 = sphi 0, %s246
      %s247 = sphi 0, %s244
      %s248 = sphi 0, %s247
      %s264 = sphi 0, %s248
    $region4: #{transformer_forward.21} parent=1 // loop_header_branch
      %31 = sbr.rel (%p29) target = $region8
    $region5: #{transformer_forward.21} parent=1 // loop_body
      %s33 = ssub.s32 %s28, 1
      %s34 = ssub.s32 %s28, 2
      %s41 = sadd.s32 1, %s36
      %p42 = scmp.ge.s32.totalorder %s41, 1
      %s43 = scalar_select %p42, 0, %s41
      %s44 = sadd.s32 1, %s35
      %s45 = scalar_select %p42, %s44, %s35
      %p46 = scmp.ge.s32.totalorder %s45, 2
      %s47 = scalar_select %p46, 0, %s45
      %s48 = ssub.s32 %s35, %s47
      %s49 = ssub.s32 %s36, %s43
      %s50 = sor.u32 %s48, %s49
      %p51 = scmp.eq.s32.totalorder %s50, 0
      %s53 = sadd.s32 %s52, 1
      %s54 = scalar_select %p51, %s52, %s53
      %p57 = pneg %p51
      %p58 = scmp.eq.s32.totalorder %s28, 1
      %p59 = por %p57, %p58
      %p60 = scmp.ne.s32.totalorder %s52, %s55
      %p61 = scmp.eq.s32.totalorder %s28, 0
      %p62 = por %p60, %p61
      %p63 = scmp.ne.s32.totalorder %s52, %s55
      %p64 = scmp.eq.s32.totalorder %s33, 1
      %p65 = por %p63, %p64
      %p66 = scmp.ne.s32.totalorder %s55, %s56
      %p67 = scmp.eq.s32.totalorder %s33, 0
      %p68 = por %p66, %p67
      %p69 = scmp.ne.s32.totalorder %s55, %s56
      %p70 = scmp.eq.s32.totalorder %s34, 1
      %p71 = por %p69, %p70
      %p73 = scmp.ne.s32.totalorder %s56, %s72
      %p74 = scmp.eq.s32.totalorder %s34, 0
      %p75 = por %p73, %p74
      %s76 = ssub.s32 %s35, %s47
      %p77 = scmp.eq.s32.totalorder %s76, 0
      %s79 = sadd.s32 %s78, 1
      %s80 = scalar_select %p77, %s78, %s79
      %p83 = pneg %p77
      %p84 = scmp.eq.s32.totalorder %s28, 1
      %p85 = por %p83, %p84
      %p86 = scmp.ne.s32.totalorder %s78, %s81
      %p87 = scmp.eq.s32.totalorder %s28, 0
      %p88 = por %p86, %p87
      %p89 = scmp.ne.s32.totalorder %s78, %s81
      %p90 = scmp.eq.s32.totalorder %s33, 1
      %p91 = por %p89, %p90
      %p92 = scmp.ne.s32.totalorder %s81, %s82
      %p93 = scmp.eq.s32.totalorder %s33, 0
      %p94 = por %p92, %p93
      %p95 = scmp.ne.s32.totalorder %s81, %s82
      %p96 = scmp.eq.s32.totalorder %s34, 1
      %p97 = por %p95, %p96
      %p99 = scmp.ne.s32.totalorder %s82, %s98
      %p100 = scmp.eq.s32.totalorder %s34, 0
      %p101 = por %p99, %p100
      %s102 = ssub.s32 %s35, %s47
      %p103 = scmp.eq.s32.totalorder %s102, 0
      %s105 = sadd.s32 %s104, 1
      %s106 = scalar_select %p103, %s104, %s105
      %p109 = pneg %p103
      %p110 = scmp.eq.s32.totalorder %s28, 1
      %p111 = por %p109, %p110
      %p112 = scmp.ne.s32.totalorder %s104, %s107
      %p113 = scmp.eq.s32.totalorder %s28, 0
      %p114 = por %p112, %p113
      %p115 = scmp.ne.s32.totalorder %s104, %s107
      %p116 = scmp.eq.s32.totalorder %s33, 1
      %p117 = por %p115, %p116
      %p118 = scmp.ne.s32.totalorder %s107, %s108
      %p119 = scmp.eq.s32.totalorder %s33, 0
      %p120 = por %p118, %p119
      %p121 = scmp.ne.s32.totalorder %s107, %s108
      %p122 = scmp.eq.s32.totalorder %s34, 1
      %p123 = por %p121, %p122
      %p125 = scmp.ne.s32.totalorder %s108, %s124
      %p126 = scmp.eq.s32.totalorder %s34, 0
      %p127 = por %p125, %p126
      %s129 = sadd.s32 %s128, 1
      %p132 = scmp.eq.s32.totalorder %s28, 1
      %p133 = scmp.ne.s32.totalorder %s128, %s130
      %p134 = scmp.eq.s32.totalorder %s28, 0
      %p135 = por %p133, %p134
      %p136 = scmp.ne.s32.totalorder %s128, %s130
      %p137 = scmp.eq.s32.totalorder %s33, 1
      %p138 = por %p136, %p137
      %p139 = scmp.ne.s32.totalorder %s130, %s131
      %p140 = scmp.eq.s32.totalorder %s33, 0
      %p141 = por %p139, %p140
      %p142 = scmp.ne.s32.totalorder %s130, %s131
      %p143 = scmp.eq.s32.totalorder %s34, 1
      %p144 = por %p142, %p143
      %p146 = scmp.ne.s32.totalorder %s131, %s145
      %p147 = scmp.eq.s32.totalorder %s34, 0
      %p148 = por %p146, %p147
      %s150 = sadd.s32 %s149, 1
      %p153 = scmp.eq.s32.totalorder %s28, 1
      %p154 = scmp.ne.s32.totalorder %s149, %s151
      %p155 = scmp.eq.s32.totalorder %s28, 0
      %p156 = por %p154, %p155
      %p157 = scmp.ne.s32.totalorder %s149, %s151
      %p158 = scmp.eq.s32.totalorder %s33, 1
      %p159 = por %p157, %p158
      %p160 = scmp.ne.s32.totalorder %s151, %s152
      %p161 = scmp.eq.s32.totalorder %s33, 0
      %p162 = por %p160, %p161
      %p163 = scmp.ne.s32.totalorder %s151, %s152
      %p164 = scmp.eq.s32.totalorder %s34, 1
      %p165 = por %p163, %p164
      %p167 = scmp.ne.s32.totalorder %s152, %s166
      %p168 = scmp.eq.s32.totalorder %s34, 0
      %p169 = por %p167, %p168
      %s170 = ssub.s32 %s35, %s47
      %s171 = ssub.s32 %s36, %s43
      %s172 = sor.u32 %s170, %s171
      %p173 = scmp.eq.s32.totalorder %s172, 0
      %s175 = sadd.s32 %s174, 1
      %s176 = scalar_select %p173, %s174, %s175
      %p179 = pneg %p173
      %p180 = scmp.eq.s32.totalorder %s28, 1
      %p181 = por %p179, %p180
      %p182 = scmp.ne.s32.totalorder %s174, %s177
      %p183 = scmp.eq.s32.totalorder %s28, 0
      %p184 = por %p182, %p183
      %p185 = scmp.ne.s32.totalorder %s174, %s177
      %p186 = scmp.eq.s32.totalorder %s33, 1
      %p187 = por %p185, %p186
      %p188 = scmp.ne.s32.totalorder %s177, %s178
      %p189 = scmp.eq.s32.totalorder %s33, 0
      %p190 = por %p188, %p189
      %p191 = scmp.ne.s32.totalorder %s177, %s178
      %p192 = scmp.eq.s32.totalorder %s34, 1
      %p193 = por %p191, %p192
      %p195 = scmp.ne.s32.totalorder %s178, %s194
      %p196 = scmp.eq.s32.totalorder %s34, 0
      %p197 = por %p195, %p196
      %s199 = sadd.s32 %s198, 1
      %p202 = scmp.eq.s32.totalorder %s28, 1
      %p203 = scmp.ne.s32.totalorder %s198, %s200
      %p204 = scmp.eq.s32.totalorder %s28, 0
      %p205 = por %p203, %p204
      %p206 = scmp.ne.s32.totalorder %s198, %s200
      %p207 = scmp.eq.s32.totalorder %s33, 1
      %p208 = por %p206, %p207
      %p209 = scmp.ne.s32.totalorder %s200, %s201
      %p210 = scmp.eq.s32.totalorder %s33, 0
      %p211 = por %p209, %p210
      %p212 = scmp.ne.s32.totalorder %s200, %s201
      %p213 = scmp.eq.s32.totalorder %s34, 1
      %p214 = por %p212, %p213
      %p216 = scmp.ne.s32.totalorder %s201, %s215
      %p217 = scmp.eq.s32.totalorder %s34, 0
      %p218 = por %p216, %p217
      %s220 = sadd.s32 %s219, 1
      %p223 = scmp.eq.s32.totalorder %s28, 1
      %p224 = scmp.ne.s32.totalorder %s219, %s221
      %p225 = scmp.eq.s32.totalorder %s28, 0
      %p226 = por %p224, %p225
      %p227 = scmp.ne.s32.totalorder %s219, %s221
      %p228 = scmp.eq.s32.totalorder %s33, 1
      %p229 = por %p227, %p228
      %p230 = scmp.ne.s32.totalorder %s221, %s222
      %p231 = scmp.eq.s32.totalorder %s33, 0
      %p232 = por %p230, %p231
      %p233 = scmp.ne.s32.totalorder %s221, %s222
      %p234 = scmp.eq.s32.totalorder %s34, 1
      %p235 = por %p233, %p234
      %p237 = scmp.ne.s32.totalorder %s222, %s236
      %p238 = scmp.eq.s32.totalorder %s34, 0
      %p239 = por %p237, %p238
      %s240 = ssub.s32 %s35, %s47
      %s241 = ssub.s32 %s36, %s43
      %s242 = sor.u32 %s240, %s241
      %p243 = scmp.eq.s32.totalorder %s242, 0
      %s245 = sadd.s32 %s244, 1
      %s246 = scalar_select %p243, %s244, %s245
      %p249 = pneg %p243
      %p250 = scmp.eq.s32.totalorder %s28, 1
      %p251 = por %p249, %p250
      %p252 = scmp.ne.s32.totalorder %s244, %s247
      %p253 = scmp.eq.s32.totalorder %s28, 0
      %p254 = por %p252, %p253
      %p255 = scmp.ne.s32.totalorder %s244, %s247
      %p256 = scmp.eq.s32.totalorder %s33, 1
      %p257 = por %p255, %p256
      %p258 = scmp.ne.s32.totalorder %s247, %s248
      %p259 = scmp.eq.s32.totalorder %s33, 0
      %p260 = por %p258, %p259
      %p261 = scmp.ne.s32.totalorder %s247, %s248
      %p262 = scmp.eq.s32.totalorder %s34, 1
      %p263 = por %p261, %p262
      %p265 = scmp.ne.s32.totalorder %s248, %s264
      %p266 = scmp.eq.s32.totalorder %s34, 0
      %p267 = por %p265, %p266
      %p268 = scmp.le.s32.totalorder 1, %s28
      %p269 = scmp.lt.s32.totalorder %s28, 3
      %p270 = pnand %p268, %p269
      %p271 = pneg %p270
      // Predicated region
      $region9: #{transformer_forward.21} parent=5 // pred_check
        _
      $region10: #{transformer_forward.21} parent=5 // pred_check_branch
        %273 = sbr.rel (%p270) target = $region12
      $region11: #{transformer_forward.21} parent=5 // pred_region
        %s274 = ssub.s32 %s28, 1
        // Predicated region
        $region13: #{transformer_forward.21} parent=11 // pred_check
          %p275 = pneg %p141
        $region14: #{transformer_forward.21} parent=11 // pred_check_branch
          %277 = sbr.rel (%p275) target = $region16
        $region15: #{transformer_forward.21} parent=11 // pred_region
          %s279 = ssub.s32 256, 256
          %280 = vsyncadd [#allocation10], %s279
          %s281 = sshll.u32 [#allocation9], 4
          %s282 = int_to_ptr.vmem [resolvable:$true] %s281
          %287 = dma.hbm_to_vmem [thread:$0]  %s3, 256, %s282, [#allocation10], 64, 64, 4
        $region16: #{transformer_forward.21} parent=11 // pred_fallthru
          _
        // Predicated region
        $region17: #{transformer_forward.21} parent=11 // pred_check
          %p288 = pneg %p162
        $region18: #{transformer_forward.21} parent=11 // pred_check_branch
          %290 = sbr.rel (%p288) target = $region20
        $region19: #{transformer_forward.21} parent=11 // pred_region
          %s292 = ssub.s32 16, 16
          %293 = vsyncadd [#allocation10], %s292
          %s295 = sshll.u32 [#allocation11], 4
          %s296 = int_to_ptr.vmem [resolvable:$true] %s295
          %298 = dma.hbm_to_vmem [thread:$0]  %s4, 16, %s296, [#allocation10]
        $region20: #{transformer_forward.21} parent=11 // pred_fallthru
          _
        // Predicated region
        $region21: #{transformer_forward.21} parent=11 // pred_check
          %p299 = pneg %p211
        $region22: #{transformer_forward.21} parent=11 // pred_check_branch
          %301 = sbr.rel (%p299) target = $region24
        $region23: #{transformer_forward.21} parent=11 // pred_region
          %s303 = ssub.s32 16, 16
          %304 = vsyncadd [#allocation13], %s303
          %s306 = sshll.u32 [#allocation14], 4
          %s307 = int_to_ptr.vmem [resolvable:$true] %s306
          %309 = dma.hbm_to_vmem [thread:$0]  %s6, 16, %s307, [#allocation13]
        $region24: #{transformer_forward.21} parent=11 // pred_fallthru
          _
        // Predicated region
        $region25: #{transformer_forward.21} parent=11 // pred_check
          %p310 = pneg %p232
        $region26: #{transformer_forward.21} parent=11 // pred_check_branch
          %312 = sbr.rel (%p310) target = $region28
        $region27: #{transformer_forward.21} parent=11 // pred_region
          %s314 = ssub.s32 16, 16
          %315 = vsyncadd [#allocation16], %s314
          %s317 = sshll.u32 [#allocation15], 4
          %s318 = int_to_ptr.vmem [resolvable:$true] %s317
          %320 = dma.hbm_to_vmem [thread:$0]  %s7, 16, %s318, [#allocation16]
        $region28: #{transformer_forward.21} parent=11 // pred_fallthru
          _
      $region12: #{transformer_forward.21} parent=5 // pred_fallthru
        _
      %p321 = scmp.lt.s32.totalorder %s28, 2
      // Predicated region
      $region29: #{transformer_forward.21} parent=5 // pred_check
        %p322 = pneg %p321
      $region30: #{transformer_forward.21} parent=5 // pred_check_branch
        %324 = sbr.rel (%p322) target = $region32
      $region31: #{transformer_forward.21} parent=5 // pred_region
        // Predicated region
        $region33: #{transformer_forward.21} parent=31 // pred_check
          %p325 = pneg %p62
        $region34: #{transformer_forward.21} parent=31 // pred_check_branch
          %327 = sbr.rel (%p325) target = $region36
        $region35: #{transformer_forward.21} parent=31 // pred_region
          %s328 = sand.u32 %s52, 1
          %s329 = scalar_lea.sflag [#allocation4], %s328
          %s330 = sand.u32 %s52, 1
          %s331 = smul.addr %s330, 16
          %s332 = scalar_lea.vmem [#allocation3], %s331
          %s333 = smul.u32 2, %s36
          %s335 = ssub.s32 256, 256
          %336 = vsyncadd %s329, %s335
          %s337 = smul.addr %s35, 2
          %s338 = sadd.s32 %s333, %s337
          %s339 = smul.addr %s338, 128
          %s340 = scalar_lea.hbm %s0, %s339
          %s341 = sshll.u32 %s332, 4
          %s342 = int_to_ptr.vmem [resolvable:$true] %s341
          %347 = dma.hbm_to_vmem [thread:$0]  %s340, 256, %s342, %s329, 128, 128, 8
        $region36: #{transformer_forward.21} parent=31 // pred_fallthru
          _
        // Predicated region
        $region37: #{transformer_forward.21} parent=31 // pred_check
          %p348 = pneg %p88
        $region38: #{transformer_forward.21} parent=31 // pred_check_branch
          %350 = sbr.rel (%p348) target = $region40
        $region39: #{transformer_forward.21} parent=31 // pred_region
          %s351 = sand.u32 %s28, 1
          %s352 = scalar_lea.sflag [#allocation7], %s351
          %s353 = sand.u32 %s78, 1
          %s354 = smul.addr %s353, 16
          %s355 = scalar_lea.vmem [#allocation6], %s354
          %s357 = ssub.s32 256, 256
          %358 = vsyncadd %s352, %s357
          %s359 = smul.addr %s35, 2
          %s360 = smul.addr %s359, 128
          %s361 = scalar_lea.hbm %s1, %s360
          %s362 = sshll.u32 %s355, 4
          %s363 = int_to_ptr.vmem [resolvable:$true] %s362
          %368 = dma.hbm_to_vmem [thread:$0]  %s361, 256, %s363, %s352, 128, 128, 8
        $region40: #{transformer_forward.21} parent=31 // pred_fallthru
          _
        // Predicated region
        $region41: #{transformer_forward.21} parent=31 // pred_check
          %p369 = pneg %p114
        $region42: #{transformer_forward.21} parent=31 // pred_check_branch
          %371 = sbr.rel (%p369) target = $region44
        $region43: #{transformer_forward.21} parent=31 // pred_region
          %s372 = sand.u32 %s28, 1
          %s373 = scalar_lea.sflag [#allocation7], %s372
          %s374 = sand.u32 %s104, 1
          %s375 = smul.addr %s374, 16
          %s376 = scalar_lea.vmem [#allocation8], %s375
          %s378 = ssub.s32 256, 256
          %379 = vsyncadd %s373, %s378
          %s380 = smul.addr %s35, 2
          %s381 = smul.addr %s380, 128
          %s382 = scalar_lea.hbm %s2, %s381
          %s383 = sshll.u32 %s376, 4
          %s384 = int_to_ptr.vmem [resolvable:$true] %s383
          %389 = dma.hbm_to_vmem [thread:$0]  %s382, 256, %s384, %s373, 128, 128, 8
        $region44: #{transformer_forward.21} parent=31 // pred_fallthru
          _
        // Predicated region
        $region45: #{transformer_forward.21} parent=31 // pred_check
          %p390 = pneg %p184
        $region46: #{transformer_forward.21} parent=31 // pred_check_branch
          %392 = sbr.rel (%p390) target = $region48
        $region47: #{transformer_forward.21} parent=31 // pred_region
          %s393 = sand.u32 %s28, 1
          %s394 = scalar_lea.sflag [#allocation13], %s393
          %s395 = sand.u32 %s174, 1
          %s396 = smul.addr %s395, 16
          %s397 = scalar_lea.vmem [#allocation12], %s396
          %s398 = smul.u32 2, %s36
          %s400 = ssub.s32 256, 256
          %401 = vsyncadd %s394, %s400
          %s402 = smul.addr %s35, 2
          %s403 = sadd.s32 %s398, %s402
          %s404 = smul.addr %s403, 128
          %s405 = scalar_lea.hbm %s5, %s404
          %s406 = sshll.u32 %s397, 4
          %s407 = int_to_ptr.vmem [resolvable:$true] %s406
          %412 = dma.hbm_to_vmem [thread:$0]  %s405, 256, %s407, %s394, 128, 128, 8
        $region48: #{transformer_forward.21} parent=31 // pred_fallthru
          _
      $region32: #{transformer_forward.21} parent=5 // pred_fallthru
        _
      %p413 = scmp.le.s32.totalorder 1, %s28
      %p414 = scmp.lt.s32.totalorder %s28, 3
      %p415 = pnand %p413, %p414
      %p416 = pneg %p415
      // Predicated region
      $region49: #{transformer_forward.21} parent=5 // pred_check
        _
      $region50: #{transformer_forward.21} parent=5 // pred_check_branch
        %418 = sbr.rel (%p415) target = $region52
      $region51: #{transformer_forward.21} parent=5 // pred_region
        %s419 = ssub.s32 %s28, 1
        %s420 = sand.u32 %s55, 1
        %s421 = scalar_lea.sflag [#allocation4], %s420
        %s422 = sand.u32 %s55, 1
        %s423 = smul.addr %s422, 16
        %s424 = scalar_lea.vmem [#allocation3], %s423
        // Predicated region
        $region53: #{transformer_forward.21} parent=51 // pred_check
          %p425 = pneg %p68
        $region54: #{transformer_forward.21} parent=51 // pred_check_branch
          %427 = sbr.rel (%p425) target = $region56
        $region55: #{transformer_forward.21} parent=51 // pred_region
          %428 = dma.done %s421, 256
        $region56: #{transformer_forward.21} parent=51 // pred_fallthru
          _
        %s429 = sand.u32 %s33, 1
        %s430 = scalar_lea.sflag [#allocation7], %s429
        %s431 = sand.u32 %s81, 1
        %s432 = smul.addr %s431, 16
        %s433 = scalar_lea.vmem [#allocation6], %s432
        // Predicated region
        $region57: #{transformer_forward.21} parent=51 // pred_check
          %p434 = pneg %p94
        $region58: #{transformer_forward.21} parent=51 // pred_check_branch
          %436 = sbr.rel (%p434) target = $region60
        $region59: #{transformer_forward.21} parent=51 // pred_region
          %437 = dma.done %s430, 256
        $region60: #{transformer_forward.21} parent=51 // pred_fallthru
          _
        %s438 = sand.u32 %s33, 1
        %s439 = scalar_lea.sflag [#allocation7], %s438
        %s440 = sand.u32 %s107, 1
        %s441 = smul.addr %s440, 16
        %s442 = scalar_lea.vmem [#allocation8], %s441
        // Predicated region
        $region61: #{transformer_forward.21} parent=51 // pred_check
          %p443 = pneg %p120
        $region62: #{transformer_forward.21} parent=51 // pred_check_branch
          %445 = sbr.rel (%p443) target = $region64
        $region63: #{transformer_forward.21} parent=51 // pred_region
          %446 = dma.done %s439, 256
        $region64: #{transformer_forward.21} parent=51 // pred_fallthru
          _
        // Predicated region
        $region65: #{transformer_forward.21} parent=51 // pred_check
          %p447 = pneg %p141
        $region66: #{transformer_forward.21} parent=51 // pred_check_branch
          %449 = sbr.rel (%p447) target = $region68
        $region67: #{transformer_forward.21} parent=51 // pred_region
          %450 = dma.done [#allocation10], 256
        $region68: #{transformer_forward.21} parent=51 // pred_fallthru
          _
        // Predicated region
        $region69: #{transformer_forward.21} parent=51 // pred_check
          %p451 = pneg %p162
        $region70: #{transformer_forward.21} parent=51 // pred_check_branch
          %453 = sbr.rel (%p451) target = $region72
        $region71: #{transformer_forward.21} parent=51 // pred_region
          %454 = dma.done [#allocation10], 16
        $region72: #{transformer_forward.21} parent=51 // pred_fallthru
          _
        %s455 = sand.u32 %s33, 1
        %s456 = scalar_lea.sflag [#allocation13], %s455
        %s457 = sand.u32 %s177, 1
        %s458 = smul.addr %s457, 16
        %s459 = scalar_lea.vmem [#allocation12], %s458
        // Predicated region
        $region73: #{transformer_forward.21} parent=51 // pred_check
          %p460 = pneg %p190
        $region74: #{transformer_forward.21} parent=51 // pred_check_branch
          %462 = sbr.rel (%p460) target = $region76
        $region75: #{transformer_forward.21} parent=51 // pred_region
          %463 = dma.done %s456, 256
        $region76: #{transformer_forward.21} parent=51 // pred_fallthru
          _
        // Predicated region
        $region77: #{transformer_forward.21} parent=51 // pred_check
          %p464 = pneg %p211
        $region78: #{transformer_forward.21} parent=51 // pred_check_branch
          %466 = sbr.rel (%p464) target = $region80
        $region79: #{transformer_forward.21} parent=51 // pred_region
          %467 = dma.done [#allocation13], 16
        $region80: #{transformer_forward.21} parent=51 // pred_fallthru
          _
        // Predicated region
        $region81: #{transformer_forward.21} parent=51 // pred_check
          %p468 = pneg %p232
        $region82: #{transformer_forward.21} parent=51 // pred_check_branch
          %470 = sbr.rel (%p468) target = $region84
        $region83: #{transformer_forward.21} parent=51 // pred_region
          %471 = dma.done [#allocation16], 16
        $region84: #{transformer_forward.21} parent=51 // pred_fallthru
          _
        %s472 = sand.u32 %s55, 1
        %s473 = scalar_lea.sflag [#allocation4], %s472
        %s474 = sand.u32 %s55, 1
        %s475 = smul.addr %s474, 16
        %s476 = scalar_lea.vmem [#allocation3], %s475
        %p477 = pneg %p68
        %p478 = pneg %p65
        %s479 = sand.u32 %s33, 1
        %s480 = scalar_lea.sflag [#allocation7], %s479
        %s481 = sand.u32 %s81, 1
        %s482 = smul.addr %s481, 16
        %s483 = scalar_lea.vmem [#allocation6], %s482
        %p484 = pneg %p94
        %p485 = pneg %p91
        %s486 = sand.u32 %s33, 1
        %s487 = scalar_lea.sflag [#allocation7], %s486
        %s488 = sand.u32 %s107, 1
        %s489 = smul.addr %s488, 16
        %s490 = scalar_lea.vmem [#allocation8], %s489
        %p491 = pneg %p120
        %p492 = pneg %p117
        %p493 = pneg %p141
        %p494 = pneg %p138
        %p495 = pneg %p162
        %p496 = pneg %p159
        %s497 = sand.u32 %s33, 1
        %s498 = scalar_lea.sflag [#allocation13], %s497
        %s499 = sand.u32 %s177, 1
        %s500 = smul.addr %s499, 16
        %s501 = scalar_lea.vmem [#allocation12], %s500
        %p502 = pneg %p190
        %p503 = pneg %p187
        %p504 = pneg %p211
        %p505 = pneg %p208
        %p506 = pneg %p232
        %p507 = pneg %p229
        %p508 = pneg %p260
        %p509 = pneg %p257
        %s510 = sand.u32 %s247, 1
        %s511 = scalar_lea.sflag [#allocation5], %s510
        %s512 = sand.u32 %s247, 1
        %s513 = smul.addr %s512, 16
        %s514 = scalar_lea.vmem [#allocation17], %s513
        %s515 = smul.u32 2, %s38
        %s516 = smul.u32 2, %s38
        %s517 = smul.u32 2, %s38
        %v519 = vld [vmem:[%s424] sm:$0xff]
        %v520 = vld [vmem:[%s424 + $0x8] sm:$0xff]
        %v521 = vpack.c.bf16 %v520, %v519
        %v522 = vld [vmem:[%s433] sm:$0xff]
        %v523 = vld [vmem:[%s433 + $0x8] sm:$0xff]
        %v524 = vpack.c.bf16 %v523, %v522
        %v525 = vld [vmem:[%s442] sm:$0xff]
        %v526 = vld [vmem:[%s442 + $0x8] sm:$0xff]
        %v527 = vpack.c.bf16 %v526, %v525
        %vm528 = vcmask 64512
        %v530 = vsel %vm528, %v521, 0
        %v533 = vsel %vm528, %v524, 0
        %535 = vmatprep.subr.bf16.mxu0 0
        %536 = vmatpush1.bf16.xpose.msra.mxu0 %v533
        %537 = vmatprep.subr.bf16.mxu0 0
        %538 = vmatpush1.bf16.xpose.msra.mxu0 0
        %539 = vmatprep.subr.bf16.mxu0 0
        %540 = vmatpush1.bf16.xpose.msra.mxu0 0
        %541 = vmatprep.subr.bf16.mxu0 0
        %542 = vmatpush1.bf16.xpose.msra.mxu0 0
        %543 = vmatprep.subr.bf16.mxu0 0
        %544 = vmatpush1.bf16.xpose.msra.mxu0 0
        %545 = vmatprep.subr.bf16.mxu0 0
        %546 = vmatpush1.bf16.xpose.msra.mxu0 0
        %547 = vmatprep.subr.bf16.mxu0 0
        %548 = vmatpush1.bf16.xpose.msra.mxu0 0
        %549 = vmatprep.subr.bf16.mxu0 0
        %550 = vmatpush1.bf16.xpose.msra.mxu0 0
        %551 = vmatprep.subr.bf16.mxu0 0
        %552 = vmatpush1.bf16.xpose.msra.mxu0 0
        %553 = vmatprep.subr.bf16.mxu0 0
        %554 = vmatpush1.bf16.xpose.msra.mxu0 0
        %555 = vmatprep.subr.bf16.mxu0 0
        %556 = vmatpush1.bf16.xpose.msra.mxu0 0
        %557 = vmatprep.subr.bf16.mxu0 0
        %558 = vmatpush1.bf16.xpose.msra.mxu0 0
        %559 = vmatprep.subr.bf16.mxu0 0
        %560 = vmatpush1.bf16.xpose.msra.mxu0 0
        %561 = vmatprep.subr.bf16.mxu0 0
        %562 = vmatpush1.bf16.xpose.msra.mxu0 0
        %563 = vmatprep.subr.bf16.mxu0 0
        %564 = vmatpush1.bf16.xpose.msra.mxu0 0
        %565 = vmatprep.subr.bf16.mxu0 0
        %566 = vmatpush1.bf16.xpose.msra.mxu0 0
        %567 = vmatprep.mubr.bf16.mxu0 0
        %568 = vmatmul.mubr.bf16.gmra.mrb[0].mxu0 %v530
        %v569 = vpop.f32.mrb[0].mxu0
        %v570 = vadd.f32 0.0, %v569
        %v571 = vpop.f32.mrb[0].mxu0
        %v572 = vpop.f32.mrb[0].mxu0
        %v573 = vadd.f32 0.0, %v572
        %v574 = vpop.f32.mrb[0].mxu0
        %575 = vdwg.mxu0
        %vm576 = vcmask 130048
        %v577 = vsel %vm576, %v570, -inf
        %578 = vmax.xlane.f32.xlu0 %v577
        %v579 = vpop.xlane.xlu0 %578
        %v580 = vsel %vm576, %v573, -inf
        %581 = vmax.xlane.f32.xlu0 %v580
        %v582 = vpop.xlane.xlu0 %581
        %v583 = vsub.f32 %v570, %v579
        %v584 = vsub.f32 %v573, %v582
        %v585 = vmul.f32 %v583, 1.442695
        %v586 = vpow.pop %v585
        %v587 = vmul.f32 %v584, 1.442695
        %v588 = vpow.pop %v587
        %v589 = vsel %vm576, %v586, 0.0
        %590 = vadd.xlane.f32.xlu0 %v589
        %v591 = vpop.xlane.xlu0 %590
        %v592 = vsel %vm576, %v588, 0.0
        %593 = vadd.xlane.f32.xlu0 %v592
        %v594 = vpop.xlane.xlu0 %593
        %v595 = vpack.c.bf16 %v588, %v586
        %v597 = vsel %vm576, %v595, 0
        %599 = vmatprep.subr.bf16.mxu0 0
        %600 = vmatpush1.bf16.msra.mxu0 %v527
        %601 = vmatprep.subr.bf16.mxu0 0
        %602 = vmatpush1.bf16.msra.mxu0 0
        %603 = vmatprep.subr.bf16.mxu0 0
        %604 = vmatpush1.bf16.msra.mxu0 0
        %605 = vmatprep.subr.bf16.mxu0 0
        %606 = vmatpush1.bf16.msra.mxu0 0
        %607 = vmatprep.subr.bf16.mxu0 0
        %608 = vmatpush1.bf16.msra.mxu0 0
        %609 = vmatprep.subr.bf16.mxu0 0
        %610 = vmatpush1.bf16.msra.mxu0 0
        %611 = vmatprep.subr.bf16.mxu0 0
        %612 = vmatpush1.bf16.msra.mxu0 0
        %613 = vmatprep.subr.bf16.mxu0 0
        %614 = vmatpush1.bf16.msra.mxu0 0
        %615 = vmatprep.subr.bf16.mxu0 0
        %616 = vmatpush1.bf16.msra.mxu0 0
        %617 = vmatprep.subr.bf16.mxu0 0
        %618 = vmatpush1.bf16.msra.mxu0 0
        %619 = vmatprep.subr.bf16.mxu0 0
        %620 = vmatpush1.bf16.msra.mxu0 0
        %621 = vmatprep.subr.bf16.mxu0 0
        %622 = vmatpush1.bf16.msra.mxu0 0
        %623 = vmatprep.subr.bf16.mxu0 0
        %624 = vmatpush1.bf16.msra.mxu0 0
        %625 = vmatprep.subr.bf16.mxu0 0
        %626 = vmatpush1.bf16.msra.mxu0 0
        %627 = vmatprep.subr.bf16.mxu0 0
        %628 = vmatpush1.bf16.msra.mxu0 0
        %629 = vmatprep.subr.bf16.mxu0 0
        %630 = vmatpush1.bf16.msra.mxu0 0
        %631 = vmatprep.mubr.bf16.mxu0 0
        %632 = vmatmul.mubr.bf16.gmra.mrb[0].mxu0 %v597
        %v633 = vpop.f32.mrb[0].mxu0
        %v634 = vadd.f32 0.0, %v633
        %v635 = vpop.f32.mrb[0].mxu0
        %v636 = vpop.f32.mrb[0].mxu0
        %v637 = vadd.f32 0.0, %v636
        %v638 = vpop.f32.mrb[0].mxu0
        %639 = vdwg.mxu0
        %v640 = vrcp.pop %v591
        %v641 = vrcp.pop %v594
        %v642 = vmul.f32 %v634, %v640
        %v643 = vmul.f32 %v637, %v641
        %644 = vst.msk [vmem:[#allocation2] sm:$0xff] %vm528, %v642
        %645 = vst.msk [vmem:[#allocation2 + $0x8] sm:$0xff] %vm528, %v643
        %v646 = vld [vmem:[%s424] sm:$0xff]
        %v647 = vld [vmem:[%s424 + $0x8] sm:$0xff]
        %v648 = vpack.c.bf16 %v647, %v646
        %v649 = vld [vmem:[%s433] sm:$0xff]
        %v650 = vld [vmem:[%s433 + $0x8] sm:$0xff]
        %v651 = vpack.c.bf16 %v650, %v649
        %v652 = vld [vmem:[%s442] sm:$0xff]
        %v653 = vld [vmem:[%s442 + $0x8] sm:$0xff]
        %v654 = vpack.c.bf16 %v653, %v652
        %656 = vrot.lane.b32.xlu0 %v648, 120
        %v657 = vpop.permute.xlu0 %656
        %659 = vrot.lane.b32.xlu0 %v651, 120
        %v660 = vpop.permute.xlu0 %659
        %v662 = vsel %vm528, %v657, 0
        %v665 = vsel %vm528, %v660, 0
        %667 = vmatprep.subr.bf16.mxu0 0
        %668 = vmatpush1.bf16.xpose.msra.mxu0 %v665
        %669 = vmatprep.subr.bf16.mxu0 0
        %670 = vmatpush1.bf16.xpose.msra.mxu0 0
        %671 = vmatprep.subr.bf16.mxu0 0
        %672 = vmatpush1.bf16.xpose.msra.mxu0 0
        %673 = vmatprep.subr.bf16.mxu0 0
        %674 = vmatpush1.bf16.xpose.msra.mxu0 0
        %675 = vmatprep.subr.bf16.mxu0 0
        %676 = vmatpush1.bf16.xpose.msra.mxu0 0
        %677 = vmatprep.subr.bf16.mxu0 0
        %678 = vmatpush1.bf16.xpose.msra.mxu0 0
        %679 = vmatprep.subr.bf16.mxu0 0
        %680 = vmatpush1.bf16.xpose.msra.mxu0 0
        %681 = vmatprep.subr.bf16.mxu0 0
        %682 = vmatpush1.bf16.xpose.msra.mxu0 0
        %683 = vmatprep.subr.bf16.mxu0 0
        %684 = vmatpush1.bf16.xpose.msra.mxu0 0
        %685 = vmatprep.subr.bf16.mxu0 0
        %686 = vmatpush1.bf16.xpose.msra.mxu0 0
        %687 = vmatprep.subr.bf16.mxu0 0
        %688 = vmatpush1.bf16.xpose.msra.mxu0 0
        %689 = vmatprep.subr.bf16.mxu0 0
        %690 = vmatpush1.bf16.xpose.msra.mxu0 0
        %691 = vmatprep.subr.bf16.mxu0 0
        %692 = vmatpush1.bf16.xpose.msra.mxu0 0
        %693 = vmatprep.subr.bf16.mxu0 0
        %694 = vmatpush1.bf16.xpose.msra.mxu0 0
        %695 = vmatprep.subr.bf16.mxu0 0
        %696 = vmatpush1.bf16.xpose.msra.mxu0 0
        %697 = vmatprep.subr.bf16.mxu0 0
        %698 = vmatpush1.bf16.xpose.msra.mxu0 0
        %699 = vmatprep.mubr.bf16.mxu0 0
        %700 = vmatmul.mubr.bf16.gmra.mrb[0].mxu0 %v662
        %v701 = vpop.f32.mrb[0].mxu0
        %v702 = vadd.f32 0.0, %v701
        %v703 = vpop.f32.mrb[0].mxu0
        %v704 = vpop.f32.mrb[0].mxu0
        %v705 = vadd.f32 0.0, %v704
        %v706 = vpop.f32.mrb[0].mxu0
        %707 = vdwg.mxu0
        %v708 = vsel %vm576, %v702, -inf
        %709 = vmax.xlane.f32.xlu0 %v708
        %v710 = vpop.xlane.xlu0 %709
        %v711 = vsel %vm576, %v705, -inf
        %712 = vmax.xlane.f32.xlu0 %v711
        %v713 = vpop.xlane.xlu0 %712
        %v714 = vsub.f32 %v702, %v710
        %v715 = vsub.f32 %v705, %v713
        %v716 = vmul.f32 %v714, 1.442695
        %v717 = vpow.pop %v716
        %v718 = vmul.f32 %v715, 1.442695
        %v719 = vpow.pop %v718
        %v720 = vsel %vm576, %v717, 0.0
        %721 = vadd.xlane.f32.xlu0 %v720
        %v722 = vpop.xlane.xlu0 %721
        %v723 = vsel %vm576, %v719, 0.0
        %724 = vadd.xlane.f32.xlu0 %v723
        %v725 = vpop.xlane.xlu0 %724
        %v726 = vpack.c.bf16 %v719, %v717
        %728 = vrot.lane.b32.xlu0 %v654, 120
        %v729 = vpop.permute.xlu0 %728
        %v732 = vsel %vm576, %v726, 0
        %734 = vmatprep.subr.bf16.mxu0 0
        %735 = vmatpush1.bf16.msra.mxu0 %v729
        %736 = vmatprep.subr.bf16.mxu0 0
        %737 = vmatpush1.bf16.msra.mxu0 0
        %738 = vmatprep.subr.bf16.mxu0 0
        %739 = vmatpush1.bf16.msra.mxu0 0
        %740 = vmatprep.subr.bf16.mxu0 0
        %741 = vmatpush1.bf16.msra.mxu0 0
        %742 = vmatprep.subr.bf16.mxu0 0
        %743 = vmatpush1.bf16.msra.mxu0 0
        %744 = vmatprep.subr.bf16.mxu0 0
        %745 = vmatpush1.bf16.msra.mxu0 0
        %746 = vmatprep.subr.bf16.mxu0 0
        %747 = vmatpush1.bf16.msra.mxu0 0
        %748 = vmatprep.subr.bf16.mxu0 0
        %749 = vmatpush1.bf16.msra.mxu0 0
        %750 = vmatprep.subr.bf16.mxu0 0
        %751 = vmatpush1.bf16.msra.mxu0 0
        %752 = vmatprep.subr.bf16.mxu0 0
        %753 = vmatpush1.bf16.msra.mxu0 0
        %754 = vmatprep.subr.bf16.mxu0 0
        %755 = vmatpush1.bf16.msra.mxu0 0
        %756 = vmatprep.subr.bf16.mxu0 0
        %757 = vmatpush1.bf16.msra.mxu0 0
        %758 = vmatprep.subr.bf16.mxu0 0
        %759 = vmatpush1.bf16.msra.mxu0 0
        %760 = vmatprep.subr.bf16.mxu0 0
        %761 = vmatpush1.bf16.msra.mxu0 0
        %762 = vmatprep.subr.bf16.mxu0 0
        %763 = vmatpush1.bf16.msra.mxu0 0
        %764 = vmatprep.subr.bf16.mxu0 0
        %765 = vmatpush1.bf16.msra.mxu0 0
        %766 = vmatprep.mubr.bf16.mxu0 0
        %767 = vmatmul.mubr.bf16.gmra.mrb[0].mxu0 %v732
        %v768 = vpop.f32.mrb[0].mxu0
        %v769 = vadd.f32 0.0, %v768
        %v770 = vpop.f32.mrb[0].mxu0
        %v771 = vpop.f32.mrb[0].mxu0
        %v772 = vadd.f32 0.0, %v771
        %v773 = vpop.f32.mrb[0].mxu0
        %774 = vdwg.mxu0
        %v775 = vrcp.pop %v722
        %v776 = vrcp.pop %v725
        %v777 = vmul.f32 %v769, %v775
        %v778 = vmul.f32 %v772, %v776
        %781 = vrot.lane.b32.xlu0 %v777, 8
        %v782 = vpop.permute.xlu0 %781
        %783 = vrot.lane.b32.xlu0 %v778, 8
        %v784 = vpop.permute.xlu0 %783
        %vm787 = vcmask 130112
        %788 = vst.msk [vmem:[#allocation2] sm:$0xff] %vm787, %v782
        %789 = vst.msk [vmem:[#allocation2 + $0x8] sm:$0xff] %vm787, %v784
        %v790 = vld [vmem:[%s424] sm:$0xff]
        %v791 = vld [vmem:[%s424 + $0x8] sm:$0xff]
        %v792 = vpack.c.bf16 %v791, %v790
        %v793 = vld [vmem:[%s433] sm:$0xff]
        %v794 = vld [vmem:[%s433 + $0x8] sm:$0xff]
        %v795 = vpack.c.bf16 %v794, %v793
        %v796 = vld [vmem:[%s442] sm:$0xff]
        %v797 = vld [vmem:[%s442 + $0x8] sm:$0xff]
        %v798 = vpack.c.bf16 %v797, %v796
        %800 = vrot.lane.b32.xlu0 %v792, 112
        %v801 = vpop.permute.xlu0 %800
        %803 = vrot.lane.b32.xlu0 %v795, 112
        %v804 = vpop.permute.xlu0 %803
        %v806 = vsel %vm528, %v801, 0
        %v809 = vsel %vm528, %v804, 0
        %811 = vmatprep.subr.bf16.mxu0 0
        %812 = vmatpush1.bf16.xpose.msra.mxu0 %v809
        %813 = vmatprep.subr.bf16.mxu0 0
        %814 = vmatpush1.bf16.xpose.msra.mxu0 0
        %815 = vmatprep.subr.bf16.mxu0 0
        %816 = vmatpush1.bf16.xpose.msra.mxu0 0
        %817 = vmatprep.subr.bf16.mxu0 0
        %818 = vmatpush1.bf16.xpose.msra.mxu0 0
        %819 = vmatprep.subr.bf16.mxu0 0
        %820 = vmatpush1.bf16.xpose.msra.mxu0 0
        %821 = vmatprep.subr.bf16.mxu0 0
        %822 = vmatpush1.bf16.xpose.msra.mxu0 0
        %823 = vmatprep.subr.bf16.mxu0 0
        %824 = vmatpush1.bf16.xpose.msra.mxu0 0
        %825 = vmatprep.subr.bf16.mxu0 0
        %826 = vmatpush1.bf16.xpose.msra.mxu0 0
        %827 = vmatprep.subr.bf16.mxu0 0
        %828 = vmatpush1.bf16.xpose.msra.mxu0 0
        %829 = vmatprep.subr.bf16.mxu0 0
        %830 = vmatpush1.bf16.xpose.msra.mxu0 0
        %831 = vmatprep.subr.bf16.mxu0 0
        %832 = vmatpush1.bf16.xpose.msra.mxu0 0
        %833 = vmatprep.subr.bf16.mxu0 0
        %834 = vmatpush1.bf16.xpose.msra.mxu0 0
        %835 = vmatprep.subr.bf16.mxu0 0
        %836 = vmatpush1.bf16.xpose.msra.mxu0 0
        %837 = vmatprep.subr.bf16.mxu0 0
        %838 = vmatpush1.bf16.xpose.msra.mxu0 0
        %839 = vmatprep.subr.bf16.mxu0 0
        %840 = vmatpush1.bf16.xpose.msra.mxu0 0
        %841 = vmatprep.subr.bf16.mxu0 0
        %842 = vmatpush1.bf16.xpose.msra.mxu0 0
        %843 = vmatprep.mubr.bf16.mxu0 0
        %844 = vmatmul.mubr.bf16.gmra.mrb[0].mxu0 %v806
        %v845 = vpop.f32.mrb[0].mxu0
        %v846 = vadd.f32 0.0, %v845
        %v847 = vpop.f32.mrb[0].mxu0
        %v848 = vpop.f32.mrb[0].mxu0
        %v849 = vadd.f32 0.0, %v848
        %v850 = vpop.f32.mrb[0].mxu0
        %851 = vdwg.mxu0
        %v852 = vsel %vm576, %v846, -inf
        %853 = vmax.xlane.f32.xlu0 %v852
        %v854 = vpop.xlane.xlu0 %853
        %v855 = vsel %vm576, %v849, -inf
        %856 = vmax.xlane.f32.xlu0 %v855
        %v857 = vpop.xlane.xlu0 %856
        %v858 = vsub.f32 %v846, %v854
        %v859 = vsub.f32 %v849, %v857
        %v860 = vmul.f32 %v858, 1.442695
        %v861 = vpow.pop %v860
        %v862 = vmul.f32 %v859, 1.442695
        %v863 = vpow.pop %v862
        %v864 = vsel %vm576, %v861, 0.0
        %865 = vadd.xlane.f32.xlu0 %v864
        %v866 = vpop.xlane.xlu0 %865
        %v867 = vsel %vm576, %v863, 0.0
        %868 = vadd.xlane.f32.xlu0 %v867
        %v869 = vpop.xlane.xlu0 %868
        %v870 = vpack.c.bf16 %v863, %v861
        %872 = vrot.lane.b32.xlu0 %v798, 112
        %v873 = vpop.permute.xlu0 %872
        %v876 = vsel %vm576, %v870, 0
        %878 = vmatprep.subr.bf16.mxu0 0
        %879 = vmatpush1.bf16.msra.mxu0 %v873
        %880 = vmatprep.subr.bf16.mxu0 0
        %881 = vmatpush1.bf16.msra.mxu0 0
        %882 = vmatprep.subr.bf16.mxu0 0
        %883 = vmatpush1.bf16.msra.mxu0 0
        %884 = vmatprep.subr.bf16.mxu0 0
        %885 = vmatpush1.bf16.msra.mxu0 0
        %886 = vmatprep.subr.bf16.mxu0 0
        %887 = vmatpush1.bf16.msra.mxu0 0
        %888 = vmatprep.subr.bf16.mxu0 0
        %889 = vmatpush1.bf16.msra.mxu0 0
        %890 = vmatprep.subr.bf16.mxu0 0
        %891 = vmatpush1.bf16.msra.mxu0 0
        %892 = vmatprep.subr.bf16.mxu0 0
        %893 = vmatpush1.bf16.msra.mxu0 0
        %894 = vmatprep.subr.bf16.mxu0 0
        %895 = vmatpush1.bf16.msra.mxu0 0
        %896 = vmatprep.subr.bf16.mxu0 0
        %897 = vmatpush1.bf16.msra.mxu0 0
        %898 = vmatprep.subr.bf16.mxu0 0
        %899 = vmatpush1.bf16.msra.mxu0 0
        %900 = vmatprep.subr.bf16.mxu0 0
        %901 = vmatpush1.bf16.msra.mxu0 0
        %902 = vmatprep.subr.bf16.mxu0 0
        %903 = vmatpush1.bf16.msra.mxu0 0
        %904 = vmatprep.subr.bf16.mxu0 0
        %905 = vmatpush1.bf16.msra.mxu0 0
        %906 = vmatprep.subr.bf16.mxu0 0
        %907 = vmatpush1.bf16.msra.mxu0 0
        %908 = vmatprep.subr.bf16.mxu0 0
        %909 = vmatpush1.bf16.msra.mxu0 0
        %910 = vmatprep.mubr.bf16.mxu0 0
        %911 = vmatmul.mubr.bf16.gmra.mrb[0].mxu0 %v876
        %v912 = vpop.f32.mrb[0].mxu0
        %v913 = vadd.f32 0.0, %v912
        %v914 = vpop.f32.mrb[0].mxu0
        %v915 = vpop.f32.mrb[0].mxu0
        %v916 = vadd.f32 0.0, %v915
        %v917 = vpop.f32.mrb[0].mxu0
        %918 = vdwg.mxu0
        %v919 = vrcp.pop %v866
        %v920 = vrcp.pop %v869
        %v921 = vmul.f32 %v913, %v919
        %v922 = vmul.f32 %v916, %v920
        %925 = vrot.lane.b32.xlu0 %v921, 16
        %v926 = vpop.permute.xlu0 %925
        %927 = vrot.lane.b32.xlu0 %v922, 16
        %v928 = vpop.permute.xlu0 %927
        %vm931 = vcmask 195712
        %932 = vst.msk [vmem:[#allocation2] sm:$0xff] %vm931, %v926
        %933 = vst.msk [vmem:[#allocation2 + $0x8] sm:$0xff] %vm931, %v928
        %v934 = vld [vmem:[%s424] sm:$0xff]
        %v935 = vld [vmem:[%s424 + $0x8] sm:$0xff]
        %v936 = vpack.c.bf16 %v935, %v934
        %v937 = vld [vmem:[%s433] sm:$0xff]
        %v938 = vld [vmem:[%s433 + $0x8] sm:$0xff]
        %v939 = vpack.c.bf16 %v938, %v937
        %v940 = vld [vmem:[%s442] sm:$0xff]
        %v941 = vld [vmem:[%s442 + $0x8] sm:$0xff]
        %v942 = vpack.c.bf16 %v941, %v940
        %944 = vrot.lane.b32.xlu0 %v936, 104
        %v945 = vpop.permute.xlu0 %944
        %947 = vrot.lane.b32.xlu0 %v939, 104
        %v948 = vpop.permute.xlu0 %947
        %v950 = vsel %vm528, %v945, 0
        %v953 = vsel %vm528, %v948, 0
        %955 = vmatprep.subr.bf16.mxu0 0
        %956 = vmatpush1.bf16.xpose.msra.mxu0 %v953
        %957 = vmatprep.subr.bf16.mxu0 0
        %958 = vmatpush1.bf16.xpose.msra.mxu0 0
        %959 = vmatprep.subr.bf16.mxu0 0
        %960 = vmatpush1.bf16.xpose.msra.mxu0 0
        %961 = vmatprep.subr.bf16.mxu0 0
        %962 = vmatpush1.bf16.xpose.msra.mxu0 0
        %963 = vmatprep.subr.bf16.mxu0 0
        %964 = vmatpush1.bf16.xpose.msra.mxu0 0
        %965 = vmatprep.subr.bf16.mxu0 0
        %966 = vmatpush1.bf16.xpose.msra.mxu0 0
        %967 = vmatprep.subr.bf16.mxu0 0
        %968 = vmatpush1.bf16.xpose.msra.mxu0 0
        %969 = vmatprep.subr.bf16.mxu0 0
        %970 = vmatpush1.bf16.xpose.msra.mxu0 0
        %971 = vmatprep.subr.bf16.mxu0 0
        %972 = vmatpush1.bf16.xpose.msra.mxu0 0
        %973 = vmatprep.subr.bf16.mxu0 0
        %974 = vmatpush1.bf16.xpose.msra.mxu0 0
        %975 = vmatprep.subr.bf16.mxu0 0
        %976 = vmatpush1.bf16.xpose.msra.mxu0 0
        %977 = vmatprep.subr.bf16.mxu0 0
        %978 = vmatpush1.bf16.xpose.msra.mxu0 0
        %979 = vmatprep.subr.bf16.mxu0 0
        %980 = vmatpush1.bf16.xpose.msra.mxu0 0
        %981 = vmatprep.subr.bf16.mxu0 0
        %982 = vmatpush1.bf16.xpose.msra.mxu0 0
        %983 = vmatprep.subr.bf16.mxu0 0
        %984 = vmatpush1.bf16.xpose.msra.mxu0 0
        %985 = vmatprep.subr.bf16.mxu0 0
        %986 = vmatpush1.bf16.xpose.msra.mxu0 0
        %987 = vmatprep.mubr.bf16.mxu0 0
        %988 = vmatmul.mubr.bf16.gmra.mrb[0].mxu0 %v950
        %v989 = vpop.f32.mrb[0].mxu0
        %v990 = vadd.f32 0.0, %v989
        %v991 = vpop.f32.mrb[0].mxu0
        %v992 = vpop.f32.mrb[0].mxu0
        %v993 = vadd.f32 0.0, %v992
        %v994 = vpop.f32.mrb[0].mxu0
        %995 = vdwg.mxu0
        %v996 = vsel %vm576, %v990, -inf
        %997 = vmax.xlane.f32.xlu0 %v996
        %v998 = vpop.xlane.xlu0 %997
        %v999 = vsel %vm576, %v993, -inf
        %1000 = vmax.xlane.f32.xlu0 %v999
        %v1001 = vpop.xlane.xlu0 %1000
        %v1002 = vsub.f32 %v990, %v998
        %v1003 = vsub.f32 %v993, %v1001
        %v1004 = vmul.f32 %v1002, 1.442695
        %v1005 = vpow.pop %v1004
        %v1006 = vmul.f32 %v1003, 1.442695
        %v1007 = vpow.pop %v1006
        %v1008 = vsel %vm576, %v1005, 0.0
        %1009 = vadd.xlane.f32.xlu0 %v1008
        %v1010 = vpop.xlane.xlu0 %1009
        %v1011 = vsel %vm576, %v1007, 0.0
        %1012 = vadd.xlane.f32.xlu0 %v1011
        %v1013 = vpop.xlane.xlu0 %1012
        %v1014 = vpack.c.bf16 %v1007, %v1005
        %1016 = vrot.lane.b32.xlu0 %v942, 104
        %v1017 = vpop.permute.xlu0 %1016
        %v1020 = vsel %vm576, %v1014, 0
        %1022 = vmatprep.subr.bf16.mxu0 0
        %1023 = vmatpush1.bf16.msra.mxu0 %v1017
        %1024 = vmatprep.subr.bf16.mxu0 0
        %1025 = vmatpush1.bf16.msra.mxu0 0
        %1026 = vmatprep.subr.bf16.mxu0 0
        %1027 = vmatpush1.bf16.msra.mxu0 0
        %1028 = vmatprep.subr.bf16.mxu0 0
        %1029 = vmatpush1.bf16.msra.mxu0 0
        %1030 = vmatprep.subr.bf16.mxu0 0
        %1031 = vmatpush1.bf16.msra.mxu0 0
        %1032 = vmatprep.subr.bf16.mxu0 0
        %1033 = vmatpush1.bf16.msra.mxu0 0
        %1034 = vmatprep.subr.bf16.mxu0 0
        %1035 = vmatpush1.bf16.msra.mxu0 0
        %1036 = vmatprep.subr.bf16.mxu0 0
        %1037 = vmatpush1.bf16.msra.mxu0 0
        %1038 = vmatprep.subr.bf16.mxu0 0
        %1039 = vmatpush1.bf16.msra.mxu0 0
        %1040 = vmatprep.subr.bf16.mxu0 0
        %1041 = vmatpush1.bf16.msra.mxu0 0
        %1042 = vmatprep.subr.bf16.mxu0 0
        %1043 = vmatpush1.bf16.msra.mxu0 0
        %1044 = vmatprep.subr.bf16.mxu0 0
        %1045 = vmatpush1.bf16.msra.mxu0 0
        %1046 = vmatprep.subr.bf16.mxu0 0
        %1047 = vmatpush1.bf16.msra.mxu0 0
        %1048 = vmatprep.subr.bf16.mxu0 0
        %1049 = vmatpush1.bf16.msra.mxu0 0
        %1050 = vmatprep.subr.bf16.mxu0 0
        %1051 = vmatpush1.bf16.msra.mxu0 0
        %1052 = vmatprep.subr.bf16.mxu0 0
        %1053 = vmatpush1.bf16.msra.mxu0 0
        %1054 = vmatprep.mubr.bf16.mxu0 0
        %1055 = vmatmul.mubr.bf16.gmra.mrb[0].mxu0 %v1020
        %v1056 = vpop.f32.mrb[0].mxu0
        %v1057 = vadd.f32 0.0, %v1056
        %v1058 = vpop.f32.mrb[0].mxu0
        %v1059 = vpop.f32.mrb[0].mxu0
        %v1060 = vadd.f32 0.0, %v1059
        %v1061 = vpop.f32.mrb[0].mxu0
        %1062 = vdwg.mxu0
        %v1063 = vrcp.pop %v1010
        %v1064 = vrcp.pop %v1013
        %v1065 = vmul.f32 %v1057, %v1063
        %v1066 = vmul.f32 %v1060, %v1064
        %1069 = vrot.lane.b32.xlu0 %v1065, 24
        %v1070 = vpop.permute.xlu0 %1069
        %1071 = vrot.lane.b32.xlu0 %v1066, 24
        %v1072 = vpop.permute.xlu0 %1071
        %vm1075 = vcmask 261312
        %1076 = vst.msk [vmem:[#allocation2] sm:$0xff] %vm1075, %v1070
        %1077 = vst.msk [vmem:[#allocation2 + $0x8] sm:$0xff] %vm1075, %v1072
        %v1078 = vld [vmem:[#allocation2] sm:$0xff]
        %v1079 = vld [vmem:[#allocation2 + $0x8] sm:$0xff]
        %v1080 = vpack.c.bf16 %v1079, %v1078
        %v1081 = vld [vmem:[#allocation9] sm:$0xf]
        %v1082 = vld [vmem:[#allocation9 + $0x4] sm:$0xf]
        %v1083 = vld [vmem:[#allocation9 + $0x8] sm:$0xf]
        %v1084 = vld [vmem:[#allocation9 + $0xc] sm:$0xf]
        %v1085 = vld [vmem:[#allocation11] sm:$0x1]
        %v1087 = vlaneseq
        %v1088 = vshrl.u32 %v1087, 7
        %v1089 = vsub.s32 0, %v1088
        %v1090 = vrot.slane %v1085, %v1089
        %v1096 = vunpack.c.l.b16 %v1081
        %v1097 = vunpack.c.l.b16 %v1082
        %v1098 = vunpack.c.l.b16 %v1083
        %v1099 = vunpack.c.l.b16 %v1084
        %v1100 = vpack.c.b16 %v1097, %v1096
        %v1101 = vpack.c.b16 %v1099, %v1098
        %vm1104 = vcmask 261120
        %v1106 = vsel %vm1104, %v1080, 0
        %1108 = vmatprep.subr.bf16.mxu0 0
        %1109 = vmatpush1.bf16.msra.mxu0 %v1100
        %1110 = vmatprep.subr.bf16.mxu0 0
        %1111 = vmatpush1.bf16.msra.mxu0 %v1101
        %1112 = vmatprep.subr.bf16.mxu0 0
        %1113 = vmatpush1.bf16.msra.mxu0 0
        %1114 = vmatprep.subr.bf16.mxu0 0
        %1115 = vmatpush1.bf16.msra.mxu0 0
        %1116 = vmatprep.subr.bf16.mxu0 0
        %1117 = vmatpush1.bf16.msra.mxu0 0
        %1118 = vmatprep.subr.bf16.mxu0 0
        %1119 = vmatpush1.bf16.msra.mxu0 0
        %1120 = vmatprep.subr.bf16.mxu0 0
        %1121 = vmatpush1.bf16.msra.mxu0 0
        %1122 = vmatprep.subr.bf16.mxu0 0
        %1123 = vmatpush1.bf16.msra.mxu0 0
        %1124 = vmatprep.subr.bf16.mxu0 0
        %1125 = vmatpush1.bf16.msra.mxu0 0
        %1126 = vmatprep.subr.bf16.mxu0 0
        %1127 = vmatpush1.bf16.msra.mxu0 0
        %1128 = vmatprep.subr.bf16.mxu0 0
        %1129 = vmatpush1.bf16.msra.mxu0 0
        %1130 = vmatprep.subr.bf16.mxu0 0
        %1131 = vmatpush1.bf16.msra.mxu0 0
        %1132 = vmatprep.subr.bf16.mxu0 0
        %1133 = vmatpush1.bf16.msra.mxu0 0
        %1134 = vmatprep.subr.bf16.mxu0 0
        %1135 = vmatpush1.bf16.msra.mxu0 0
        %1136 = vmatprep.subr.bf16.mxu0 0
        %1137 = vmatpush1.bf16.msra.mxu0 0
        %1138 = vmatprep.subr.bf16.mxu0 0
        %1139 = vmatpush1.bf16.msra.mxu0 0
        %1140 = vmatprep.mubr.bf16.mxu0 0
        %1141 = vmatmul.mubr.bf16.gmra.mrb[0].mxu0 %v1106
        %v1142 = vpop.f32.mrb[0].mxu0
        %v1143 = vadd.f32 %v1090, %v1142
        %v1144 = vpop.f32.mrb[0].mxu0
        %v1145 = vpop.f32.mrb[0].mxu0
        %v1146 = vadd.f32 %v1090, %v1145
        %v1147 = vpop.f32.mrb[0].mxu0
        %1148 = vdwg.mxu0
        %v1149 = vld [vmem:[%s459] sm:$0xff]
        %v1150 = vld [vmem:[%s459 + $0x8] sm:$0xff]
        %v1151 = vadd.f32 %v1143, %v1149
        %v1152 = vadd.f32 %v1146, %v1150
        %v1153 = vsel %vm1104, %v1151, 0.0
        %1154 = vadd.xlane.f32.xlu0 %v1153
        %v1155 = vpop.xlane.xlu0 %1154
        %v1156 = vsel %vm1104, %v1152, 0.0
        %1157 = vadd.xlane.f32.xlu0 %v1156
        %v1158 = vpop.xlane.xlu0 %1157
        %v1159 = vrcp.pop 32.0
        %v1160 = vmul.f32 %v1155, %v1159
        %v1161 = vmul.f32 %v1158, %v1159
        %v1162 = vsub.f32 %v1151, %v1160
        %v1163 = vsub.f32 %v1152, %v1161
        %v1164 = vmul.f32 %v1162, %v1162
        %v1165 = vmul.f32 %v1163, %v1163
        %v1166 = vsel %vm1104, %v1164, 0.0
        %1167 = vadd.xlane.f32.xlu0 %v1166
        %v1168 = vpop.xlane.xlu0 %1167
        %v1169 = vsel %vm1104, %v1165, 0.0
        %1170 = vadd.xlane.f32.xlu0 %v1169
        %v1171 = vpop.xlane.xlu0 %1170
        %v1172 = vmul.f32 %v1168, %v1159
        %v1173 = vmul.f32 %v1171, %v1159
        %v1174 = vadd.f32 %v1172, 1e-05
        %v1175 = vadd.f32 %v1173, 1e-05
        %v1176 = vrsqrt.pop %v1174
        %v1177 = vrsqrt.pop %v1175
        %v1178 = vmul.f32 %v1162, %v1176
        %v1179 = vmul.f32 %v1163, %v1177
        %v1180 = vld [vmem:[#allocation14] sm:$0x1]
        %v1182 = vlaneseq
        %v1183 = vshrl.u32 %v1182, 7
        %v1184 = vsub.s32 0, %v1183
        %v1185 = vrot.slane %v1180, %v1184
        %v1187 = vmul.f32 %v1178, %v1185
        %v1188 = vmul.f32 %v1179, %v1185
        %v1189 = vld [vmem:[#allocation15] sm:$0x1]
        %v1191 = vlaneseq
        %v1192 = vshrl.u32 %v1191, 7
        %v1193 = vsub.s32 0, %v1192
        %v1194 = vrot.slane %v1189, %v1193
        %v1196 = vadd.f32 %v1187, %v1194
        %v1197 = vadd.f32 %v1188, %v1194
        %1198 = vst.msk [vmem:[%s514] sm:$0xff] %vm1104, %v1196
        %1199 = vst.msk [vmem:[%s514 + $0x8] sm:$0xff] %vm1104, %v1197
        %s1200 = sand.u32 %s247, 1
        %s1201 = scalar_lea.sflag [#allocation5], %s1200
        %s1202 = sand.u32 %s247, 1
        %s1203 = smul.addr %s1202, 16
        %s1204 = scalar_lea.vmem [#allocation17], %s1203
        // Predicated region
        $region85: #{transformer_forward.21} parent=51 // pred_check
          %p1205 = pneg %p257
        $region86: #{transformer_forward.21} parent=51 // pred_check_branch
          %1207 = sbr.rel (%p1205) target = $region88
        $region87: #{transformer_forward.21} parent=51 // pred_region
          %s1208 = smul.u32 2, %s38
          %s1210 = ssub.s32 256, 256
          %1211 = vsyncadd %s1201, %s1210
          %s1212 = smul.addr %s37, 2
          %s1213 = sadd.s32 %s1208, %s1212
          %s1214 = smul.addr %s1213, 128
          %s1215 = scalar_lea.hbm %s8, %s1214
          %s1216 = sshll.u32 %s1204, 4
          %s1217 = int_to_ptr.vmem [resolvable:$true] %s1216
          %1222 = dma.vmem_to_hbm [thread:$0]  %s1217, 256, %s1215, %s1201, 128, 128, 8
        $region88: #{transformer_forward.21} parent=51 // pred_fallthru
          _
      $region52: #{transformer_forward.21} parent=5 // pred_fallthru
        _
      %p1223 = scmp.le.s32.totalorder 2, %s28
      // Predicated region
      $region89: #{transformer_forward.21} parent=5 // pred_check
        %p1224 = pneg %p1223
      $region90: #{transformer_forward.21} parent=5 // pred_check_branch
        %1226 = sbr.rel (%p1224) target = $region92
      $region91: #{transformer_forward.21} parent=5 // pred_region
        %s1227 = ssub.s32 %s28, 2
        // Predicated region
        $region93: #{transformer_forward.21} parent=91 // pred_check
          %p1228 = pneg %p263
        $region94: #{transformer_forward.21} parent=91 // pred_check_branch
          %1230 = sbr.rel (%p1228) target = $region96
        $region95: #{transformer_forward.21} parent=91 // pred_region
          %s1231 = sand.u32 %s248, 1
          %s1232 = scalar_lea.sflag [#allocation5], %s1231
          %s1233 = sand.u32 %s248, 1
          %s1234 = smul.addr %s1233, 16
          %s1235 = scalar_lea.vmem [#allocation17], %s1234
          %1236 = dma.done %s1232, 256
        $region96: #{transformer_forward.21} parent=91 // pred_fallthru
          _
      $region92: #{transformer_forward.21} parent=5 // pred_fallthru
        _
    $region6: #{transformer_forward.21} parent=1 // loop_footer
      %s32 = sadd.s32 1, %s28
    $region7: #{transformer_forward.21} parent=1 // loop_footer_branch
      %27 = sbr.rel target = $region3
    $region8: #{transformer_forward.21} parent=1 // loop_exit
      _
    %1237 = vsyncpa [#allocation4], 1
    %s1238 = scalar_lea.sflag [#allocation4], 1
    %1239 = vsyncpa %s1238, 1
    %1240 = vsyncpa [#allocation7], 1
    %s1241 = scalar_lea.sflag [#allocation7], 1
    %1242 = vsyncpa %s1241, 1
    %1243 = vsyncpa [#allocation10], 1
    %1244 = vsyncpa [#allocation13], 1
    %s1245 = scalar_lea.sflag [#allocation13], 1
    %1246 = vsyncpa %s1245, 1
    %1247 = vsyncpa [#allocation16], 1
    %1248 = vsyncpa [#allocation5], 1
    %s1249 = scalar_lea.sflag [#allocation5], 1
    %1250 = vsyncpa %s1249, 1

// kernel: transformer_forward.27
$region0: #{transformer_forward.27}
  #allocation0 [shape = 'u32[]', space=smem, size = 0x4, offset = 0x4, fixed_abs, tag = 'smem constant byte address 0x4 - core index']
  #allocation1 [shape = 'u32[144,128]{1,0:T(1,128)}', space=vmem, size = 0x12000, scoped, tag = 'internal scratch']
  #allocation2 [shape = 'f32[16,32]{1,0:T(8,128)}', space=vmem, size = 0x2000, scoped, tag = 'scratch operand']
  %s0 = inlined_call_operand.hbm [shape: f32[16,32], index: 0, kind: input, shape index: {}]
  %s1 = inlined_call_operand.hbm [shape: bf16[32,32], index: 1, kind: input, shape index: {}]
  %s2 = inlined_call_operand.hbm [shape: f32[1,32], index: 2, kind: input, shape index: {}]
  %s3 = inlined_call_operand.hbm [shape: f32[16,32], index: 3, kind: output, shape index: {}]
  %s4 = sld [smem:[#allocation0]]
  $region42: #{transformer_forward.27} parent=0
    _
  %s6 = ssub.s32 1, %s4
  %s7 = scalar_select 0, %s6, %s4
  $region1: #{transformer_forward.27} parent=0
    #allocation3 [shape = 'u8[8192]{0}', space=vmem, size = 0x2000, scoped, tag = 'input window, operand 0, single buffered']
    #allocation4 [shape = 's32[1]{0}', space=sflag, size = 0x4, scoped, tag = 'scoped memory for transformer_forward.27']
    #allocation5 [shape = 's32[1]{0}', space=sflag, size = 0x4, scoped, tag = 'scoped memory for transformer_forward.27']
    #allocation6 [shape = 'u8[8192]{0}', space=vmem, size = 0x2000, scoped, tag = 'input window, operand 1, single buffered']
    #allocation7 [shape = 's32[1]{0}', space=sflag, size = 0x4, scoped, tag = 'scoped memory for transformer_forward.27']
    #allocation8 [shape = 'u8[512]{0}', space=vmem, size = 0x400, scoped, tag = 'input window, operand 2, single buffered']
    #allocation9 [shape = 'u8[8192]{0}', space=vmem, size = 0x2000, scoped, tag = 'output window, operand 0, single buffered']
    %8 = vsyncpa [#allocation4], 0
    %9 = vsyncpa [#allocation7], 0
    %10 = vsyncpa [#allocation5], 0
    // Predicated region
    $region2: #{transformer_forward.27} parent=1 // pred_check
      _
    $region3: #{transformer_forward.27} parent=1 // pred_check_branch
      %12 = sbr.rel (0) target = $region5
    $region4: #{transformer_forward.27} parent=1 // pred_region
      %s14 = ssub.s32 256, 256
      %15 = vsyncadd [#allocation4], %s14
      %s16 = sshll.u32 [#allocation3], 4
      %s17 = int_to_ptr.vmem [resolvable:$true] %s16
      %22 = dma.hbm_to_vmem [thread:$0]  %s0, 256, %s17, [#allocation4], 128, 128, 8
    $region5: #{transformer_forward.27} parent=1 // pred_fallthru
      _
    // Predicated region
    $region6: #{transformer_forward.27} parent=1 // pred_check
      _
    $region7: #{transformer_forward.27} parent=1 // pred_check_branch
      %24 = sbr.rel (0) target = $region9
    $region8: #{transformer_forward.27} parent=1 // pred_region
      %s26 = ssub.s32 256, 256
      %27 = vsyncadd [#allocation7], %s26
      %s28 = sshll.u32 [#allocation6], 4
      %s29 = int_to_ptr.vmem [resolvable:$true] %s28
      %34 = dma.hbm_to_vmem [thread:$0]  %s1, 256, %s29, [#allocation7], 64, 64, 4
    $region9: #{transformer_forward.27} parent=1 // pred_fallthru
      _
    // Predicated region
    $region10: #{transformer_forward.27} parent=1 // pred_check
      _
    $region11: #{transformer_forward.27} parent=1 // pred_check_branch
      %36 = sbr.rel (0) target = $region13
    $region12: #{transformer_forward.27} parent=1 // pred_region
      %s38 = ssub.s32 16, 16
      %39 = vsyncadd [#allocation7], %s38
      %s41 = sshll.u32 [#allocation8], 4
      %s42 = int_to_ptr.vmem [resolvable:$true] %s41
      %44 = dma.hbm_to_vmem [thread:$0]  %s2, 16, %s42, [#allocation7]
    $region13: #{transformer_forward.27} parent=1 // pred_fallthru
      _
    // Predicated region
    $region14: #{transformer_forward.27} parent=1 // pred_check
      _
    $region15: #{transformer_forward.27} parent=1 // pred_check_branch
      %46 = sbr.rel (0) target = $region17
    $region16: #{transformer_forward.27} parent=1 // pred_region
      %47 = dma.done [#allocation4], 256
    $region17: #{transformer_forward.27} parent=1 // pred_fallthru
      _
    // Predicated region
    $region18: #{transformer_forward.27} parent=1 // pred_check
      _
    $region19: #{transformer_forward.27} parent=1 // pred_check_branch
      %49 = sbr.rel (0) target = $region21
    $region20: #{transformer_forward.27} parent=1 // pred_region
      %50 = dma.done [#allocation7], 256
    $region21: #{transformer_forward.27} parent=1 // pred_fallthru
      _
    // Predicated region
    $region22: #{transformer_forward.27} parent=1 // pred_check
      _
    $region23: #{transformer_forward.27} parent=1 // pred_check_branch
      %52 = sbr.rel (0) target = $region25
    $region24: #{transformer_forward.27} parent=1 // pred_region
      %53 = dma.done [#allocation7], 16
    $region25: #{transformer_forward.27} parent=1 // pred_fallthru
      _
    %p55 = scmp.eq.s32.totalorder 0, 0
    // Predicated region
    $region26: #{transformer_forward.27} parent=1 // pred_check
      %p56 = pneg %p55
    $region27: #{transformer_forward.27} parent=1 // pred_check_branch
      %58 = sbr.rel (%p56) target = $region29
    $region28: #{transformer_forward.27} parent=1 // pred_region
      %vm59 = vcmask 261120
      %60 = vst.msk [vmem:[#allocation2] sm:$0xff] %vm59, 0.0
      %61 = vst.msk [vmem:[#allocation2 + $0x8] sm:$0xff] %vm59, 0.0
    $region29: #{transformer_forward.27} parent=1 // pred_fallthru
      _
    %v62 = vld [vmem:[#allocation2] sm:$0xff]
    %v63 = vld [vmem:[#allocation2 + $0x8] sm:$0xff]
    %v64 = vld [vmem:[#allocation3] sm:$0xff]
    %v65 = vld [vmem:[#allocation3 + $0x8] sm:$0xff]
    %v66 = vpack.c.bf16 %v65, %v64
    %v67 = vld [vmem:[#allocation6] sm:$0xf]
    %v68 = vld [vmem:[#allocation6 + $0x4] sm:$0xf]
    %v69 = vld [vmem:[#allocation6 + $0x8] sm:$0xf]
    %v70 = vld [vmem:[#allocation6 + $0xc] sm:$0xf]
    %v75 = vunpack.c.l.b16 %v67
    %v76 = vunpack.c.l.b16 %v68
    %v77 = vunpack.c.l.b16 %v69
    %v78 = vunpack.c.l.b16 %v70
    %v79 = vpack.c.b16 %v76, %v75
    %v80 = vpack.c.b16 %v78, %v77
    %vm83 = vcmask 261120
    %v85 = vsel %vm83, %v66, 0
    %87 = vmatprep.subr.bf16.mxu0 0
    %88 = vmatpush1.bf16.msra.mxu0 %v79
    %89 = vmatprep.subr.bf16.mxu0 0
    %90 = vmatpush1.bf16.msra.mxu0 %v80
    %91 = vmatprep.subr.bf16.mxu0 0
    %92 = vmatpush1.bf16.msra.mxu0 0
    %93 = vmatprep.subr.bf16.mxu0 0
    %94 = vmatpush1.bf16.msra.mxu0 0
    %95 = vmatprep.subr.bf16.mxu0 0
    %96 = vmatpush1.bf16.msra.mxu0 0
    %97 = vmatprep.subr.bf16.mxu0 0
    %98 = vmatpush1.bf16.msra.mxu0 0
    %99 = vmatprep.subr.bf16.mxu0 0
    %100 = vmatpush1.bf16.msra.mxu0 0
    %101 = vmatprep.subr.bf16.mxu0 0
    %102 = vmatpush1.bf16.msra.mxu0 0
    %103 = vmatprep.subr.bf16.mxu0 0
    %104 = vmatpush1.bf16.msra.mxu0 0
    %105 = vmatprep.subr.bf16.mxu0 0
    %106 = vmatpush1.bf16.msra.mxu0 0
    %107 = vmatprep.subr.bf16.mxu0 0
    %108 = vmatpush1.bf16.msra.mxu0 0
    %109 = vmatprep.subr.bf16.mxu0 0
    %110 = vmatpush1.bf16.msra.mxu0 0
    %111 = vmatprep.subr.bf16.mxu0 0
    %112 = vmatpush1.bf16.msra.mxu0 0
    %113 = vmatprep.subr.bf16.mxu0 0
    %114 = vmatpush1.bf16.msra.mxu0 0
    %115 = vmatprep.subr.bf16.mxu0 0
    %116 = vmatpush1.bf16.msra.mxu0 0
    %117 = vmatprep.subr.bf16.mxu0 0
    %118 = vmatpush1.bf16.msra.mxu0 0
    %119 = vmatprep.mubr.bf16.mxu0 0
    %120 = vmatmul.mubr.bf16.gmra.mrb[0].mxu0 %v85
    %v121 = vpop.f32.mrb[0].mxu0
    %v122 = vadd.f32 0.0, %v121
    %v123 = vpop.f32.mrb[0].mxu0
    %v124 = vpop.f32.mrb[0].mxu0
    %v125 = vadd.f32 0.0, %v124
    %v126 = vpop.f32.mrb[0].mxu0
    %127 = vdwg.mxu0
    %v128 = vadd.f32 %v62, %v122
    %v129 = vadd.f32 %v63, %v125
    %130 = vst.msk [vmem:[#allocation2] sm:$0xff] %vm83, %v128
    %131 = vst.msk [vmem:[#allocation2 + $0x8] sm:$0xff] %vm83, %v129
    // Predicated region
    $region30: #{transformer_forward.27} parent=1 // pred_check
      %p132 = pneg %p55
    $region31: #{transformer_forward.27} parent=1 // pred_check_branch
      %134 = sbr.rel (%p132) target = $region33
    $region32: #{transformer_forward.27} parent=1 // pred_region
      %v135 = vld [vmem:[#allocation2] sm:$0xff]
      %v136 = vld [vmem:[#allocation2 + $0x8] sm:$0xff]
      %v137 = vld [vmem:[#allocation8] sm:$0x1]
      %v139 = vlaneseq
      %v140 = vshrl.u32 %v139, 7
      %v141 = vsub.s32 0, %v140
      %v142 = vrot.slane %v137, %v141
      %v144 = vadd.f32 %v135, %v142
      %v145 = vadd.f32 %v136, %v142
      %146 = vst.msk [vmem:[#allocation9] sm:$0xff] %vm83, %v144
      %147 = vst.msk [vmem:[#allocation9 + $0x8] sm:$0xff] %vm83, %v145
    $region33: #{transformer_forward.27} parent=1 // pred_fallthru
      _
    // Predicated region
    $region34: #{transformer_forward.27} parent=1 // pred_check
      _
    $region35: #{transformer_forward.27} parent=1 // pred_check_branch
      %149 = sbr.rel (0) target = $region37
    $region36: #{transformer_forward.27} parent=1 // pred_region
      %s151 = ssub.s32 256, 256
      %152 = vsyncadd [#allocation5], %s151
      %s153 = sshll.u32 [#allocation9], 4
      %s154 = int_to_ptr.vmem [resolvable:$true] %s153
      %159 = dma.vmem_to_hbm [thread:$0]  %s154, 256, %s3, [#allocation5], 128, 128, 8
    $region37: #{transformer_forward.27} parent=1 // pred_fallthru
      _
    // Predicated region
    $region38: #{transformer_forward.27} parent=1 // pred_check
      _
    $region39: #{transformer_forward.27} parent=1 // pred_check_branch
      %161 = sbr.rel (0) target = $region41
    $region40: #{transformer_forward.27} parent=1 // pred_region
      %162 = dma.done [#allocation5], 256
    $region41: #{transformer_forward.27} parent=1 // pred_fallthru
      _
    %163 = vsyncpa [#allocation4], 1
    %164 = vsyncpa [#allocation7], 1
    %165 = vsyncpa [#allocation5], 1

// kernel: transformer_forward.30
$region0: #{transformer_forward.30}
  #allocation0 [shape = 'u32[]', space=smem, size = 0x4, offset = 0x4, fixed_abs, tag = 'smem constant byte address 0x4 - core index']
  #allocation1 [shape = 'u32[144,128]{1,0:T(1,128)}', space=vmem, size = 0x12000, scoped, tag = 'internal scratch']
  #allocation2 [shape = 'f32[8,32]{1,0:T(8,128)}', space=vmem, size = 0x1000, scoped, tag = 'scratch operand']
  %s0 = inlined_call_operand.hbm [shape: f32[2,8,32], index: 0, kind: input, shape index: {}]
  %s1 = inlined_call_operand.hbm [shape: f32[2,16,32], index: 1, kind: input, shape index: {}]
  %s2 = inlined_call_operand.hbm [shape: f32[2,16,32], index: 2, kind: input, shape index: {}]
  %s3 = inlined_call_operand.hbm [shape: bf16[32,32], index: 3, kind: input, shape index: {}]
  %s4 = inlined_call_operand.hbm [shape: f32[1,32], index: 4, kind: input, shape index: {}]
  %s5 = inlined_call_operand.hbm [shape: f32[2,8,32], index: 5, kind: input, shape index: {}]
  %s6 = inlined_call_operand.hbm [shape: f32[1,32], index: 6, kind: input, shape index: {}]
  %s7 = inlined_call_operand.hbm [shape: f32[1,32], index: 7, kind: input, shape index: {}]
  %s8 = inlined_call_operand.hbm [shape: f32[2,8,32], index: 8, kind: output, shape index: {}]
  %s9 = sld [smem:[#allocation0]]
  $region97: #{transformer_forward.30} parent=0
    _
  %s11 = ssub.s32 1, %s9
  %s12 = scalar_select 0, %s11, %s9
  $region1: #{transformer_forward.30} parent=0
    #allocation3 [shape = 'u8[8192]{0}', space=vmem, size = 0x2000, scoped, tag = 'input window, operand 0']
    #allocation4 [shape = 's32[2]{0}', space=sflag, size = 0x8, scoped, tag = 'scoped memory for transformer_forward.30']
    #allocation5 [shape = 's32[2]{0}', space=sflag, size = 0x8, scoped, tag = 'scoped memory for transformer_forward.30']
    #allocation6 [shape = 'u8[16384]{0}', space=vmem, size = 0x4000, scoped, tag = 'input window, operand 1']
    #allocation7 [shape = 's32[2]{0}', space=sflag, size = 0x8, scoped, tag = 'scoped memory for transformer_forward.30']
    #allocation8 [shape = 'u8[16384]{0}', space=vmem, size = 0x4000, scoped, tag = 'input window, operand 2']
    #allocation9 [shape = 'u8[8192]{0}', space=vmem, size = 0x2000, scoped, tag = 'input window, operand 3, single buffered']
    #allocation10 [shape = 's32[1]{0}', space=sflag, size = 0x4, scoped, tag = 'scoped memory for transformer_forward.30']
    #allocation11 [shape = 'u8[512]{0}', space=vmem, size = 0x400, scoped, tag = 'input window, operand 4, single buffered']
    #allocation12 [shape = 'u8[8192]{0}', space=vmem, size = 0x2000, scoped, tag = 'input window, operand 5']
    #allocation13 [shape = 's32[2]{0}', space=sflag, size = 0x8, scoped, tag = 'scoped memory for transformer_forward.30']
    #allocation14 [shape = 'u8[512]{0}', space=vmem, size = 0x400, scoped, tag = 'input window, operand 6, single buffered']
    #allocation15 [shape = 'u8[512]{0}', space=vmem, size = 0x400, scoped, tag = 'input window, operand 7, single buffered']
    #allocation16 [shape = 's32[1]{0}', space=sflag, size = 0x4, scoped, tag = 'scoped memory for transformer_forward.30']
    #allocation17 [shape = 'u8[8192]{0}', space=vmem, size = 0x2000, scoped, tag = 'output window, operand 0']
    %13 = vsyncpa [#allocation4], 0
    %s14 = scalar_lea.sflag [#allocation4], 1
    %15 = vsyncpa %s14, 0
    %16 = vsyncpa [#allocation7], 0
    %s17 = scalar_lea.sflag [#allocation7], 1
    %18 = vsyncpa %s17, 0
    %19 = vsyncpa [#allocation10], 0
    %20 = vsyncpa [#allocation13], 0
    %s21 = scalar_lea.sflag [#allocation13], 1
    %22 = vsyncpa %s21, 0
    %23 = vsyncpa [#allocation16], 0
    %24 = vsyncpa [#allocation5], 0
    %s25 = scalar_lea.sflag [#allocation5], 1
    %26 = vsyncpa %s25, 0
    loop: start=0, step=1, limit=4
    $region2: #{transformer_forward.30} parent=1 // loop_pre_header
      _
    $region3: #{transformer_forward.30} parent=1 // loop_header
      %s28 = sphi 0, %s32
      %p29 = scmp.ge.s32.totalorder %s28, 4
      %s35 = sphi 0, %s47
      %s36 = sphi 0, %s43
      %s37 = sphi 0, %s35
      %s38 = sphi 0, %s36
      %s39 = sphi 0, %s37
      %s40 = sphi 0, %s38
      %s52 = sphi 0, %s54
      %s55 = sphi 0, %s52
      %s56 = sphi 0, %s55
      %s72 = sphi 0, %s56
      %s78 = sphi 0, %s80
      %s81 = sphi 0, %s78
      %s82 = sphi 0, %s81
      %s98 = sphi 0, %s82
      %s104 = sphi 0, %s106
      %s107 = sphi 0, %s104
      %s108 = sphi 0, %s107
      %s124 = sphi 0, %s108
      %s128 = sphi 0, %s128
      %s130 = sphi 0, %s128
      %s131 = sphi 0, %s130
      %s145 = sphi 0, %s131
      %s149 = sphi 0, %s149
      %s151 = sphi 0, %s149
      %s152 = sphi 0, %s151
      %s166 = sphi 0, %s152
      %s174 = sphi 0, %s176
      %s177 = sphi 0, %s174
      %s178 = sphi 0, %s177
      %s194 = sphi 0, %s178
      %s198 = sphi 0, %s198
      %s200 = sphi 0, %s198
      %s201 = sphi 0, %s200
      %s215 = sphi 0, %s201
      %s219 = sphi 0, %s219
      %s221 = sphi 0, %s219
      %s222 = sphi 0, %s221
      %s236 = sphi 0, %s222
      %s244 = sphi 0, %s246
      %s247 = sphi 0, %s244
      %s248 = sphi 0, %s247
      %s264 = sphi 0, %s248
    $region4: #{transformer_forward.30} parent=1 // loop_header_branch
      %31 = sbr.rel (%p29) target = $region8
    $region5: #{transformer_forward.30} parent=1 // loop_body
      %s33 = ssub.s32 %s28, 1
      %s34 = ssub.s32 %s28, 2
      %s41 = sadd.s32 1, %s36
      %p42 = scmp.ge.s32.totalorder %s41, 1
      %s43 = scalar_select %p42, 0, %s41
      %s44 = sadd.s32 1, %s35
      %s45 = scalar_select %p42, %s44, %s35
      %p46 = scmp.ge.s32.totalorder %s45, 2
      %s47 = scalar_select %p46, 0, %s45
      %s48 = ssub.s32 %s35, %s47
      %s49 = ssub.s32 %s36, %s43
      %s50 = sor.u32 %s48, %s49
      %p51 = scmp.eq.s32.totalorder %s50, 0
      %s53 = sadd.s32 %s52, 1
      %s54 = scalar_select %p51, %s52, %s53
      %p57 = pneg %p51
      %p58 = scmp.eq.s32.totalorder %s28, 1
      %p59 = por %p57, %p58
      %p60 = scmp.ne.s32.totalorder %s52, %s55
      %p61 = scmp.eq.s32.totalorder %s28, 0
      %p62 = por %p60, %p61
      %p63 = scmp.ne.s32.totalorder %s52, %s55
      %p64 = scmp.eq.s32.totalorder %s33, 1
      %p65 = por %p63, %p64
      %p66 = scmp.ne.s32.totalorder %s55, %s56
      %p67 = scmp.eq.s32.totalorder %s33, 0
      %p68 = por %p66, %p67
      %p69 = scmp.ne.s32.totalorder %s55, %s56
      %p70 = scmp.eq.s32.totalorder %s34, 1
      %p71 = por %p69, %p70
      %p73 = scmp.ne.s32.totalorder %s56, %s72
      %p74 = scmp.eq.s32.totalorder %s34, 0
      %p75 = por %p73, %p74
      %s76 = ssub.s32 %s35, %s47
      %p77 = scmp.eq.s32.totalorder %s76, 0
      %s79 = sadd.s32 %s78, 1
      %s80 = scalar_select %p77, %s78, %s79
      %p83 = pneg %p77
      %p84 = scmp.eq.s32.totalorder %s28, 1
      %p85 = por %p83, %p84
      %p86 = scmp.ne.s32.totalorder %s78, %s81
      %p87 = scmp.eq.s32.totalorder %s28, 0
      %p88 = por %p86, %p87
      %p89 = scmp.ne.s32.totalorder %s78, %s81
      %p90 = scmp.eq.s32.totalorder %s33, 1
      %p91 = por %p89, %p90
      %p92 = scmp.ne.s32.totalorder %s81, %s82
      %p93 = scmp.eq.s32.totalorder %s33, 0
      %p94 = por %p92, %p93
      %p95 = scmp.ne.s32.totalorder %s81, %s82
      %p96 = scmp.eq.s32.totalorder %s34, 1
      %p97 = por %p95, %p96
      %p99 = scmp.ne.s32.totalorder %s82, %s98
      %p100 = scmp.eq.s32.totalorder %s34, 0
      %p101 = por %p99, %p100
      %s102 = ssub.s32 %s35, %s47
      %p103 = scmp.eq.s32.totalorder %s102, 0
      %s105 = sadd.s32 %s104, 1
      %s106 = scalar_select %p103, %s104, %s105
      %p109 = pneg %p103
      %p110 = scmp.eq.s32.totalorder %s28, 1
      %p111 = por %p109, %p110
      %p112 = scmp.ne.s32.totalorder %s104, %s107
      %p113 = scmp.eq.s32.totalorder %s28, 0
      %p114 = por %p112, %p113
      %p115 = scmp.ne.s32.totalorder %s104, %s107
      %p116 = scmp.eq.s32.totalorder %s33, 1
      %p117 = por %p115, %p116
      %p118 = scmp.ne.s32.totalorder %s107, %s108
      %p119 = scmp.eq.s32.totalorder %s33, 0
      %p120 = por %p118, %p119
      %p121 = scmp.ne.s32.totalorder %s107, %s108
      %p122 = scmp.eq.s32.totalorder %s34, 1
      %p123 = por %p121, %p122
      %p125 = scmp.ne.s32.totalorder %s108, %s124
      %p126 = scmp.eq.s32.totalorder %s34, 0
      %p127 = por %p125, %p126
      %s129 = sadd.s32 %s128, 1
      %p132 = scmp.eq.s32.totalorder %s28, 1
      %p133 = scmp.ne.s32.totalorder %s128, %s130
      %p134 = scmp.eq.s32.totalorder %s28, 0
      %p135 = por %p133, %p134
      %p136 = scmp.ne.s32.totalorder %s128, %s130
      %p137 = scmp.eq.s32.totalorder %s33, 1
      %p138 = por %p136, %p137
      %p139 = scmp.ne.s32.totalorder %s130, %s131
      %p140 = scmp.eq.s32.totalorder %s33, 0
      %p141 = por %p139, %p140
      %p142 = scmp.ne.s32.totalorder %s130, %s131
      %p143 = scmp.eq.s32.totalorder %s34, 1
      %p144 = por %p142, %p143
      %p146 = scmp.ne.s32.totalorder %s131, %s145
      %p147 = scmp.eq.s32.totalorder %s34, 0
      %p148 = por %p146, %p147
      %s150 = sadd.s32 %s149, 1
      %p153 = scmp.eq.s32.totalorder %s28, 1
      %p154 = scmp.ne.s32.totalorder %s149, %s151
      %p155 = scmp.eq.s32.totalorder %s28, 0
      %p156 = por %p154, %p155
      %p157 = scmp.ne.s32.totalorder %s149, %s151
      %p158 = scmp.eq.s32.totalorder %s33, 1
      %p159 = por %p157, %p158
      %p160 = scmp.ne.s32.totalorder %s151, %s152
      %p161 = scmp.eq.s32.totalorder %s33, 0
      %p162 = por %p160, %p161
      %p163 = scmp.ne.s32.totalorder %s151, %s152
      %p164 = scmp.eq.s32.totalorder %s34, 1
      %p165 = por %p163, %p164
      %p167 = scmp.ne.s32.totalorder %s152, %s166
      %p168 = scmp.eq.s32.totalorder %s34, 0
      %p169 = por %p167, %p168
      %s170 = ssub.s32 %s35, %s47
      %s171 = ssub.s32 %s36, %s43
      %s172 = sor.u32 %s170, %s171
      %p173 = scmp.eq.s32.totalorder %s172, 0
      %s175 = sadd.s32 %s174, 1
      %s176 = scalar_select %p173, %s174, %s175
      %p179 = pneg %p173
      %p180 = scmp.eq.s32.totalorder %s28, 1
      %p181 = por %p179, %p180
      %p182 = scmp.ne.s32.totalorder %s174, %s177
      %p183 = scmp.eq.s32.totalorder %s28, 0
      %p184 = por %p182, %p183
      %p185 = scmp.ne.s32.totalorder %s174, %s177
      %p186 = scmp.eq.s32.totalorder %s33, 1
      %p187 = por %p185, %p186
      %p188 = scmp.ne.s32.totalorder %s177, %s178
      %p189 = scmp.eq.s32.totalorder %s33, 0
      %p190 = por %p188, %p189
      %p191 = scmp.ne.s32.totalorder %s177, %s178
      %p192 = scmp.eq.s32.totalorder %s34, 1
      %p193 = por %p191, %p192
      %p195 = scmp.ne.s32.totalorder %s178, %s194
      %p196 = scmp.eq.s32.totalorder %s34, 0
      %p197 = por %p195, %p196
      %s199 = sadd.s32 %s198, 1
      %p202 = scmp.eq.s32.totalorder %s28, 1
      %p203 = scmp.ne.s32.totalorder %s198, %s200
      %p204 = scmp.eq.s32.totalorder %s28, 0
      %p205 = por %p203, %p204
      %p206 = scmp.ne.s32.totalorder %s198, %s200
      %p207 = scmp.eq.s32.totalorder %s33, 1
      %p208 = por %p206, %p207
      %p209 = scmp.ne.s32.totalorder %s200, %s201
      %p210 = scmp.eq.s32.totalorder %s33, 0
      %p211 = por %p209, %p210
      %p212 = scmp.ne.s32.totalorder %s200, %s201
      %p213 = scmp.eq.s32.totalorder %s34, 1
      %p214 = por %p212, %p213
      %p216 = scmp.ne.s32.totalorder %s201, %s215
      %p217 = scmp.eq.s32.totalorder %s34, 0
      %p218 = por %p216, %p217
      %s220 = sadd.s32 %s219, 1
      %p223 = scmp.eq.s32.totalorder %s28, 1
      %p224 = scmp.ne.s32.totalorder %s219, %s221
      %p225 = scmp.eq.s32.totalorder %s28, 0
      %p226 = por %p224, %p225
      %p227 = scmp.ne.s32.totalorder %s219, %s221
      %p228 = scmp.eq.s32.totalorder %s33, 1
      %p229 = por %p227, %p228
      %p230 = scmp.ne.s32.totalorder %s221, %s222
      %p231 = scmp.eq.s32.totalorder %s33, 0
      %p232 = por %p230, %p231
      %p233 = scmp.ne.s32.totalorder %s221, %s222
      %p234 = scmp.eq.s32.totalorder %s34, 1
      %p235 = por %p233, %p234
      %p237 = scmp.ne.s32.totalorder %s222, %s236
      %p238 = scmp.eq.s32.totalorder %s34, 0
      %p239 = por %p237, %p238
      %s240 = ssub.s32 %s35, %s47
      %s241 = ssub.s32 %s36, %s43
      %s242 = sor.u32 %s240, %s241
      %p243 = scmp.eq.s32.totalorder %s242, 0
      %s245 = sadd.s32 %s244, 1
      %s246 = scalar_select %p243, %s244, %s245
      %p249 = pneg %p243
      %p250 = scmp.eq.s32.totalorder %s28, 1
      %p251 = por %p249, %p250
      %p252 = scmp.ne.s32.totalorder %s244, %s247
      %p253 = scmp.eq.s32.totalorder %s28, 0
      %p254 = por %p252, %p253
      %p255 = scmp.ne.s32.totalorder %s244, %s247
      %p256 = scmp.eq.s32.totalorder %s33, 1
      %p257 = por %p255, %p256
      %p258 = scmp.ne.s32.totalorder %s247, %s248
      %p259 = scmp.eq.s32.totalorder %s33, 0
      %p260 = por %p258, %p259
      %p261 = scmp.ne.s32.totalorder %s247, %s248
      %p262 = scmp.eq.s32.totalorder %s34, 1
      %p263 = por %p261, %p262
      %p265 = scmp.ne.s32.totalorder %s248, %s264
      %p266 = scmp.eq.s32.totalorder %s34, 0
      %p267 = por %p265, %p266
      %p268 = scmp.le.s32.totalorder 1, %s28
      %p269 = scmp.lt.s32.totalorder %s28, 3
      %p270 = pnand %p268, %p269
      %p271 = pneg %p270
      // Predicated region
      $region9: #{transformer_forward.30} parent=5 // pred_check
        _
      $region10: #{transformer_forward.30} parent=5 // pred_check_branch
        %273 = sbr.rel (%p270) target = $region12
      $region11: #{transformer_forward.30} parent=5 // pred_region
        %s274 = ssub.s32 %s28, 1
        // Predicated region
        $region13: #{transformer_forward.30} parent=11 // pred_check
          %p275 = pneg %p141
        $region14: #{transformer_forward.30} parent=11 // pred_check_branch
          %277 = sbr.rel (%p275) target = $region16
        $region15: #{transformer_forward.30} parent=11 // pred_region
          %s279 = ssub.s32 256, 256
          %280 = vsyncadd [#allocation10], %s279
          %s281 = sshll.u32 [#allocation9], 4
          %s282 = int_to_ptr.vmem [resolvable:$true] %s281
          %287 = dma.hbm_to_vmem [thread:$0]  %s3, 256, %s282, [#allocation10], 64, 64, 4
        $region16: #{transformer_forward.30} parent=11 // pred_fallthru
          _
        // Predicated region
        $region17: #{transformer_forward.30} parent=11 // pred_check
          %p288 = pneg %p162
        $region18: #{transformer_forward.30} parent=11 // pred_check_branch
          %290 = sbr.rel (%p288) target = $region20
        $region19: #{transformer_forward.30} parent=11 // pred_region
          %s292 = ssub.s32 16, 16
          %293 = vsyncadd [#allocation10], %s292
          %s295 = sshll.u32 [#allocation11], 4
          %s296 = int_to_ptr.vmem [resolvable:$true] %s295
          %298 = dma.hbm_to_vmem [thread:$0]  %s4, 16, %s296, [#allocation10]
        $region20: #{transformer_forward.30} parent=11 // pred_fallthru
          _
        // Predicated region
        $region21: #{transformer_forward.30} parent=11 // pred_check
          %p299 = pneg %p211
        $region22: #{transformer_forward.30} parent=11 // pred_check_branch
          %301 = sbr.rel (%p299) target = $region24
        $region23: #{transformer_forward.30} parent=11 // pred_region
          %s303 = ssub.s32 16, 16
          %304 = vsyncadd [#allocation13], %s303
          %s306 = sshll.u32 [#allocation14], 4
          %s307 = int_to_ptr.vmem [resolvable:$true] %s306
          %309 = dma.hbm_to_vmem [thread:$0]  %s6, 16, %s307, [#allocation13]
        $region24: #{transformer_forward.30} parent=11 // pred_fallthru
          _
        // Predicated region
        $region25: #{transformer_forward.30} parent=11 // pred_check
          %p310 = pneg %p232
        $region26: #{transformer_forward.30} parent=11 // pred_check_branch
          %312 = sbr.rel (%p310) target = $region28
        $region27: #{transformer_forward.30} parent=11 // pred_region
          %s314 = ssub.s32 16, 16
          %315 = vsyncadd [#allocation16], %s314
          %s317 = sshll.u32 [#allocation15], 4
          %s318 = int_to_ptr.vmem [resolvable:$true] %s317
          %320 = dma.hbm_to_vmem [thread:$0]  %s7, 16, %s318, [#allocation16]
        $region28: #{transformer_forward.30} parent=11 // pred_fallthru
          _
      $region12: #{transformer_forward.30} parent=5 // pred_fallthru
        _
      %p321 = scmp.lt.s32.totalorder %s28, 2
      // Predicated region
      $region29: #{transformer_forward.30} parent=5 // pred_check
        %p322 = pneg %p321
      $region30: #{transformer_forward.30} parent=5 // pred_check_branch
        %324 = sbr.rel (%p322) target = $region32
      $region31: #{transformer_forward.30} parent=5 // pred_region
        // Predicated region
        $region33: #{transformer_forward.30} parent=31 // pred_check
          %p325 = pneg %p62
        $region34: #{transformer_forward.30} parent=31 // pred_check_branch
          %327 = sbr.rel (%p325) target = $region36
        $region35: #{transformer_forward.30} parent=31 // pred_region
          %s328 = sand.u32 %s52, 1
          %s329 = scalar_lea.sflag [#allocation4], %s328
          %s330 = sand.u32 %s52, 1
          %s331 = smul.addr %s330, 8
          %s332 = scalar_lea.vmem [#allocation3], %s331
          %s334 = ssub.s32 128, 128
          %335 = vsyncadd %s329, %s334
          %s336 = sadd.s32 %s36, %s35
          %s337 = smul.addr %s336, 128
          %s338 = scalar_lea.hbm %s0, %s337
          %s340 = sshll.u32 %s332, 4
          %s341 = int_to_ptr.vmem [resolvable:$true] %s340
          %343 = dma.hbm_to_vmem [thread:$0]  %s338, 128, %s341, %s329
        $region36: #{transformer_forward.30} parent=31 // pred_fallthru
          _
        // Predicated region
        $region37: #{transformer_forward.30} parent=31 // pred_check
          %p344 = pneg %p88
        $region38: #{transformer_forward.30} parent=31 // pred_check_branch
          %346 = sbr.rel (%p344) target = $region40
        $region39: #{transformer_forward.30} parent=31 // pred_region
          %s347 = sand.u32 %s28, 1
          %s348 = scalar_lea.sflag [#allocation7], %s347
          %s349 = sand.u32 %s78, 1
          %s350 = smul.addr %s349, 16
          %s351 = scalar_lea.vmem [#allocation6], %s350
          %s353 = ssub.s32 256, 256
          %354 = vsyncadd %s348, %s353
          %s355 = smul.addr %s35, 2
          %s356 = smul.addr %s355, 128
          %s357 = scalar_lea.hbm %s1, %s356
          %s358 = sshll.u32 %s351, 4
          %s359 = int_to_ptr.vmem [resolvable:$true] %s358
          %364 = dma.hbm_to_vmem [thread:$0]  %s357, 256, %s359, %s348, 128, 128, 8
        $region40: #{transformer_forward.30} parent=31 // pred_fallthru
          _
        // Predicated region
        $region41: #{transformer_forward.30} parent=31 // pred_check
          %p365 = pneg %p114
        $region42: #{transformer_forward.30} parent=31 // pred_check_branch
          %367 = sbr.rel (%p365) target = $region44
        $region43: #{transformer_forward.30} parent=31 // pred_region
          %s368 = sand.u32 %s28, 1
          %s369 = scalar_lea.sflag [#allocation7], %s368
          %s370 = sand.u32 %s104, 1
          %s371 = smul.addr %s370, 16
          %s372 = scalar_lea.vmem [#allocation8], %s371
          %s374 = ssub.s32 256, 256
          %375 = vsyncadd %s369, %s374
          %s376 = smul.addr %s35, 2
          %s377 = smul.addr %s376, 128
          %s378 = scalar_lea.hbm %s2, %s377
          %s379 = sshll.u32 %s372, 4
          %s380 = int_to_ptr.vmem [resolvable:$true] %s379
          %385 = dma.hbm_to_vmem [thread:$0]  %s378, 256, %s380, %s369, 128, 128, 8
        $region44: #{transformer_forward.30} parent=31 // pred_fallthru
          _
        // Predicated region
        $region45: #{transformer_forward.30} parent=31 // pred_check
          %p386 = pneg %p184
        $region46: #{transformer_forward.30} parent=31 // pred_check_branch
          %388 = sbr.rel (%p386) target = $region48
        $region47: #{transformer_forward.30} parent=31 // pred_region
          %s389 = sand.u32 %s28, 1
          %s390 = scalar_lea.sflag [#allocation13], %s389
          %s391 = sand.u32 %s174, 1
          %s392 = smul.addr %s391, 8
          %s393 = scalar_lea.vmem [#allocation12], %s392
          %s395 = ssub.s32 128, 128
          %396 = vsyncadd %s390, %s395
          %s397 = sadd.s32 %s36, %s35
          %s398 = smul.addr %s397, 128
          %s399 = scalar_lea.hbm %s5, %s398
          %s401 = sshll.u32 %s393, 4
          %s402 = int_to_ptr.vmem [resolvable:$true] %s401
          %404 = dma.hbm_to_vmem [thread:$0]  %s399, 128, %s402, %s390
        $region48: #{transformer_forward.30} parent=31 // pred_fallthru
          _
      $region32: #{transformer_forward.30} parent=5 // pred_fallthru
        _
      %p405 = scmp.le.s32.totalorder 1, %s28
      %p406 = scmp.lt.s32.totalorder %s28, 3
      %p407 = pnand %p405, %p406
      %p408 = pneg %p407
      // Predicated region
      $region49: #{transformer_forward.30} parent=5 // pred_check
        _
      $region50: #{transformer_forward.30} parent=5 // pred_check_branch
        %410 = sbr.rel (%p407) target = $region52
      $region51: #{transformer_forward.30} parent=5 // pred_region
        %s411 = ssub.s32 %s28, 1
        %s412 = sand.u32 %s55, 1
        %s413 = scalar_lea.sflag [#allocation4], %s412
        %s414 = sand.u32 %s55, 1
        %s415 = smul.addr %s414, 8
        %s416 = scalar_lea.vmem [#allocation3], %s415
        // Predicated region
        $region53: #{transformer_forward.30} parent=51 // pred_check
          %p417 = pneg %p68
        $region54: #{transformer_forward.30} parent=51 // pred_check_branch
          %419 = sbr.rel (%p417) target = $region56
        $region55: #{transformer_forward.30} parent=51 // pred_region
          %420 = dma.done %s413, 128
        $region56: #{transformer_forward.30} parent=51 // pred_fallthru
          _
        %s421 = sand.u32 %s33, 1
        %s422 = scalar_lea.sflag [#allocation7], %s421
        %s423 = sand.u32 %s81, 1
        %s424 = smul.addr %s423, 16
        %s425 = scalar_lea.vmem [#allocation6], %s424
        // Predicated region
        $region57: #{transformer_forward.30} parent=51 // pred_check
          %p426 = pneg %p94
        $region58: #{transformer_forward.30} parent=51 // pred_check_branch
          %428 = sbr.rel (%p426) target = $region60
        $region59: #{transformer_forward.30} parent=51 // pred_region
          %429 = dma.done %s422, 256
        $region60: #{transformer_forward.30} parent=51 // pred_fallthru
          _
        %s430 = sand.u32 %s33, 1
        %s431 = scalar_lea.sflag [#allocation7], %s430
        %s432 = sand.u32 %s107, 1
        %s433 = smul.addr %s432, 16
        %s434 = scalar_lea.vmem [#allocation8], %s433
        // Predicated region
        $region61: #{transformer_forward.30} parent=51 // pred_check
          %p435 = pneg %p120
        $region62: #{transformer_forward.30} parent=51 // pred_check_branch
          %437 = sbr.rel (%p435) target = $region64
        $region63: #{transformer_forward.30} parent=51 // pred_region
          %438 = dma.done %s431, 256
        $region64: #{transformer_forward.30} parent=51 // pred_fallthru
          _
        // Predicated region
        $region65: #{transformer_forward.30} parent=51 // pred_check
          %p439 = pneg %p141
        $region66: #{transformer_forward.30} parent=51 // pred_check_branch
          %441 = sbr.rel (%p439) target = $region68
        $region67: #{transformer_forward.30} parent=51 // pred_region
          %442 = dma.done [#allocation10], 256
        $region68: #{transformer_forward.30} parent=51 // pred_fallthru
          _
        // Predicated region
        $region69: #{transformer_forward.30} parent=51 // pred_check
          %p443 = pneg %p162
        $region70: #{transformer_forward.30} parent=51 // pred_check_branch
          %445 = sbr.rel (%p443) target = $region72
        $region71: #{transformer_forward.30} parent=51 // pred_region
          %446 = dma.done [#allocation10], 16
        $region72: #{transformer_forward.30} parent=51 // pred_fallthru
          _
        %s447 = sand.u32 %s33, 1
        %s448 = scalar_lea.sflag [#allocation13], %s447
        %s449 = sand.u32 %s177, 1
        %s450 = smul.addr %s449, 8
        %s451 = scalar_lea.vmem [#allocation12], %s450
        // Predicated region
        $region73: #{transformer_forward.30} parent=51 // pred_check
          %p452 = pneg %p190
        $region74: #{transformer_forward.30} parent=51 // pred_check_branch
          %454 = sbr.rel (%p452) target = $region76
        $region75: #{transformer_forward.30} parent=51 // pred_region
          %455 = dma.done %s448, 128
        $region76: #{transformer_forward.30} parent=51 // pred_fallthru
          _
        // Predicated region
        $region77: #{transformer_forward.30} parent=51 // pred_check
          %p456 = pneg %p211
        $region78: #{transformer_forward.30} parent=51 // pred_check_branch
          %458 = sbr.rel (%p456) target = $region80
        $region79: #{transformer_forward.30} parent=51 // pred_region
          %459 = dma.done [#allocation13], 16
        $region80: #{transformer_forward.30} parent=51 // pred_fallthru
          _
        // Predicated region
        $region81: #{transformer_forward.30} parent=51 // pred_check
          %p460 = pneg %p232
        $region82: #{transformer_forward.30} parent=51 // pred_check_branch
          %462 = sbr.rel (%p460) target = $region84
        $region83: #{transformer_forward.30} parent=51 // pred_region
          %463 = dma.done [#allocation16], 16
        $region84: #{transformer_forward.30} parent=51 // pred_fallthru
          _
        %s464 = sand.u32 %s55, 1
        %s465 = scalar_lea.sflag [#allocation4], %s464
        %s466 = sand.u32 %s55, 1
        %s467 = smul.addr %s466, 8
        %s468 = scalar_lea.vmem [#allocation3], %s467
        %p469 = pneg %p68
        %p470 = pneg %p65
        %s471 = sand.u32 %s33, 1
        %s472 = scalar_lea.sflag [#allocation7], %s471
        %s473 = sand.u32 %s81, 1
        %s474 = smul.addr %s473, 16
        %s475 = scalar_lea.vmem [#allocation6], %s474
        %p476 = pneg %p94
        %p477 = pneg %p91
        %s478 = sand.u32 %s33, 1
        %s479 = scalar_lea.sflag [#allocation7], %s478
        %s480 = sand.u32 %s107, 1
        %s481 = smul.addr %s480, 16
        %s482 = scalar_lea.vmem [#allocation8], %s481
        %p483 = pneg %p120
        %p484 = pneg %p117
        %p485 = pneg %p141
        %p486 = pneg %p138
        %p487 = pneg %p162
        %p488 = pneg %p159
        %s489 = sand.u32 %s33, 1
        %s490 = scalar_lea.sflag [#allocation13], %s489
        %s491 = sand.u32 %s177, 1
        %s492 = smul.addr %s491, 8
        %s493 = scalar_lea.vmem [#allocation12], %s492
        %p494 = pneg %p190
        %p495 = pneg %p187
        %p496 = pneg %p211
        %p497 = pneg %p208
        %p498 = pneg %p232
        %p499 = pneg %p229
        %p500 = pneg %p260
        %p501 = pneg %p257
        %s502 = sand.u32 %s247, 1
        %s503 = scalar_lea.sflag [#allocation5], %s502
        %s504 = sand.u32 %s247, 1
        %s505 = smul.addr %s504, 8
        %s506 = scalar_lea.vmem [#allocation17], %s505
        %v508 = vld [vmem:[%s416] sm:$0xff]
        %v509 = vpack.c.bf16 %v508, %v508
        %v510 = vld [vmem:[%s425] sm:$0xff]
        %v511 = vld [vmem:[%s425 + $0x8] sm:$0xff]
        %v512 = vpack.c.bf16 %v511, %v510
        %v513 = vld [vmem:[%s434] sm:$0xff]
        %v514 = vld [vmem:[%s434 + $0x8] sm:$0xff]
        %v515 = vpack.c.bf16 %v514, %v513
        %vm516 = vcmask 64512
        %v518 = vsel %vm516, %v509, 0
        %v521 = vsel %vm516, %v512, 0
        %523 = vmatprep.subr.bf16.mxu0 0
        %524 = vmatpush1.bf16.xpose.msra.mxu0 %v521
        %525 = vmatprep.subr.bf16.mxu0 0
        %526 = vmatpush1.bf16.xpose.msra.mxu0 0
        %527 = vmatprep.subr.bf16.mxu0 0
        %528 = vmatpush1.bf16.xpose.msra.mxu0 0
        %529 = vmatprep.subr.bf16.mxu0 0
        %530 = vmatpush1.bf16.xpose.msra.mxu0 0
        %531 = vmatprep.subr.bf16.mxu0 0
        %532 = vmatpush1.bf16.xpose.msra.mxu0 0
        %533 = vmatprep.subr.bf16.mxu0 0
        %534 = vmatpush1.bf16.xpose.msra.mxu0 0
        %535 = vmatprep.subr.bf16.mxu0 0
        %536 = vmatpush1.bf16.xpose.msra.mxu0 0
        %537 = vmatprep.subr.bf16.mxu0 0
        %538 = vmatpush1.bf16.xpose.msra.mxu0 0
        %539 = vmatprep.subr.bf16.mxu0 0
        %540 = vmatpush1.bf16.xpose.msra.mxu0 0
        %541 = vmatprep.subr.bf16.mxu0 0
        %542 = vmatpush1.bf16.xpose.msra.mxu0 0
        %543 = vmatprep.subr.bf16.mxu0 0
        %544 = vmatpush1.bf16.xpose.msra.mxu0 0
        %545 = vmatprep.subr.bf16.mxu0 0
        %546 = vmatpush1.bf16.xpose.msra.mxu0 0
        %547 = vmatprep.subr.bf16.mxu0 0
        %548 = vmatpush1.bf16.xpose.msra.mxu0 0
        %549 = vmatprep.subr.bf16.mxu0 0
        %550 = vmatpush1.bf16.xpose.msra.mxu0 0
        %551 = vmatprep.subr.bf16.mxu0 0
        %552 = vmatpush1.bf16.xpose.msra.mxu0 0
        %553 = vmatprep.subr.bf16.mxu0 0
        %554 = vmatpush1.bf16.xpose.msra.mxu0 0
        %555 = vmatprep.mubr.bf16.mxu0 0
        %556 = vmatmul.mubr.bf16.gmra.mrb[0].mxu0 %v518
        %v557 = vpop.f32.mrb[0].mxu0
        %v558 = vadd.f32 0.0, %v557
        %v559 = vpop.f32.mrb[0].mxu0
        %v560 = vpop.f32.mrb[0].mxu0
        %v561 = vpop.f32.mrb[0].mxu0
        %562 = vdwg.mxu0
        %vm563 = vcmask 130048
        %v564 = vsel %vm563, %v558, -inf
        %565 = vmax.xlane.f32.xlu0 %v564
        %v566 = vpop.xlane.xlu0 %565
        %v567 = vsub.f32 %v558, %v566
        %v568 = vmul.f32 %v567, 1.442695
        %v569 = vpow.pop %v568
        %v570 = vsel %vm563, %v569, 0.0
        %571 = vadd.xlane.f32.xlu0 %v570
        %v572 = vpop.xlane.xlu0 %571
        %v573 = vpack.c.bf16 %v569, %v569
        %v575 = vsel %vm563, %v573, 0
        %577 = vmatprep.subr.bf16.mxu0 0
        %578 = vmatpush1.bf16.msra.mxu0 %v515
        %579 = vmatprep.subr.bf16.mxu0 0
        %580 = vmatpush1.bf16.msra.mxu0 0
        %581 = vmatprep.subr.bf16.mxu0 0
        %582 = vmatpush1.bf16.msra.mxu0 0
        %583 = vmatprep.subr.bf16.mxu0 0
        %584 = vmatpush1.bf16.msra.mxu0 0
        %585 = vmatprep.subr.bf16.mxu0 0
        %586 = vmatpush1.bf16.msra.mxu0 0
        %587 = vmatprep.subr.bf16.mxu0 0
        %588 = vmatpush1.bf16.msra.mxu0 0
        %589 = vmatprep.subr.bf16.mxu0 0
        %590 = vmatpush1.bf16.msra.mxu0 0
        %591 = vmatprep.subr.bf16.mxu0 0
        %592 = vmatpush1.bf16.msra.mxu0 0
        %593 = vmatprep.subr.bf16.mxu0 0
        %594 = vmatpush1.bf16.msra.mxu0 0
        %595 = vmatprep.subr.bf16.mxu0 0
        %596 = vmatpush1.bf16.msra.mxu0 0
        %597 = vmatprep.subr.bf16.mxu0 0
        %598 = vmatpush1.bf16.msra.mxu0 0
        %599 = vmatprep.subr.bf16.mxu0 0
        %600 = vmatpush1.bf16.msra.mxu0 0
        %601 = vmatprep.subr.bf16.mxu0 0
        %602 = vmatpush1.bf16.msra.mxu0 0
        %603 = vmatprep.subr.bf16.mxu0 0
        %604 = vmatpush1.bf16.msra.mxu0 0
        %605 = vmatprep.subr.bf16.mxu0 0
        %606 = vmatpush1.bf16.msra.mxu0 0
        %607 = vmatprep.subr.bf16.mxu0 0
        %608 = vmatpush1.bf16.msra.mxu0 0
        %609 = vmatprep.mubr.bf16.mxu0 0
        %610 = vmatmul.mubr.bf16.gmra.mrb[0].mxu0 %v575
        %v611 = vpop.f32.mrb[0].mxu0
        %v612 = vadd.f32 0.0, %v611
        %v613 = vpop.f32.mrb[0].mxu0
        %v614 = vpop.f32.mrb[0].mxu0
        %v615 = vpop.f32.mrb[0].mxu0
        %616 = vdwg.mxu0
        %v617 = vrcp.pop %v572
        %v618 = vmul.f32 %v612, %v617
        %619 = vst.msk [vmem:[#allocation2] sm:$0xff] %vm516, %v618
        %v620 = vld [vmem:[%s416] sm:$0xff]
        %v621 = vpack.c.bf16 %v620, %v620
        %v622 = vld [vmem:[%s425] sm:$0xff]
        %v623 = vld [vmem:[%s425 + $0x8] sm:$0xff]
        %v624 = vpack.c.bf16 %v623, %v622
        %v625 = vld [vmem:[%s434] sm:$0xff]
        %v626 = vld [vmem:[%s434 + $0x8] sm:$0xff]
        %v627 = vpack.c.bf16 %v626, %v625
        %629 = vrot.lane.b32.xlu0 %v621, 120
        %v630 = vpop.permute.xlu0 %629
        %632 = vrot.lane.b32.xlu0 %v624, 120
        %v633 = vpop.permute.xlu0 %632
        %v635 = vsel %vm516, %v630, 0
        %v638 = vsel %vm516, %v633, 0
        %640 = vmatprep.subr.bf16.mxu0 0
        %641 = vmatpush1.bf16.xpose.msra.mxu0 %v638
        %642 = vmatprep.subr.bf16.mxu0 0
        %643 = vmatpush1.bf16.xpose.msra.mxu0 0
        %644 = vmatprep.subr.bf16.mxu0 0
        %645 = vmatpush1.bf16.xpose.msra.mxu0 0
        %646 = vmatprep.subr.bf16.mxu0 0
        %647 = vmatpush1.bf16.xpose.msra.mxu0 0
        %648 = vmatprep.subr.bf16.mxu0 0
        %649 = vmatpush1.bf16.xpose.msra.mxu0 0
        %650 = vmatprep.subr.bf16.mxu0 0
        %651 = vmatpush1.bf16.xpose.msra.mxu0 0
        %652 = vmatprep.subr.bf16.mxu0 0
        %653 = vmatpush1.bf16.xpose.msra.mxu0 0
        %654 = vmatprep.subr.bf16.mxu0 0
        %655 = vmatpush1.bf16.xpose.msra.mxu0 0
        %656 = vmatprep.subr.bf16.mxu0 0
        %657 = vmatpush1.bf16.xpose.msra.mxu0 0
        %658 = vmatprep.subr.bf16.mxu0 0
        %659 = vmatpush1.bf16.xpose.msra.mxu0 0
        %660 = vmatprep.subr.bf16.mxu0 0
        %661 = vmatpush1.bf16.xpose.msra.mxu0 0
        %662 = vmatprep.subr.bf16.mxu0 0
        %663 = vmatpush1.bf16.xpose.msra.mxu0 0
        %664 = vmatprep.subr.bf16.mxu0 0
        %665 = vmatpush1.bf16.xpose.msra.mxu0 0
        %666 = vmatprep.subr.bf16.mxu0 0
        %667 = vmatpush1.bf16.xpose.msra.mxu0 0
        %668 = vmatprep.subr.bf16.mxu0 0
        %669 = vmatpush1.bf16.xpose.msra.mxu0 0
        %670 = vmatprep.subr.bf16.mxu0 0
        %671 = vmatpush1.bf16.xpose.msra.mxu0 0
        %672 = vmatprep.mubr.bf16.mxu0 0
        %673 = vmatmul.mubr.bf16.gmra.mrb[0].mxu0 %v635
        %v674 = vpop.f32.mrb[0].mxu0
        %v675 = vadd.f32 0.0, %v674
        %v676 = vpop.f32.mrb[0].mxu0
        %v677 = vpop.f32.mrb[0].mxu0
        %v678 = vpop.f32.mrb[0].mxu0
        %679 = vdwg.mxu0
        %v680 = vsel %vm563, %v675, -inf
        %681 = vmax.xlane.f32.xlu0 %v680
        %v682 = vpop.xlane.xlu0 %681
        %v683 = vsub.f32 %v675, %v682
        %v684 = vmul.f32 %v683, 1.442695
        %v685 = vpow.pop %v684
        %v686 = vsel %vm563, %v685, 0.0
        %687 = vadd.xlane.f32.xlu0 %v686
        %v688 = vpop.xlane.xlu0 %687
        %v689 = vpack.c.bf16 %v685, %v685
        %691 = vrot.lane.b32.xlu0 %v627, 120
        %v692 = vpop.permute.xlu0 %691
        %v695 = vsel %vm563, %v689, 0
        %697 = vmatprep.subr.bf16.mxu0 0
        %698 = vmatpush1.bf16.msra.mxu0 %v692
        %699 = vmatprep.subr.bf16.mxu0 0
        %700 = vmatpush1.bf16.msra.mxu0 0
        %701 = vmatprep.subr.bf16.mxu0 0
        %702 = vmatpush1.bf16.msra.mxu0 0
        %703 = vmatprep.subr.bf16.mxu0 0
        %704 = vmatpush1.bf16.msra.mxu0 0
        %705 = vmatprep.subr.bf16.mxu0 0
        %706 = vmatpush1.bf16.msra.mxu0 0
        %707 = vmatprep.subr.bf16.mxu0 0
        %708 = vmatpush1.bf16.msra.mxu0 0
        %709 = vmatprep.subr.bf16.mxu0 0
        %710 = vmatpush1.bf16.msra.mxu0 0
        %711 = vmatprep.subr.bf16.mxu0 0
        %712 = vmatpush1.bf16.msra.mxu0 0
        %713 = vmatprep.subr.bf16.mxu0 0
        %714 = vmatpush1.bf16.msra.mxu0 0
        %715 = vmatprep.subr.bf16.mxu0 0
        %716 = vmatpush1.bf16.msra.mxu0 0
        %717 = vmatprep.subr.bf16.mxu0 0
        %718 = vmatpush1.bf16.msra.mxu0 0
        %719 = vmatprep.subr.bf16.mxu0 0
        %720 = vmatpush1.bf16.msra.mxu0 0
        %721 = vmatprep.subr.bf16.mxu0 0
        %722 = vmatpush1.bf16.msra.mxu0 0
        %723 = vmatprep.subr.bf16.mxu0 0
        %724 = vmatpush1.bf16.msra.mxu0 0
        %725 = vmatprep.subr.bf16.mxu0 0
        %726 = vmatpush1.bf16.msra.mxu0 0
        %727 = vmatprep.subr.bf16.mxu0 0
        %728 = vmatpush1.bf16.msra.mxu0 0
        %729 = vmatprep.mubr.bf16.mxu0 0
        %730 = vmatmul.mubr.bf16.gmra.mrb[0].mxu0 %v695
        %v731 = vpop.f32.mrb[0].mxu0
        %v732 = vadd.f32 0.0, %v731
        %v733 = vpop.f32.mrb[0].mxu0
        %v734 = vpop.f32.mrb[0].mxu0
        %v735 = vpop.f32.mrb[0].mxu0
        %736 = vdwg.mxu0
        %v737 = vrcp.pop %v688
        %v738 = vmul.f32 %v732, %v737
        %740 = vrot.lane.b32.xlu0 %v738, 8
        %v741 = vpop.permute.xlu0 %740
        %vm743 = vcmask 130112
        %744 = vst.msk [vmem:[#allocation2] sm:$0xff] %vm743, %v741
        %v745 = vld [vmem:[%s416] sm:$0xff]
        %v746 = vpack.c.bf16 %v745, %v745
        %v747 = vld [vmem:[%s425] sm:$0xff]
        %v748 = vld [vmem:[%s425 + $0x8] sm:$0xff]
        %v749 = vpack.c.bf16 %v748, %v747
        %v750 = vld [vmem:[%s434] sm:$0xff]
        %v751 = vld [vmem:[%s434 + $0x8] sm:$0xff]
        %v752 = vpack.c.bf16 %v751, %v750
        %754 = vrot.lane.b32.xlu0 %v746, 112
        %v755 = vpop.permute.xlu0 %754
        %757 = vrot.lane.b32.xlu0 %v749, 112
        %v758 = vpop.permute.xlu0 %757
        %v760 = vsel %vm516, %v755, 0
        %v763 = vsel %vm516, %v758, 0
        %765 = vmatprep.subr.bf16.mxu0 0
        %766 = vmatpush1.bf16.xpose.msra.mxu0 %v763
        %767 = vmatprep.subr.bf16.mxu0 0
        %768 = vmatpush1.bf16.xpose.msra.mxu0 0
        %769 = vmatprep.subr.bf16.mxu0 0
        %770 = vmatpush1.bf16.xpose.msra.mxu0 0
        %771 = vmatprep.subr.bf16.mxu0 0
        %772 = vmatpush1.bf16.xpose.msra.mxu0 0
        %773 = vmatprep.subr.bf16.mxu0 0
        %774 = vmatpush1.bf16.xpose.msra.mxu0 0
        %775 = vmatprep.subr.bf16.mxu0 0
        %776 = vmatpush1.bf16.xpose.msra.mxu0 0
        %777 = vmatprep.subr.bf16.mxu0 0
        %778 = vmatpush1.bf16.xpose.msra.mxu0 0
        %779 = vmatprep.subr.bf16.mxu0 0
        %780 = vmatpush1.bf16.xpose.msra.mxu0 0
        %781 = vmatprep.subr.bf16.mxu0 0
        %782 = vmatpush1.bf16.xpose.msra.mxu0 0
        %783 = vmatprep.subr.bf16.mxu0 0
        %784 = vmatpush1.bf16.xpose.msra.mxu0 0
        %785 = vmatprep.subr.bf16.mxu0 0
        %786 = vmatpush1.bf16.xpose.msra.mxu0 0
        %787 = vmatprep.subr.bf16.mxu0 0
        %788 = vmatpush1.bf16.xpose.msra.mxu0 0
        %789 = vmatprep.subr.bf16.mxu0 0
        %790 = vmatpush1.bf16.xpose.msra.mxu0 0
        %791 = vmatprep.subr.bf16.mxu0 0
        %792 = vmatpush1.bf16.xpose.msra.mxu0 0
        %793 = vmatprep.subr.bf16.mxu0 0
        %794 = vmatpush1.bf16.xpose.msra.mxu0 0
        %795 = vmatprep.subr.bf16.mxu0 0
        %796 = vmatpush1.bf16.xpose.msra.mxu0 0
        %797 = vmatprep.mubr.bf16.mxu0 0
        %798 = vmatmul.mubr.bf16.gmra.mrb[0].mxu0 %v760
        %v799 = vpop.f32.mrb[0].mxu0
        %v800 = vadd.f32 0.0, %v799
        %v801 = vpop.f32.mrb[0].mxu0
        %v802 = vpop.f32.mrb[0].mxu0
        %v803 = vpop.f32.mrb[0].mxu0
        %804 = vdwg.mxu0
        %v805 = vsel %vm563, %v800, -inf
        %806 = vmax.xlane.f32.xlu0 %v805
        %v807 = vpop.xlane.xlu0 %806
        %v808 = vsub.f32 %v800, %v807
        %v809 = vmul.f32 %v808, 1.442695
        %v810 = vpow.pop %v809
        %v811 = vsel %vm563, %v810, 0.0
        %812 = vadd.xlane.f32.xlu0 %v811
        %v813 = vpop.xlane.xlu0 %812
        %v814 = vpack.c.bf16 %v810, %v810
        %816 = vrot.lane.b32.xlu0 %v752, 112
        %v817 = vpop.permute.xlu0 %816
        %v820 = vsel %vm563, %v814, 0
        %822 = vmatprep.subr.bf16.mxu0 0
        %823 = vmatpush1.bf16.msra.mxu0 %v817
        %824 = vmatprep.subr.bf16.mxu0 0
        %825 = vmatpush1.bf16.msra.mxu0 0
        %826 = vmatprep.subr.bf16.mxu0 0
        %827 = vmatpush1.bf16.msra.mxu0 0
        %828 = vmatprep.subr.bf16.mxu0 0
        %829 = vmatpush1.bf16.msra.mxu0 0
        %830 = vmatprep.subr.bf16.mxu0 0
        %831 = vmatpush1.bf16.msra.mxu0 0
        %832 = vmatprep.subr.bf16.mxu0 0
        %833 = vmatpush1.bf16.msra.mxu0 0
        %834 = vmatprep.subr.bf16.mxu0 0
        %835 = vmatpush1.bf16.msra.mxu0 0
        %836 = vmatprep.subr.bf16.mxu0 0
        %837 = vmatpush1.bf16.msra.mxu0 0
        %838 = vmatprep.subr.bf16.mxu0 0
        %839 = vmatpush1.bf16.msra.mxu0 0
        %840 = vmatprep.subr.bf16.mxu0 0
        %841 = vmatpush1.bf16.msra.mxu0 0
        %842 = vmatprep.subr.bf16.mxu0 0
        %843 = vmatpush1.bf16.msra.mxu0 0
        %844 = vmatprep.subr.bf16.mxu0 0
        %845 = vmatpush1.bf16.msra.mxu0 0
        %846 = vmatprep.subr.bf16.mxu0 0
        %847 = vmatpush1.bf16.msra.mxu0 0
        %848 = vmatprep.subr.bf16.mxu0 0
        %849 = vmatpush1.bf16.msra.mxu0 0
        %850 = vmatprep.subr.bf16.mxu0 0
        %851 = vmatpush1.bf16.msra.mxu0 0
        %852 = vmatprep.subr.bf16.mxu0 0
        %853 = vmatpush1.bf16.msra.mxu0 0
        %854 = vmatprep.mubr.bf16.mxu0 0
        %855 = vmatmul.mubr.bf16.gmra.mrb[0].mxu0 %v820
        %v856 = vpop.f32.mrb[0].mxu0
        %v857 = vadd.f32 0.0, %v856
        %v858 = vpop.f32.mrb[0].mxu0
        %v859 = vpop.f32.mrb[0].mxu0
        %v860 = vpop.f32.mrb[0].mxu0
        %861 = vdwg.mxu0
        %v862 = vrcp.pop %v813
        %v863 = vmul.f32 %v857, %v862
        %865 = vrot.lane.b32.xlu0 %v863, 16
        %v866 = vpop.permute.xlu0 %865
        %vm868 = vcmask 195712
        %869 = vst.msk [vmem:[#allocation2] sm:$0xff] %vm868, %v866
        %v870 = vld [vmem:[%s416] sm:$0xff]
        %v871 = vpack.c.bf16 %v870, %v870
        %v872 = vld [vmem:[%s425] sm:$0xff]
        %v873 = vld [vmem:[%s425 + $0x8] sm:$0xff]
        %v874 = vpack.c.bf16 %v873, %v872
        %v875 = vld [vmem:[%s434] sm:$0xff]
        %v876 = vld [vmem:[%s434 + $0x8] sm:$0xff]
        %v877 = vpack.c.bf16 %v876, %v875
        %879 = vrot.lane.b32.xlu0 %v871, 104
        %v880 = vpop.permute.xlu0 %879
        %882 = vrot.lane.b32.xlu0 %v874, 104
        %v883 = vpop.permute.xlu0 %882
        %v885 = vsel %vm516, %v880, 0
        %v888 = vsel %vm516, %v883, 0
        %890 = vmatprep.subr.bf16.mxu0 0
        %891 = vmatpush1.bf16.xpose.msra.mxu0 %v888
        %892 = vmatprep.subr.bf16.mxu0 0
        %893 = vmatpush1.bf16.xpose.msra.mxu0 0
        %894 = vmatprep.subr.bf16.mxu0 0
        %895 = vmatpush1.bf16.xpose.msra.mxu0 0
        %896 = vmatprep.subr.bf16.mxu0 0
        %897 = vmatpush1.bf16.xpose.msra.mxu0 0
        %898 = vmatprep.subr.bf16.mxu0 0
        %899 = vmatpush1.bf16.xpose.msra.mxu0 0
        %900 = vmatprep.subr.bf16.mxu0 0
        %901 = vmatpush1.bf16.xpose.msra.mxu0 0
        %902 = vmatprep.subr.bf16.mxu0 0
        %903 = vmatpush1.bf16.xpose.msra.mxu0 0
        %904 = vmatprep.subr.bf16.mxu0 0
        %905 = vmatpush1.bf16.xpose.msra.mxu0 0
        %906 = vmatprep.subr.bf16.mxu0 0
        %907 = vmatpush1.bf16.xpose.msra.mxu0 0
        %908 = vmatprep.subr.bf16.mxu0 0
        %909 = vmatpush1.bf16.xpose.msra.mxu0 0
        %910 = vmatprep.subr.bf16.mxu0 0
        %911 = vmatpush1.bf16.xpose.msra.mxu0 0
        %912 = vmatprep.subr.bf16.mxu0 0
        %913 = vmatpush1.bf16.xpose.msra.mxu0 0
        %914 = vmatprep.subr.bf16.mxu0 0
        %915 = vmatpush1.bf16.xpose.msra.mxu0 0
        %916 = vmatprep.subr.bf16.mxu0 0
        %917 = vmatpush1.bf16.xpose.msra.mxu0 0
        %918 = vmatprep.subr.bf16.mxu0 0
        %919 = vmatpush1.bf16.xpose.msra.mxu0 0
        %920 = vmatprep.subr.bf16.mxu0 0
        %921 = vmatpush1.bf16.xpose.msra.mxu0 0
        %922 = vmatprep.mubr.bf16.mxu0 0
        %923 = vmatmul.mubr.bf16.gmra.mrb[0].mxu0 %v885
        %v924 = vpop.f32.mrb[0].mxu0
        %v925 = vadd.f32 0.0, %v924
        %v926 = vpop.f32.mrb[0].mxu0
        %v927 = vpop.f32.mrb[0].mxu0
        %v928 = vpop.f32.mrb[0].mxu0
        %929 = vdwg.mxu0
        %v930 = vsel %vm563, %v925, -inf
        %931 = vmax.xlane.f32.xlu0 %v930
        %v932 = vpop.xlane.xlu0 %931
        %v933 = vsub.f32 %v925, %v932
        %v934 = vmul.f32 %v933, 1.442695
        %v935 = vpow.pop %v934
        %v936 = vsel %vm563, %v935, 0.0
        %937 = vadd.xlane.f32.xlu0 %v936
        %v938 = vpop.xlane.xlu0 %937
        %v939 = vpack.c.bf16 %v935, %v935
        %941 = vrot.lane.b32.xlu0 %v877, 104
        %v942 = vpop.permute.xlu0 %941
        %v945 = vsel %vm563, %v939, 0
        %947 = vmatprep.subr.bf16.mxu0 0
        %948 = vmatpush1.bf16.msra.mxu0 %v942
        %949 = vmatprep.subr.bf16.mxu0 0
        %950 = vmatpush1.bf16.msra.mxu0 0
        %951 = vmatprep.subr.bf16.mxu0 0
        %952 = vmatpush1.bf16.msra.mxu0 0
        %953 = vmatprep.subr.bf16.mxu0 0
        %954 = vmatpush1.bf16.msra.mxu0 0
        %955 = vmatprep.subr.bf16.mxu0 0
        %956 = vmatpush1.bf16.msra.mxu0 0
        %957 = vmatprep.subr.bf16.mxu0 0
        %958 = vmatpush1.bf16.msra.mxu0 0
        %959 = vmatprep.subr.bf16.mxu0 0
        %960 = vmatpush1.bf16.msra.mxu0 0
        %961 = vmatprep.subr.bf16.mxu0 0
        %962 = vmatpush1.bf16.msra.mxu0 0
        %963 = vmatprep.subr.bf16.mxu0 0
        %964 = vmatpush1.bf16.msra.mxu0 0
        %965 = vmatprep.subr.bf16.mxu0 0
        %966 = vmatpush1.bf16.msra.mxu0 0
        %967 = vmatprep.subr.bf16.mxu0 0
        %968 = vmatpush1.bf16.msra.mxu0 0
        %969 = vmatprep.subr.bf16.mxu0 0
        %970 = vmatpush1.bf16.msra.mxu0 0
        %971 = vmatprep.subr.bf16.mxu0 0
        %972 = vmatpush1.bf16.msra.mxu0 0
        %973 = vmatprep.subr.bf16.mxu0 0
        %974 = vmatpush1.bf16.msra.mxu0 0
        %975 = vmatprep.subr.bf16.mxu0 0
        %976 = vmatpush1.bf16.msra.mxu0 0
        %977 = vmatprep.subr.bf16.mxu0 0
        %978 = vmatpush1.bf16.msra.mxu0 0
        %979 = vmatprep.mubr.bf16.mxu0 0
        %980 = vmatmul.mubr.bf16.gmra.mrb[0].mxu0 %v945
        %v981 = vpop.f32.mrb[0].mxu0
        %v982 = vadd.f32 0.0, %v981
        %v983 = vpop.f32.mrb[0].mxu0
        %v984 = vpop.f32.mrb[0].mxu0
        %v985 = vpop.f32.mrb[0].mxu0
        %986 = vdwg.mxu0
        %v987 = vrcp.pop %v938
        %v988 = vmul.f32 %v982, %v987
        %990 = vrot.lane.b32.xlu0 %v988, 24
        %v991 = vpop.permute.xlu0 %990
        %vm993 = vcmask 261312
        %994 = vst.msk [vmem:[#allocation2] sm:$0xff] %vm993, %v991
        %v995 = vld [vmem:[#allocation2] sm:$0xff]
        %v996 = vpack.c.bf16 %v995, %v995
        %v997 = vld [vmem:[#allocation9] sm:$0xf]
        %v998 = vld [vmem:[#allocation9 + $0x4] sm:$0xf]
        %v999 = vld [vmem:[#allocation9 + $0x8] sm:$0xf]
        %v1000 = vld [vmem:[#allocation9 + $0xc] sm:$0xf]
        %v1001 = vld [vmem:[#allocation11] sm:$0x1]
        %v1003 = vlaneseq
        %v1004 = vshrl.u32 %v1003, 7
        %v1005 = vsub.s32 0, %v1004
        %v1006 = vrot.slane %v1001, %v1005
        %v1012 = vunpack.c.l.b16 %v997
        %v1013 = vunpack.c.l.b16 %v998
        %v1014 = vunpack.c.l.b16 %v999
        %v1015 = vunpack.c.l.b16 %v1000
        %v1016 = vpack.c.b16 %v1013, %v1012
        %v1017 = vpack.c.b16 %v1015, %v1014
        %vm1020 = vcmask 261120
        %v1022 = vsel %vm1020, %v996, 0
        %1024 = vmatprep.subr.bf16.mxu0 0
        %1025 = vmatpush1.bf16.msra.mxu0 %v1016
        %1026 = vmatprep.subr.bf16.mxu0 0
        %1027 = vmatpush1.bf16.msra.mxu0 %v1017
        %1028 = vmatprep.subr.bf16.mxu0 0
        %1029 = vmatpush1.bf16.msra.mxu0 0
        %1030 = vmatprep.subr.bf16.mxu0 0
        %1031 = vmatpush1.bf16.msra.mxu0 0
        %1032 = vmatprep.subr.bf16.mxu0 0
        %1033 = vmatpush1.bf16.msra.mxu0 0
        %1034 = vmatprep.subr.bf16.mxu0 0
        %1035 = vmatpush1.bf16.msra.mxu0 0
        %1036 = vmatprep.subr.bf16.mxu0 0
        %1037 = vmatpush1.bf16.msra.mxu0 0
        %1038 = vmatprep.subr.bf16.mxu0 0
        %1039 = vmatpush1.bf16.msra.mxu0 0
        %1040 = vmatprep.subr.bf16.mxu0 0
        %1041 = vmatpush1.bf16.msra.mxu0 0
        %1042 = vmatprep.subr.bf16.mxu0 0
        %1043 = vmatpush1.bf16.msra.mxu0 0
        %1044 = vmatprep.subr.bf16.mxu0 0
        %1045 = vmatpush1.bf16.msra.mxu0 0
        %1046 = vmatprep.subr.bf16.mxu0 0
        %1047 = vmatpush1.bf16.msra.mxu0 0
        %1048 = vmatprep.subr.bf16.mxu0 0
        %1049 = vmatpush1.bf16.msra.mxu0 0
        %1050 = vmatprep.subr.bf16.mxu0 0
        %1051 = vmatpush1.bf16.msra.mxu0 0
        %1052 = vmatprep.subr.bf16.mxu0 0
        %1053 = vmatpush1.bf16.msra.mxu0 0
        %1054 = vmatprep.subr.bf16.mxu0 0
        %1055 = vmatpush1.bf16.msra.mxu0 0
        %1056 = vmatprep.mubr.bf16.mxu0 0
        %1057 = vmatmul.mubr.bf16.gmra.mrb[0].mxu0 %v1022
        %v1058 = vpop.f32.mrb[0].mxu0
        %v1059 = vadd.f32 %v1006, %v1058
        %v1060 = vpop.f32.mrb[0].mxu0
        %v1061 = vpop.f32.mrb[0].mxu0
        %v1062 = vpop.f32.mrb[0].mxu0
        %1063 = vdwg.mxu0
        %v1064 = vld [vmem:[%s451] sm:$0xff]
        %v1065 = vadd.f32 %v1059, %v1064
        %v1066 = vsel %vm1020, %v1065, 0.0
        %1067 = vadd.xlane.f32.xlu0 %v1066
        %v1068 = vpop.xlane.xlu0 %1067
        %v1069 = vrcp.pop 32.0
        %v1070 = vmul.f32 %v1068, %v1069
        %v1071 = vsub.f32 %v1065, %v1070
        %v1072 = vmul.f32 %v1071, %v1071
        %v1073 = vsel %vm1020, %v1072, 0.0
        %1074 = vadd.xlane.f32.xlu0 %v1073
        %v1075 = vpop.xlane.xlu0 %1074
        %v1076 = vmul.f32 %v1075, %v1069
        %v1077 = vadd.f32 %v1076, 1e-05
        %v1078 = vrsqrt.pop %v1077
        %v1079 = vmul.f32 %v1071, %v1078
        %v1080 = vld [vmem:[#allocation14] sm:$0x1]
        %v1082 = vlaneseq
        %v1083 = vshrl.u32 %v1082, 7
        %v1084 = vsub.s32 0, %v1083
        %v1085 = vrot.slane %v1080, %v1084
        %v1087 = vmul.f32 %v1079, %v1085
        %v1088 = vld [vmem:[#allocation15] sm:$0x1]
        %v1090 = vlaneseq
        %v1091 = vshrl.u32 %v1090, 7
        %v1092 = vsub.s32 0, %v1091
        %v1093 = vrot.slane %v1088, %v1092
        %v1095 = vadd.f32 %v1087, %v1093
        %1096 = vst.msk [vmem:[%s506] sm:$0xff] %vm1020, %v1095
        %s1097 = sand.u32 %s247, 1
        %s1098 = scalar_lea.sflag [#allocation5], %s1097
        %s1099 = sand.u32 %s247, 1
        %s1100 = smul.addr %s1099, 8
        %s1101 = scalar_lea.vmem [#allocation17], %s1100
        // Predicated region
        $region85: #{transformer_forward.30} parent=51 // pred_check
          %p1102 = pneg %p257
        $region86: #{transformer_forward.30} parent=51 // pred_check_branch
          %1104 = sbr.rel (%p1102) target = $region88
        $region87: #{transformer_forward.30} parent=51 // pred_region
          %s1106 = ssub.s32 128, 128
          %1107 = vsyncadd %s1098, %s1106
          %s1108 = sadd.s32 %s38, %s37
          %s1109 = smul.addr %s1108, 128
          %s1110 = scalar_lea.hbm %s8, %s1109
          %s1112 = sshll.u32 %s1101, 4
          %s1113 = int_to_ptr.vmem [resolvable:$true] %s1112
          %1115 = dma.vmem_to_hbm [thread:$0]  %s1113, 128, %s1110, %s1098
        $region88: #{transformer_forward.30} parent=51 // pred_fallthru
          _
      $region52: #{transformer_forward.30} parent=5 // pred_fallthru
        _
      %p1116 = scmp.le.s32.totalorder 2, %s28
      // Predicated region
      $region89: #{transformer_forward.30} parent=5 // pred_check
        %p1117 = pneg %p1116
      $region90: #{transformer_forward.30} parent=5 // pred_check_branch
        %1119 = sbr.rel (%p1117) target = $region92
      $region91: #{transformer_forward.30} parent=5 // pred_region
        %s1120 = ssub.s32 %s28, 2
        // Predicated region
        $region93: #{transformer_forward.30} parent=91 // pred_check
          %p1121 = pneg %p263
        $region94: #{transformer_forward.30} parent=91 // pred_check_branch
          %1123 = sbr.rel (%p1121) target = $region96
        $region95: #{transformer_forward.30} parent=91 // pred_region
          %s1124 = sand.u32 %s248, 1
          %s1125 = scalar_lea.sflag [#allocation5], %s1124
          %s1126 = sand.u32 %s248, 1
          %s1127 = smul.addr %s1126, 8
          %s1128 = scalar_lea.vmem [#allocation17], %s1127
          %1129 = dma.done %s1125, 128
        $region96: #{transformer_forward.30} parent=91 // pred_fallthru
          _
      $region92: #{transformer_forward.30} parent=5 // pred_fallthru
        _
    $region6: #{transformer_forward.30} parent=1 // loop_footer
      %s32 = sadd.s32 1, %s28
    $region7: #{transformer_forward.30} parent=1 // loop_footer_branch
      %27 = sbr.rel target = $region3
    $region8: #{transformer_forward.30} parent=1 // loop_exit
      _
    %1130 = vsyncpa [#allocation4], 1
    %s1131 = scalar_lea.sflag [#allocation4], 1
    %1132 = vsyncpa %s1131, 1
    %1133 = vsyncpa [#allocation7], 1
    %s1134 = scalar_lea.sflag [#allocation7], 1
    %1135 = vsyncpa %s1134, 1
    %1136 = vsyncpa [#allocation10], 1
    %1137 = vsyncpa [#allocation13], 1
    %s1138 = scalar_lea.sflag [#allocation13], 1
    %1139 = vsyncpa %s1138, 1
    %1140 = vsyncpa [#allocation16], 1
    %1141 = vsyncpa [#allocation5], 1
    %s1142 = scalar_lea.sflag [#allocation5], 1
    %1143 = vsyncpa %s1142, 1

// kernel: transformer_forward.31
$region0: #{transformer_forward.31}
  #allocation0 [shape = 'u32[]', space=smem, size = 0x4, offset = 0x4, fixed_abs, tag = 'smem constant byte address 0x4 - core index']
  #allocation1 [shape = 'u32[144,128]{1,0:T(1,128)}', space=vmem, size = 0x12000, scoped, tag = 'internal scratch']
  #allocation2 [shape = 'f32[16,32]{1,0:T(8,128)}', space=vmem, size = 0x2000, scoped, tag = 'scratch operand']
  %s0 = inlined_call_operand.hbm [shape: f32[16,32], index: 0, kind: input, shape index: {}]
  %s1 = inlined_call_operand.hbm [shape: bf16[32,64], index: 1, kind: input, shape index: {}]
  %s2 = inlined_call_operand.hbm [shape: f32[1,64], index: 2, kind: input, shape index: {}]
  %s3 = inlined_call_operand.hbm [shape: bf16[64,32], index: 3, kind: input, shape index: {}]
  %s4 = inlined_call_operand.hbm [shape: f32[1,32], index: 4, kind: input, shape index: {}]
  %s5 = inlined_call_operand.hbm [shape: f32[1,32], index: 5, kind: input, shape index: {}]
  %s6 = inlined_call_operand.hbm [shape: f32[1,32], index: 6, kind: input, shape index: {}]
  %s7 = inlined_call_operand.hbm [shape: f32[16,32], index: 7, kind: output, shape index: {}]
  %s8 = sld [smem:[#allocation0]]
  $region74: #{transformer_forward.31} parent=0
    _
  %s10 = ssub.s32 1, %s8
  %s11 = scalar_select 0, %s10, %s8
  $region1: #{transformer_forward.31} parent=0
    #allocation3 [shape = 'u8[8192]{0}', space=vmem, size = 0x2000, scoped, tag = 'input window, operand 0, single buffered']
    #allocation4 [shape = 's32[1]{0}', space=sflag, size = 0x4, scoped, tag = 'scoped memory for transformer_forward.31']
    #allocation5 [shape = 's32[1]{0}', space=sflag, size = 0x4, scoped, tag = 'scoped memory for transformer_forward.31']
    #allocation6 [shape = 'u8[8192]{0}', space=vmem, size = 0x2000, scoped, tag = 'input window, operand 1, single buffered']
    #allocation7 [shape = 's32[1]{0}', space=sflag, size = 0x4, scoped, tag = 'scoped memory for transformer_forward.31']
    #allocation8 [shape = 'u8[512]{0}', space=vmem, size = 0x400, scoped, tag = 'input window, operand 2, single buffered']
    #allocation9 [shape = 'u8[16384]{0}', space=vmem, size = 0x4000, scoped, tag = 'input window, operand 3, single buffered']
    #allocation10 [shape = 's32[1]{0}', space=sflag, size = 0x4, scoped, tag = 'scoped memory for transformer_forward.31']
    #allocation11 [shape = 'u8[512]{0}', space=vmem, size = 0x400, scoped, tag = 'input window, operand 4, single buffered']
    #allocation12 [shape = 'u8[512]{0}', space=vmem, size = 0x400, scoped, tag = 'input window, operand 5, single buffered']
    #allocation13 [shape = 's32[1]{0}', space=sflag, size = 0x4, scoped, tag = 'scoped memory for transformer_forward.31']
    #allocation14 [shape = 'u8[512]{0}', space=vmem, size = 0x400, scoped, tag = 'input window, operand 6, single buffered']
    #allocation15 [shape = 'u8[8192]{0}', space=vmem, size = 0x2000, scoped, tag = 'output window, operand 0, single buffered']
    %12 = vsyncpa [#allocation4], 0
    %13 = vsyncpa [#allocation7], 0
    %14 = vsyncpa [#allocation10], 0
    %15 = vsyncpa [#allocation13], 0
    %16 = vsyncpa [#allocation5], 0
    // Predicated region
    $region2: #{transformer_forward.31} parent=1 // pred_check
      _
    $region3: #{transformer_forward.31} parent=1 // pred_check_branch
      %18 = sbr.rel (0) target = $region5
    $region4: #{transformer_forward.31} parent=1 // pred_region
      %s20 = ssub.s32 256, 256
      %21 = vsyncadd [#allocation4], %s20
      %s22 = sshll.u32 [#allocation3], 4
      %s23 = int_to_ptr.vmem [resolvable:$true] %s22
      %28 = dma.hbm_to_vmem [thread:$0]  %s0, 256, %s23, [#allocation4], 128, 128, 8
    $region5: #{transformer_forward.31} parent=1 // pred_fallthru
      _
    // Predicated region
    $region6: #{transformer_forward.31} parent=1 // pred_check
      _
    $region7: #{transformer_forward.31} parent=1 // pred_check_branch
      %30 = sbr.rel (0) target = $region9
    $region8: #{transformer_forward.31} parent=1 // pred_region
      %s32 = ssub.s32 256, 256
      %33 = vsyncadd [#allocation7], %s32
      %s34 = sshll.u32 [#allocation6], 4
      %s35 = int_to_ptr.vmem [resolvable:$true] %s34
      %40 = dma.hbm_to_vmem [thread:$0]  %s1, 256, %s35, [#allocation7], 64, 64, 4
    $region9: #{transformer_forward.31} parent=1 // pred_fallthru
      _
    // Predicated region
    $region10: #{transformer_forward.31} parent=1 // pred_check
      _
    $region11: #{transformer_forward.31} parent=1 // pred_check_branch
      %42 = sbr.rel (0) target = $region13
    $region12: #{transformer_forward.31} parent=1 // pred_region
      %s44 = ssub.s32 16, 16
      %45 = vsyncadd [#allocation7], %s44
      %s47 = sshll.u32 [#allocation8], 4
      %s48 = int_to_ptr.vmem [resolvable:$true] %s47
      %50 = dma.hbm_to_vmem [thread:$0]  %s2, 16, %s48, [#allocation7]
    $region13: #{transformer_forward.31} parent=1 // pred_fallthru
      _
    // Predicated region
    $region14: #{transformer_forward.31} parent=1 // pred_check
      _
    $region15: #{transformer_forward.31} parent=1 // pred_check_branch
      %52 = sbr.rel (0) target = $region17
    $region16: #{transformer_forward.31} parent=1 // pred_region
      %s54 = ssub.s32 512, 512
      %55 = vsyncadd [#allocation10], %s54
      %s56 = sshll.u32 [#allocation9], 4
      %s57 = int_to_ptr.vmem [resolvable:$true] %s56
      %62 = dma.hbm_to_vmem [thread:$0]  %s3, 512, %s57, [#allocation10], 64, 64, 4
    $region17: #{transformer_forward.31} parent=1 // pred_fallthru
      _
    // Predicated region
    $region18: #{transformer_forward.31} parent=1 // pred_check
      _
    $region19: #{transformer_forward.31} parent=1 // pred_check_branch
      %64 = sbr.rel (0) target = $region21
    $region20: #{transformer_forward.31} parent=1 // pred_region
      %s66 = ssub.s32 16, 16
      %67 = vsyncadd [#allocation10], %s66
      %s69 = sshll.u32 [#allocation11], 4
      %s70 = int_to_ptr.vmem [resolvable:$true] %s69
      %72 = dma.hbm_to_vmem [thread:$0]  %s4, 16, %s70, [#allocation10]
    $region21: #{transformer_forward.31} parent=1 // pred_fallthru
      _
    // Predicated region
    $region22: #{transformer_forward.31} parent=1 // pred_check
      _
    $region23: #{transformer_forward.31} parent=1 // pred_check_branch
      %74 = sbr.rel (0) target = $region25
    $region24: #{transformer_forward.31} parent=1 // pred_region
      %s76 = ssub.s32 16, 16
      %77 = vsyncadd [#allocation13], %s76
      %s79 = sshll.u32 [#allocation12], 4
      %s80 = int_to_ptr.vmem [resolvable:$true] %s79
      %82 = dma.hbm_to_vmem [thread:$0]  %s5, 16, %s80, [#allocation13]
    $region25: #{transformer_forward.31} parent=1 // pred_fallthru
      _
    // Predicated region
    $region26: #{transformer_forward.31} parent=1 // pred_check
      _
    $region27: #{transformer_forward.31} parent=1 // pred_check_branch
      %84 = sbr.rel (0) target = $region29
    $region28: #{transformer_forward.31} parent=1 // pred_region
      %s86 = ssub.s32 16, 16
      %87 = vsyncadd [#allocation13], %s86
      %s89 = sshll.u32 [#allocation14], 4
      %s90 = int_to_ptr.vmem [resolvable:$true] %s89
      %92 = dma.hbm_to_vmem [thread:$0]  %s6, 16, %s90, [#allocation13]
    $region29: #{transformer_forward.31} parent=1 // pred_fallthru
      _
    // Predicated region
    $region30: #{transformer_forward.31} parent=1 // pred_check
      _
    $region31: #{transformer_forward.31} parent=1 // pred_check_branch
      %94 = sbr.rel (0) target = $region33
    $region32: #{transformer_forward.31} parent=1 // pred_region
      %95 = dma.done [#allocation4], 256
    $region33: #{transformer_forward.31} parent=1 // pred_fallthru
      _
    // Predicated region
    $region34: #{transformer_forward.31} parent=1 // pred_check
      _
    $region35: #{transformer_forward.31} parent=1 // pred_check_branch
      %97 = sbr.rel (0) target = $region37
    $region36: #{transformer_forward.31} parent=1 // pred_region
      %98 = dma.done [#allocation7], 256
    $region37: #{transformer_forward.31} parent=1 // pred_fallthru
      _
    // Predicated region
    $region38: #{transformer_forward.31} parent=1 // pred_check
      _
    $region39: #{transformer_forward.31} parent=1 // pred_check_branch
      %100 = sbr.rel (0) target = $region41
    $region40: #{transformer_forward.31} parent=1 // pred_region
      %101 = dma.done [#allocation7], 16
    $region41: #{transformer_forward.31} parent=1 // pred_fallthru
      _
    // Predicated region
    $region42: #{transformer_forward.31} parent=1 // pred_check
      _
    $region43: #{transformer_forward.31} parent=1 // pred_check_branch
      %103 = sbr.rel (0) target = $region45
    $region44: #{transformer_forward.31} parent=1 // pred_region
      %104 = dma.done [#allocation10], 512
    $region45: #{transformer_forward.31} parent=1 // pred_fallthru
      _
    // Predicated region
    $region46: #{transformer_forward.31} parent=1 // pred_check
      _
    $region47: #{transformer_forward.31} parent=1 // pred_check_branch
      %106 = sbr.rel (0) target = $region49
    $region48: #{transformer_forward.31} parent=1 // pred_region
      %107 = dma.done [#allocation10], 16
    $region49: #{transformer_forward.31} parent=1 // pred_fallthru
      _
    // Predicated region
    $region50: #{transformer_forward.31} parent=1 // pred_check
      _
    $region51: #{transformer_forward.31} parent=1 // pred_check_branch
      %109 = sbr.rel (0) target = $region53
    $region52: #{transformer_forward.31} parent=1 // pred_region
      %110 = dma.done [#allocation13], 16
    $region53: #{transformer_forward.31} parent=1 // pred_fallthru
      _
    // Predicated region
    $region54: #{transformer_forward.31} parent=1 // pred_check
      _
    $region55: #{transformer_forward.31} parent=1 // pred_check_branch
      %112 = sbr.rel (0) target = $region57
    $region56: #{transformer_forward.31} parent=1 // pred_region
      %113 = dma.done [#allocation13], 16
    $region57: #{transformer_forward.31} parent=1 // pred_fallthru
      _
    %p115 = scmp.eq.s32.totalorder 0, 0
    // Predicated region
    $region58: #{transformer_forward.31} parent=1 // pred_check
      %p116 = pneg %p115
    $region59: #{transformer_forward.31} parent=1 // pred_check_branch
      %118 = sbr.rel (%p116) target = $region61
    $region60: #{transformer_forward.31} parent=1 // pred_region
      %vm119 = vcmask 261120
      %120 = vst.msk [vmem:[#allocation2] sm:$0xff] %vm119, 0.0
      %121 = vst.msk [vmem:[#allocation2 + $0x8] sm:$0xff] %vm119, 0.0
    $region61: #{transformer_forward.31} parent=1 // pred_fallthru
      _
    %v122 = vld [vmem:[#allocation3] sm:$0xff]
    %v123 = vld [vmem:[#allocation3 + $0x8] sm:$0xff]
    %v124 = vpack.c.bf16 %v123, %v122
    %v125 = vld [vmem:[#allocation6] sm:$0xf]
    %v126 = vld [vmem:[#allocation6 + $0x4] sm:$0xf]
    %v127 = vld [vmem:[#allocation6 + $0x8] sm:$0xf]
    %v128 = vld [vmem:[#allocation6 + $0xc] sm:$0xf]
    %v129 = vld [vmem:[#allocation8] sm:$0x1]
    %v131 = vlaneseq
    %v132 = vshrl.u32 %v131, 7
    %v133 = vsub.s32 0, %v132
    %v134 = vrot.slane %v129, %v133
    %v140 = vunpack.c.l.b16 %v125
    %v141 = vunpack.c.l.b16 %v126
    %v142 = vunpack.c.l.b16 %v127
    %v143 = vunpack.c.l.b16 %v128
    %v144 = vpack.c.b16 %v141, %v140
    %v145 = vpack.c.b16 %v143, %v142
    %vm148 = vcmask 261120
    %v150 = vsel %vm148, %v124, 0
    %152 = vmatprep.subr.bf16.mxu0 0
    %153 = vmatpush1.bf16.msra.mxu0 %v144
    %154 = vmatprep.subr.bf16.mxu0 0
    %155 = vmatpush1.bf16.msra.mxu0 %v145
    %156 = vmatprep.subr.bf16.mxu0 0
    %157 = vmatpush1.bf16.msra.mxu0 0
    %158 = vmatprep.subr.bf16.mxu0 0
    %159 = vmatpush1.bf16.msra.mxu0 0
    %160 = vmatprep.subr.bf16.mxu0 0
    %161 = vmatpush1.bf16.msra.mxu0 0
    %162 = vmatprep.subr.bf16.mxu0 0
    %163 = vmatpush1.bf16.msra.mxu0 0
    %164 = vmatprep.subr.bf16.mxu0 0
    %165 = vmatpush1.bf16.msra.mxu0 0
    %166 = vmatprep.subr.bf16.mxu0 0
    %167 = vmatpush1.bf16.msra.mxu0 0
    %168 = vmatprep.subr.bf16.mxu0 0
    %169 = vmatpush1.bf16.msra.mxu0 0
    %170 = vmatprep.subr.bf16.mxu0 0
    %171 = vmatpush1.bf16.msra.mxu0 0
    %172 = vmatprep.subr.bf16.mxu0 0
    %173 = vmatpush1.bf16.msra.mxu0 0
    %174 = vmatprep.subr.bf16.mxu0 0
    %175 = vmatpush1.bf16.msra.mxu0 0
    %176 = vmatprep.subr.bf16.mxu0 0
    %177 = vmatpush1.bf16.msra.mxu0 0
    %178 = vmatprep.subr.bf16.mxu0 0
    %179 = vmatpush1.bf16.msra.mxu0 0
    %180 = vmatprep.subr.bf16.mxu0 0
    %181 = vmatpush1.bf16.msra.mxu0 0
    %182 = vmatprep.subr.bf16.mxu0 0
    %183 = vmatpush1.bf16.msra.mxu0 0
    %184 = vmatprep.mubr.bf16.mxu0 0
    %185 = vmatmul.mubr.bf16.gmra.mrb[0].mxu0 %v150
    %v186 = vpop.f32.mrb[0].mxu0
    %v187 = vadd.f32 %v134, %v186
    %v188 = vpop.f32.mrb[0].mxu0
    %v189 = vpop.f32.mrb[0].mxu0
    %v190 = vadd.f32 %v134, %v189
    %v191 = vpop.f32.mrb[0].mxu0
    %192 = vdwg.mxu0
    %v193 = vmax.f32 %v187, 0.0
    %v194 = vmax.f32 %v190, 0.0
    %v195 = vld [vmem:[#allocation2] sm:$0xff]
    %v196 = vld [vmem:[#allocation2 + $0x8] sm:$0xff]
    %v197 = vpack.c.bf16 %v194, %v193
    %v198 = vld [vmem:[#allocation9] sm:$0xf]
    %v199 = vld [vmem:[#allocation9 + $0x4] sm:$0xf]
    %v200 = vld [vmem:[#allocation9 + $0x8] sm:$0xf]
    %v201 = vld [vmem:[#allocation9 + $0xc] sm:$0xf]
    %v202 = vld [vmem:[#allocation9 + $0x10] sm:$0xf]
    %v203 = vld [vmem:[#allocation9 + $0x14] sm:$0xf]
    %v204 = vld [vmem:[#allocation9 + $0x18] sm:$0xf]
    %v205 = vld [vmem:[#allocation9 + $0x1c] sm:$0xf]
    %v214 = vunpack.c.l.b16 %v198
    %v215 = vunpack.c.l.b16 %v199
    %v216 = vunpack.c.l.b16 %v200
    %v217 = vunpack.c.l.b16 %v201
    %v218 = vunpack.c.l.b16 %v202
    %v219 = vunpack.c.l.b16 %v203
    %v220 = vunpack.c.l.b16 %v204
    %v221 = vunpack.c.l.b16 %v205
    %v222 = vpack.c.b16 %v215, %v214
    %v223 = vpack.c.b16 %v217, %v216
    %v224 = vpack.c.b16 %v219, %v218
    %v225 = vpack.c.b16 %v221, %v220
    %vm230 = vcmask 523264
    %v232 = vsel %vm230, %v197, 0
    %234 = vmatprep.subr.bf16.mxu0 0
    %235 = vmatpush1.bf16.msra.mxu0 %v222
    %236 = vmatprep.subr.bf16.mxu0 0
    %237 = vmatpush1.bf16.msra.mxu0 %v223
    %238 = vmatprep.subr.bf16.mxu0 0
    %239 = vmatpush1.bf16.msra.mxu0 %v224
    %240 = vmatprep.subr.bf16.mxu0 0
    %241 = vmatpush1.bf16.msra.mxu0 %v225
    %242 = vmatprep.subr.bf16.mxu0 0
    %243 = vmatpush1.bf16.msra.mxu0 0
    %244 = vmatprep.subr.bf16.mxu0 0
    %245 = vmatpush1.bf16.msra.mxu0 0
    %246 = vmatprep.subr.bf16.mxu0 0
    %247 = vmatpush1.bf16.msra.mxu0 0
    %248 = vmatprep.subr.bf16.mxu0 0
    %249 = vmatpush1.bf16.msra.mxu0 0
    %250 = vmatprep.subr.bf16.mxu0 0
    %251 = vmatpush1.bf16.msra.mxu0 0
    %252 = vmatprep.subr.bf16.mxu0 0
    %253 = vmatpush1.bf16.msra.mxu0 0
    %254 = vmatprep.subr.bf16.mxu0 0
    %255 = vmatpush1.bf16.msra.mxu0 0
    %256 = vmatprep.subr.bf16.mxu0 0
    %257 = vmatpush1.bf16.msra.mxu0 0
    %258 = vmatprep.subr.bf16.mxu0 0
    %259 = vmatpush1.bf16.msra.mxu0 0
    %260 = vmatprep.subr.bf16.mxu0 0
    %261 = vmatpush1.bf16.msra.mxu0 0
    %262 = vmatprep.subr.bf16.mxu0 0
    %263 = vmatpush1.bf16.msra.mxu0 0
    %264 = vmatprep.subr.bf16.mxu0 0
    %265 = vmatpush1.bf16.msra.mxu0 0
    %266 = vmatprep.mubr.bf16.mxu0 0
    %267 = vmatmul.mubr.bf16.gmra.mrb[0].mxu0 %v232
    %v268 = vpop.f32.mrb[0].mxu0
    %v269 = vadd.f32 0.0, %v268
    %v270 = vpop.f32.mrb[0].mxu0
    %v271 = vpop.f32.mrb[0].mxu0
    %v272 = vadd.f32 0.0, %v271
    %v273 = vpop.f32.mrb[0].mxu0
    %274 = vdwg.mxu0
    %v275 = vadd.f32 %v195, %v269
    %v276 = vadd.f32 %v196, %v272
    %277 = vst.msk [vmem:[#allocation2] sm:$0xff] %vm148, %v275
    %278 = vst.msk [vmem:[#allocation2 + $0x8] sm:$0xff] %vm148, %v276
    // Predicated region
    $region62: #{transformer_forward.31} parent=1 // pred_check
      %p279 = pneg %p115
    $region63: #{transformer_forward.31} parent=1 // pred_check_branch
      %281 = sbr.rel (%p279) target = $region65
    $region64: #{transformer_forward.31} parent=1 // pred_region
      %v282 = vld [vmem:[#allocation2] sm:$0xff]
      %v283 = vld [vmem:[#allocation2 + $0x8] sm:$0xff]
      %v284 = vld [vmem:[#allocation11] sm:$0x1]
      %v286 = vlaneseq
      %v287 = vshrl.u32 %v286, 7
      %v288 = vsub.s32 0, %v287
      %v289 = vrot.slane %v284, %v288
      %v291 = vadd.f32 %v282, %v289
      %v292 = vadd.f32 %v283, %v289
      %v293 = vadd.f32 %v291, %v122
      %v294 = vadd.f32 %v292, %v123
      %v295 = vsel %vm148, %v293, 0.0
      %296 = vadd.xlane.f32.xlu0 %v295
      %v297 = vpop.xlane.xlu0 %296
      %v298 = vsel %vm148, %v294, 0.0
      %299 = vadd.xlane.f32.xlu0 %v298
      %v300 = vpop.xlane.xlu0 %299
      %v301 = vrcp.pop 32.0
      %v302 = vmul.f32 %v297, %v301
      %v303 = vmul.f32 %v300, %v301
      %v304 = vsub.f32 %v293, %v302
      %v305 = vsub.f32 %v294, %v303
      %v306 = vmul.f32 %v304, %v304
      %v307 = vmul.f32 %v305, %v305
      %v308 = vsel %vm148, %v306, 0.0
      %309 = vadd.xlane.f32.xlu0 %v308
      %v310 = vpop.xlane.xlu0 %309
      %v311 = vsel %vm148, %v307, 0.0
      %312 = vadd.xlane.f32.xlu0 %v311
      %v313 = vpop.xlane.xlu0 %312
      %v314 = vmul.f32 %v310, %v301
      %v315 = vmul.f32 %v313, %v301
      %v316 = vadd.f32 %v314, 1e-05
      %v317 = vadd.f32 %v315, 1e-05
      %v318 = vrsqrt.pop %v316
      %v319 = vrsqrt.pop %v317
      %v320 = vmul.f32 %v304, %v318
      %v321 = vmul.f32 %v305, %v319
      %v322 = vld [vmem:[#allocation12] sm:$0x1]
      %v324 = vlaneseq
      %v325 = vshrl.u32 %v324, 7
      %v326 = vsub.s32 0, %v325
      %v327 = vrot.slane %v322, %v326
      %v329 = vmul.f32 %v320, %v327
      %v330 = vmul.f32 %v321, %v327
      %v331 = vld [vmem:[#allocation14] sm:$0x1]
      %v333 = vlaneseq
      %v334 = vshrl.u32 %v333, 7
      %v335 = vsub.s32 0, %v334
      %v336 = vrot.slane %v331, %v335
      %v338 = vadd.f32 %v329, %v336
      %v339 = vadd.f32 %v330, %v336
      %340 = vst.msk [vmem:[#allocation15] sm:$0xff] %vm148, %v338
      %341 = vst.msk [vmem:[#allocation15 + $0x8] sm:$0xff] %vm148, %v339
    $region65: #{transformer_forward.31} parent=1 // pred_fallthru
      _
    // Predicated region
    $region66: #{transformer_forward.31} parent=1 // pred_check
      _
    $region67: #{transformer_forward.31} parent=1 // pred_check_branch
      %343 = sbr.rel (0) target = $region69
    $region68: #{transformer_forward.31} parent=1 // pred_region
      %s345 = ssub.s32 256, 256
      %346 = vsyncadd [#allocation5], %s345
      %s347 = sshll.u32 [#allocation15], 4
      %s348 = int_to_ptr.vmem [resolvable:$true] %s347
      %353 = dma.vmem_to_hbm [thread:$0]  %s348, 256, %s7, [#allocation5], 128, 128, 8
    $region69: #{transformer_forward.31} parent=1 // pred_fallthru
      _
    // Predicated region
    $region70: #{transformer_forward.31} parent=1 // pred_check
      _
    $region71: #{transformer_forward.31} parent=1 // pred_check_branch
      %355 = sbr.rel (0) target = $region73
    $region72: #{transformer_forward.31} parent=1 // pred_region
      %356 = dma.done [#allocation5], 256
    $region73: #{transformer_forward.31} parent=1 // pred_fallthru
      _
    %357 = vsyncpa [#allocation4], 1
    %358 = vsyncpa [#allocation7], 1
    %359 = vsyncpa [#allocation10], 1
    %360 = vsyncpa [#allocation13], 1
    %361 = vsyncpa [#allocation5], 1

// kernel: transformer_forward.37
$region0: #{transformer_forward.37}
  #allocation0 [shape = 'u32[]', space=smem, size = 0x4, offset = 0x4, fixed_abs, tag = 'smem constant byte address 0x4 - core index']
  #allocation1 [shape = 'u32[144,128]{1,0:T(1,128)}', space=vmem, size = 0x12000, scoped, tag = 'internal scratch']
  %s0 = inlined_call_operand.hbm [shape: f32[16,32], index: 0, kind: input, shape index: {}]
  %s1 = inlined_call_operand.hbm [shape: f32[1,32], index: 1, kind: input, shape index: {}]
  %s2 = inlined_call_operand.hbm [shape: f32[1,32], index: 2, kind: input, shape index: {}]
  %s3 = inlined_call_operand.hbm [shape: f32[16,32], index: 3, kind: output, shape index: {}]
  %s4 = sld [smem:[#allocation0]]
  $region34: #{transformer_forward.37} parent=0
    _
  %s6 = ssub.s32 1, %s4
  %s7 = scalar_select 0, %s6, %s4
  $region1: #{transformer_forward.37} parent=0
    #allocation2 [shape = 'u8[8192]{0}', space=vmem, size = 0x2000, scoped, tag = 'input window, operand 0, single buffered']
    #allocation3 [shape = 's32[1]{0}', space=sflag, size = 0x4, scoped, tag = 'scoped memory for transformer_forward.37']
    #allocation4 [shape = 's32[1]{0}', space=sflag, size = 0x4, scoped, tag = 'scoped memory for transformer_forward.37']
    #allocation5 [shape = 'u8[512]{0}', space=vmem, size = 0x400, scoped, tag = 'input window, operand 1, single buffered']
    #allocation6 [shape = 's32[1]{0}', space=sflag, size = 0x4, scoped, tag = 'scoped memory for transformer_forward.37']
    #allocation7 [shape = 'u8[512]{0}', space=vmem, size = 0x400, scoped, tag = 'input window, operand 2, single buffered']
    #allocation8 [shape = 'u8[8192]{0}', space=vmem, size = 0x2000, scoped, tag = 'output window, operand 0, single buffered']
    %8 = vsyncpa [#allocation3], 0
    %9 = vsyncpa [#allocation6], 0
    %10 = vsyncpa [#allocation4], 0
    // Predicated region
    $region2: #{transformer_forward.37} parent=1 // pred_check
      _
    $region3: #{transformer_forward.37} parent=1 // pred_check_branch
      %12 = sbr.rel (0) target = $region5
    $region4: #{transformer_forward.37} parent=1 // pred_region
      %s14 = ssub.s32 256, 256
      %15 = vsyncadd [#allocation3], %s14
      %s16 = sshll.u32 [#allocation2], 4
      %s17 = int_to_ptr.vmem [resolvable:$true] %s16
      %22 = dma.hbm_to_vmem [thread:$0]  %s0, 256, %s17, [#allocation3], 128, 128, 8
    $region5: #{transformer_forward.37} parent=1 // pred_fallthru
      _
    // Predicated region
    $region6: #{transformer_forward.37} parent=1 // pred_check
      _
    $region7: #{transformer_forward.37} parent=1 // pred_check_branch
      %24 = sbr.rel (0) target = $region9
    $region8: #{transformer_forward.37} parent=1 // pred_region
      %s26 = ssub.s32 16, 16
      %27 = vsyncadd [#allocation6], %s26
      %s29 = sshll.u32 [#allocation5], 4
      %s30 = int_to_ptr.vmem [resolvable:$true] %s29
      %32 = dma.hbm_to_vmem [thread:$0]  %s1, 16, %s30, [#allocation6]
    $region9: #{transformer_forward.37} parent=1 // pred_fallthru
      _
    // Predicated region
    $region10: #{transformer_forward.37} parent=1 // pred_check
      _
    $region11: #{transformer_forward.37} parent=1 // pred_check_branch
      %34 = sbr.rel (0) target = $region13
    $region12: #{transformer_forward.37} parent=1 // pred_region
      %s36 = ssub.s32 16, 16
      %37 = vsyncadd [#allocation6], %s36
      %s39 = sshll.u32 [#allocation7], 4
      %s40 = int_to_ptr.vmem [resolvable:$true] %s39
      %42 = dma.hbm_to_vmem [thread:$0]  %s2, 16, %s40, [#allocation6]
    $region13: #{transformer_forward.37} parent=1 // pred_fallthru
      _
    // Predicated region
    $region14: #{transformer_forward.37} parent=1 // pred_check
      _
    $region15: #{transformer_forward.37} parent=1 // pred_check_branch
      %44 = sbr.rel (0) target = $region17
    $region16: #{transformer_forward.37} parent=1 // pred_region
      %45 = dma.done [#allocation3], 256
    $region17: #{transformer_forward.37} parent=1 // pred_fallthru
      _
    // Predicated region
    $region18: #{transformer_forward.37} parent=1 // pred_check
      _
    $region19: #{transformer_forward.37} parent=1 // pred_check_branch
      %47 = sbr.rel (0) target = $region21
    $region20: #{transformer_forward.37} parent=1 // pred_region
      %48 = dma.done [#allocation6], 16
    $region21: #{transformer_forward.37} parent=1 // pred_fallthru
      _
    // Predicated region
    $region22: #{transformer_forward.37} parent=1 // pred_check
      _
    $region23: #{transformer_forward.37} parent=1 // pred_check_branch
      %50 = sbr.rel (0) target = $region25
    $region24: #{transformer_forward.37} parent=1 // pred_region
      %51 = dma.done [#allocation6], 16
    $region25: #{transformer_forward.37} parent=1 // pred_fallthru
      _
    %v52 = vld [vmem:[#allocation2] sm:$0xff]
    %v53 = vld [vmem:[#allocation2 + $0x8] sm:$0xff]
    %vm54 = vcmask 261120
    %v55 = vsel %vm54, %v52, 0.0
    %56 = vadd.xlane.f32.xlu0 %v55
    %v57 = vpop.xlane.xlu0 %56
    %v58 = vsel %vm54, %v53, 0.0
    %59 = vadd.xlane.f32.xlu0 %v58
    %v60 = vpop.xlane.xlu0 %59
    %v61 = vrcp.pop 32.0
    %v62 = vmul.f32 %v57, %v61
    %v63 = vmul.f32 %v60, %v61
    %v64 = vsub.f32 %v52, %v62
    %v65 = vsub.f32 %v53, %v63
    %v66 = vmul.f32 %v64, %v64
    %v67 = vmul.f32 %v65, %v65
    %v68 = vsel %vm54, %v66, 0.0
    %69 = vadd.xlane.f32.xlu0 %v68
    %v70 = vpop.xlane.xlu0 %69
    %v71 = vsel %vm54, %v67, 0.0
    %72 = vadd.xlane.f32.xlu0 %v71
    %v73 = vpop.xlane.xlu0 %72
    %v74 = vmul.f32 %v70, %v61
    %v75 = vmul.f32 %v73, %v61
    %v76 = vadd.f32 %v74, 1e-05
    %v77 = vadd.f32 %v75, 1e-05
    %v78 = vrsqrt.pop %v76
    %v79 = vrsqrt.pop %v77
    %v80 = vmul.f32 %v64, %v78
    %v81 = vmul.f32 %v65, %v79
    %v82 = vld [vmem:[#allocation5] sm:$0x1]
    %v84 = vlaneseq
    %v85 = vshrl.u32 %v84, 7
    %v86 = vsub.s32 0, %v85
    %v87 = vrot.slane %v82, %v86
    %v89 = vmul.f32 %v80, %v87
    %v90 = vmul.f32 %v81, %v87
    %v91 = vld [vmem:[#allocation7] sm:$0x1]
    %v93 = vlaneseq
    %v94 = vshrl.u32 %v93, 7
    %v95 = vsub.s32 0, %v94
    %v96 = vrot.slane %v91, %v95
    %v98 = vadd.f32 %v89, %v96
    %v99 = vadd.f32 %v90, %v96
    %100 = vst.msk [vmem:[#allocation8] sm:$0xff] %vm54, %v98
    %101 = vst.msk [vmem:[#allocation8 + $0x8] sm:$0xff] %vm54, %v99
    // Predicated region
    $region26: #{transformer_forward.37} parent=1 // pred_check
      _
    $region27: #{transformer_forward.37} parent=1 // pred_check_branch
      %103 = sbr.rel (0) target = $region29
    $region28: #{transformer_forward.37} parent=1 // pred_region
      %s105 = ssub.s32 256, 256
      %106 = vsyncadd [#allocation4], %s105
      %s107 = sshll.u32 [#allocation8], 4
      %s108 = int_to_ptr.vmem [resolvable:$true] %s107
      %113 = dma.vmem_to_hbm [thread:$0]  %s108, 256, %s3, [#allocation4], 128, 128, 8
    $region29: #{transformer_forward.37} parent=1 // pred_fallthru
      _
    // Predicated region
    $region30: #{transformer_forward.37} parent=1 // pred_check
      _
    $region31: #{transformer_forward.37} parent=1 // pred_check_branch
      %115 = sbr.rel (0) target = $region33
    $region32: #{transformer_forward.37} parent=1 // pred_region
      %116 = dma.done [#allocation4], 256
    $region33: #{transformer_forward.37} parent=1 // pred_fallthru
      _
    %117 = vsyncpa [#allocation3], 1
    %118 = vsyncpa [#allocation6], 1
    %119 = vsyncpa [#allocation4], 1

</llo_original>
